<compile_context>
chip_gen: v7x
topology: tpu7x:2x2x1
jax: 0.10.0
libtpu: 0.0.40
codegen_flags: <defaults>
</compile_context>

<pallas_src>
import functools

import jax
import jax.numpy as jnp
from jax.experimental import pallas as pl
from jax.experimental.pallas import tpu as pltpu

CFG = {
    'VGG6AS': ['A', 8, 'M', 32, 'A', 128, 'M', 512, 'A'],
    'VGG6AM': [32, 'A', 64, 'M', 128, 'M', 512, 'A', 'M'],
    'VGG6A': [64, 'A', 128, 'A', 256, 'A', 512, 'A', 'M'],
    'VGG6': [64, 'M', 128, 'M', 256, 'M', 512, 'M', 'A'],
}

VGG_NAME = 'VGG6AS'
NUM_CLASSES = 1000
FLAT_FEATURES = 25088          # 512 * 7 * 7, fixed by the module's classifier
BN_EPS = 1e-5
LANE = 128


def _pad_to_lane(n):
    return ((n + LANE - 1) // LANE) * LANE


def _vmem_limit_bytes(*buffer_bytes):
    """Conservative scoped-VMEM limit: 2x every declared buffer + headroom,
    clamped to [24 MiB, 48 MiB] so it is legal on every TPU generation
    (v7x physical VMEM is 64 MiB)."""
    need = 2 * int(sum(buffer_bytes)) + (8 << 20)
    return int(min(max(need, 24 << 20), 48 << 20))


# --------------------------------------------------------------------------
# Pallas kernels
# --------------------------------------------------------------------------
def fused_linear_kernel(x_ref, w_ref, p_ref, o_ref, *, use_bn, use_relu,
                        eps=BN_EPS):
    """Single-shot Y = maybe_relu(maybe_batchnorm(X @ W + bias)).

    p_ref is a packed (8, N) parameter tile: row 0 = bias, row 1 = gamma,
    row 2 = beta (one DMA pipeline instead of three).
    """
    y = jnp.dot(x_ref[...], w_ref[...], preferred_element_type=jnp.float32)
    y = y + p_ref[0:1, :]
    if use_bn:
        # training-mode BatchNorm: biased batch statistics over all rows.
        mean = jnp.mean(y, axis=0, keepdims=True)
        var = jnp.mean(jnp.square(y - mean), axis=0, keepdims=True)
        y = (y - mean) * jax.lax.rsqrt(var + eps) * p_ref[1:2, :] + p_ref[2:3, :]
    if use_relu:
        y = jnp.maximum(y, 0.0)
    o_ref[...] = y.astype(o_ref.dtype)


def linear_ktiled_kernel(x_ref, w_ref, p_ref, o_ref, acc_ref):
    """K-tiled, N-parallel Y = X @ W + bias (classifier; no BN / ReLU)."""
    k = pl.program_id(1)

    @pl.when(k == 0)
    def _():
        acc_ref[...] = jnp.zeros_like(acc_ref)

    acc_ref[...] += jnp.dot(x_ref[...], w_ref[...],
                            preferred_element_type=jnp.float32)

    @pl.when(k == pl.num_programs(1) - 1)
    def _():
        o_ref[...] = (acc_ref[...] + p_ref[0:1, :]).astype(o_ref.dtype)


def pool2x2_kernel(x_ref, o_ref, *, op, w, c):
    """2x2 stride-2 pooling.

    x_ref: (N*Ho, 2*W*C) where each row holds two vertically-adjacent input
    rows (a free row-major reshape of the NHWC tensor).  All slices below are
    static and lane-aligned (C is a multiple of 128).
    """
    red = jnp.maximum if op == "max" else (lambda a, b: a + b)
    v = x_ref[...]
    t = red(v[:, : w * c], v[:, w * c:])                 # vertical pairs
    for j in range(w // 2):                              # horizontal pairs
        r = red(t[:, (2 * j) * c:(2 * j + 1) * c],
                t[:, (2 * j + 1) * c:(2 * j + 2) * c])
        if op == "avg":
            r = r * 0.25
        o_ref[:, j * c:(j + 1) * c] = r


# --------------------------------------------------------------------------
# Pallas wrappers
# --------------------------------------------------------------------------
def fused_linear(x, w, p, *, use_bn, use_relu):
    """Whole-problem fused matmul (+BN+ReLU) for the conv layers (K fits)."""
    M, K = x.shape
    Kw, N = w.shape
    assert K == Kw and p.shape == (8, N)
    kernel = functools.partial(fused_linear_kernel,
                               use_bn=use_bn, use_relu=use_relu)
    vmem = _vmem_limit_bytes(M * K * 4, K * N * 4, 8 * N * 4, M * N * 4)
    return pl.pallas_call(
        kernel,
        out_shape=jax.ShapeDtypeStruct((M, N), jnp.float32),
        compiler_params=pltpu.CompilerParams(vmem_limit_bytes=vmem),
    )(x, w, p)


def classifier_matmul(x, w, p, *, block_n=512, block_k=3584):
    """Big linear layer: bf16 inputs, f32 accumulate, K-tiled, N-parallel."""
    M, K = x.shape
    _, N = w.shape
    assert K % block_k == 0 and N % block_n == 0 and p.shape == (8, N)
    nj, nk = N // block_n, K // block_k
    itm = x.dtype.itemsize
    wtm = w.dtype.itemsize
    vmem = _vmem_limit_bytes(M * block_k * itm, block_k * block_n * wtm,
                             8 * block_n * 4, 2 * M * block_n * 4)
    cost = pl.CostEstimate(
        flops=int(2 * M * K * N),
        transcendentals=0,
        bytes_accessed=int(M * K * itm + K * N * wtm + M * N * 4 + p.size * 4),
    )
    return pl.pallas_call(
        linear_ktiled_kernel,
        out_shape=jax.ShapeDtypeStruct((M, N), jnp.float32),
        grid_spec=pltpu.PrefetchScalarGridSpec(
            num_scalar_prefetch=0,
            grid=(nj, nk),                              # reduction axis last
            in_specs=[
                pl.BlockSpec((M, block_k), lambda j, k: (0, k)),
                pl.BlockSpec((block_k, block_n), lambda j, k: (k, j)),
                pl.BlockSpec((8, block_n), lambda j, k: (0, j)),
            ],
            out_specs=pl.BlockSpec((M, block_n), lambda j, k: (0, j)),
            scratch_shapes=[pltpu.VMEM((M, block_n), jnp.float32)],
        ),
        compiler_params=pltpu.CompilerParams(
            dimension_semantics=("parallel", "arbitrary"),
            vmem_limit_bytes=vmem,
        ),
        cost_estimate=cost,
    )(x, w, p)


def pool2x2(x, op):
    """2x2 stride-2 pooling on an NHWC tensor (C multiple of 128)."""
    N, H, W, C = x.shape
    assert H % 2 == 0 and W % 2 == 0 and C % LANE == 0
    Ho, Wo = H // 2, W // 2
    xr = x.reshape(N * Ho, 2 * W * C)          # free (row-major) reshape
    out = pl.pallas_call(
        functools.partial(pool2x2_kernel, op=op, w=W, c=C),
        out_shape=jax.ShapeDtypeStruct((N * Ho, Wo * C), jnp.float32),
    )(xr)
    return out.reshape(N, Ho, Wo, C)


# --------------------------------------------------------------------------
# Plain-JAX glue (layout only)
# --------------------------------------------------------------------------
def im2col_3x3(x):
    """NHWC -> (N*H*W, 9*C) patches in (kh, kw, cin) column order, padding=1."""
    N, H, W, C = x.shape
    xp = jnp.pad(x, ((0, 0), (1, 1), (1, 1), (0, 0)))
    patches = [xp[:, kh:kh + H, kw:kw + W, :]
               for kh in range(3) for kw in range(3)]
    cols = jnp.stack(patches, axis=3)              # (N, H, W, 9, C)
    return cols.reshape(N * H * W, 9 * C)


def adaptive_avg_pool_7x7(x):
    """nn.AdaptiveAvgPool2d((7,7)) on NHWC.  Static window binning in JAX.
    (For the 1x1 input this config produces, it is pure replication.)"""
    N, H, W, C = x.shape
    rows = []
    for i in range(7):
        h0, h1 = (i * H) // 7, -(-((i + 1) * H) // 7)
        cols = []
        for j in range(7):
            w0, w1 = (j * W) // 7, -(-((j + 1) * W) // 7)
            cols.append(jnp.mean(x[:, h0:h1, w0:w1, :], axis=(1, 2)))
        rows.append(jnp.stack(cols, axis=1))
    return jnp.stack(rows, axis=1)                  # (N, 7, 7, C)


# --------------------------------------------------------------------------
# Parameter init (deterministic, synthetic) with channel padding built in
# --------------------------------------------------------------------------
def _pack_params(bias_real, n_real, n_pad):
    """Pack (bias, gamma, beta) rows into an (8, n_pad) f32 tile."""
    p = jnp.zeros((8, n_pad), jnp.float32)
    p = p.at[0, :n_real].set(bias_real)     # bias (padded cols -> 0)
    p = p.at[1, :].set(1.0)                 # gamma = 1 (fresh BatchNorm)
    # row 2 (beta) stays 0
    return p


def init_params(key, cfg_list):
    params = []
    in_real, in_pad = 3, 3                  # network input is unpadded 3-ch
    for v in cfg_list:
        if v == 'M':
            params.append(('M',))
            continue
        if v == 'A':                        # 1x1 conv, in_c -> in_c
            out_real = in_real
            out_pad = _pad_to_lane(out_real)
            key, k1, k2 = jax.random.split(key, 3)
            w_real = (jax.random.normal(k1, (in_real, out_real), jnp.float32)
                      / jnp.sqrt(in_real))
            b_real = jax.random.normal(k2, (out_real,), jnp.float32) * 0.01
            w = jnp.zeros((in_pad, out_pad), jnp.float32)
            w = w.at[:in_real, :out_real].set(w_real)
            params.append(('A', w, _pack_params(b_real, out_real, out_pad)))
            in_real, in_pad = out_real, out_pad
        else:                               # 3x3 conv, padding=1
            out_real = int(v)
            out_pad = _pad_to_lane(out_real)
            key, k1, k2 = jax.random.split(key, 3)
            w_real = (jax.random.normal(k1, (3, 3, in_real, out_real),
                                        jnp.float32) / jnp.sqrt(9 * in_real))
            b_real = jax.random.normal(k2, (out_real,), jnp.float32) * 0.01
            w = jnp.zeros((3, 3, in_pad, out_pad), jnp.float32)
            w = w.at[:, :, :in_real, :out_real].set(w_real)
            w = w.reshape(9 * in_pad, out_pad)
            params.append(('C', w, _pack_params(b_real, out_real, out_pad)))
            in_real, in_pad = out_real, out_pad

    # classifier: Identity x6 then Linear(25088 -> 1000); N padded to 1024,
    # weights stored in bf16 (the layer is pure HBM-bandwidth bound).
    key, k1, k2 = jax.random.split(key, 3)
    wl_real = (jax.random.normal(k1, (FLAT_FEATURES, NUM_CLASSES), jnp.float32)
               / jnp.sqrt(FLAT_FEATURES))
    bl_real = jax.random.normal(k2, (NUM_CLASSES,), jnp.float32) * 0.01
    n_pad = _pad_to_lane(NUM_CLASSES)       # 1024
    wl = jnp.zeros((FLAT_FEATURES, n_pad), jnp.float32)
    wl = wl.at[:, :NUM_CLASSES].set(wl_real).astype(jnp.bfloat16)
    p_cls = jnp.zeros((8, n_pad), jnp.float32)
    p_cls = p_cls.at[0, :NUM_CLASSES].set(bl_real)
    params.append(('L', wl, p_cls))
    return params


# --------------------------------------------------------------------------
# Forward pass
# --------------------------------------------------------------------------
def vgg_forward(params, x_nchw):
    x = jnp.transpose(x_nchw, (0, 2, 3, 1)).astype(jnp.float32)   # NCHW->NHWC
    for layer in params[:-1]:
        kind = layer[0]
        if kind == 'M':
            x = pool2x2(x, "max")
        elif kind == 'A':                  # 1x1 conv + BN + ReLU + AvgPool
            _, w, p = layer
            N, H, W, C = x.shape
            y = fused_linear(x.reshape(N * H * W, C), w, p,
                             use_bn=True, use_relu=True)
            x = pool2x2(y.reshape(N, H, W, -1), "avg")
        else:                              # 3x3 conv + BN + ReLU
            _, w, p = layer
            N, H, W, C = x.shape
            y = fused_linear(im2col_3x3(x), w, p, use_bn=True, use_relu=True)
            x = y.reshape(N, H, W, -1)

    x = adaptive_avg_pool_7x7(x)                                   # (N,7,7,512)
    N = x.shape[0]
    feats = jnp.transpose(x, (0, 3, 1, 2)).reshape(N, -1)          # NCHW flatten
    feats = feats.astype(jnp.bfloat16)     # halve the classifier HBM stream
    _, wl, p_cls = params[-1]
    logits = classifier_matmul(feats, wl, p_cls)                   # (N, 1024)
    return logits[:, :NUM_CLASSES]


if __name__ == "__main__":
    key = jax.random.PRNGKey(0)
    pkey, xkey = jax.random.split(key)
    params = init_params(pkey, CFG[VGG_NAME])
    x = jax.random.normal(xkey, (2, 3, 32, 32), jnp.float32)       # NCHW input
    out = vgg_forward(params, x)
    out = jax.block_until_ready(out)
    assert out.shape == (2, NUM_CLASSES)
    assert bool(jnp.all(jnp.isfinite(out)))
    print("KERNEL_OK")
</pallas_src>

<mosaic_0001>
module attributes {stable_mosaic.version = 11 : i64} {
  func.func @fused_linear_kernel(%arg0: memref<2048x3xf32, #tpu.memory_space<vmem>>, %arg1: memref<3x128xf32, #tpu.memory_space<vmem>>, %arg2: memref<8x128xf32, #tpu.memory_space<vmem>>, %arg3: memref<2048x128xf32, #tpu.memory_space<vmem>>) attributes {dimension_semantics = [], scalar_prefetch = 0 : i64, scratch_operands = 0 : i64, tpu.core_type = #tpu.core_type<tc>} {
    %c0 = arith.constant 0 : index
    %c0_0 = arith.constant 0 : index
    %0 = vector.load %arg0[%c0, %c0_0] : memref<2048x3xf32, #tpu.memory_space<vmem>>, vector<2048x3xf32>
    %c0_1 = arith.constant 0 : index
    %c0_2 = arith.constant 0 : index
    %1 = vector.load %arg1[%c0_1, %c0_2] : memref<3x128xf32, #tpu.memory_space<vmem>>, vector<3x128xf32>
    %cst = arith.constant dense<0.000000e+00> : vector<2048x128xf32>
    %2 = tpu.matmul %0, %1, %cst {dimension_numbers = #tpu.dot_dimension_numbers<[1], [0], [0], [1], [0, 0, 1, 1], [], []>} : vector<2048x3xf32>, vector<3x128xf32>, vector<2048x128xf32> -> vector<2048x128xf32>
    %c0_3 = arith.constant 0 : index
    %c0_4 = arith.constant 0 : index
    %3 = vector.load %arg2[%c0_3, %c0_4] : memref<8x128xf32, #tpu.memory_space<vmem>>, vector<1x128xf32>
    %4 = vector.broadcast %3 : vector<1x128xf32> to vector<2048x128xf32>
    %5 = arith.addf %2, %4 : vector<2048x128xf32>
    %cst_5 = arith.constant dense<0.000000e+00> : vector<128xf32>
    %6 = vector.multi_reduction <add>, %5, %cst_5 [0] : vector<2048x128xf32> to vector<128xf32>
    %7 = vector.shape_cast %6 : vector<128xf32> to vector<1x128xf32>
    %cst_6 = arith.constant 2.048000e+03 : f32
    %8 = vector.broadcast %cst_6 : f32 to vector<1x128xf32>
    %9 = arith.divf %7, %8 : vector<1x128xf32>
    %10 = vector.broadcast %9 : vector<1x128xf32> to vector<2048x128xf32>
    %11 = arith.subf %5, %10 : vector<2048x128xf32>
    %12 = arith.mulf %11, %11 : vector<2048x128xf32>
    %cst_7 = arith.constant dense<0.000000e+00> : vector<128xf32>
    %13 = vector.multi_reduction <add>, %12, %cst_7 [0] : vector<2048x128xf32> to vector<128xf32>
    %14 = vector.shape_cast %13 : vector<128xf32> to vector<1x128xf32>
    %cst_8 = arith.constant 2.048000e+03 : f32
    %15 = vector.broadcast %cst_8 : f32 to vector<1x128xf32>
    %16 = arith.divf %14, %15 : vector<1x128xf32>
    %17 = vector.broadcast %9 : vector<1x128xf32> to vector<2048x128xf32>
    %18 = arith.subf %5, %17 : vector<2048x128xf32>
    %cst_9 = arith.constant 9.99999974E-6 : f32
    %19 = vector.broadcast %cst_9 : f32 to vector<1x128xf32>
    %20 = arith.addf %16, %19 : vector<1x128xf32>
    %21 = math.rsqrt %20 : vector<1x128xf32>
    %22 = vector.broadcast %21 : vector<1x128xf32> to vector<2048x128xf32>
    %23 = arith.mulf %18, %22 : vector<2048x128xf32>
    %c1 = arith.constant 1 : index
    %c0_10 = arith.constant 0 : index
    %24 = vector.load %arg2[%c1, %c0_10] : memref<8x128xf32, #tpu.memory_space<vmem>>, vector<1x128xf32>
    %25 = vector.broadcast %24 : vector<1x128xf32> to vector<2048x128xf32>
    %26 = arith.mulf %23, %25 : vector<2048x128xf32>
    %c2 = arith.constant 2 : index
    %c0_11 = arith.constant 0 : index
    %27 = vector.load %arg2[%c2, %c0_11] : memref<8x128xf32, #tpu.memory_space<vmem>>, vector<1x128xf32>
    %28 = vector.broadcast %27 : vector<1x128xf32> to vector<2048x128xf32>
    %29 = arith.addf %26, %28 : vector<2048x128xf32>
    %cst_12 = arith.constant 0.000000e+00 : f32
    %30 = vector.broadcast %cst_12 : f32 to vector<2048x128xf32>
    %31 = arith.maximumf %29, %30 : vector<2048x128xf32>
    %c0_13 = arith.constant 0 : index
    %c0_14 = arith.constant 0 : index
    %32 = vector.load %arg3[%c0_13, %c0_14] : memref<2048x128xf32, #tpu.memory_space<vmem>>, vector<2048x128xf32>
    tpu.vector_store %arg3[%c0_13, %c0_14], %31 {strides = array<i32>} : memref<2048x128xf32, #tpu.memory_space<vmem>>, vector<2048x128xf32>,
    return
  }
}

</mosaic_0001>

<llo_original>
// kernel: tpu_custom_call.1
$region0: #{tpu_custom_call.1}
  #allocation0 [shape = 'u32[]', space=smem, size = 0x4, offset = 0x4, fixed_abs, tag = 'smem constant byte address 0x4 - core index']
  #allocation1 [shape = 'u32[144,128]{1,0:T(1,128)}', space=vmem, size = 0x12000, scoped, tag = 'internal scratch']
  %s0 = inlined_call_operand.vmem [shape: f32[2048,3], index: 0, kind: input, shape index: {}]
  %s1 = inlined_call_operand.vmem [shape: f32[3,128], index: 1, kind: input, shape index: {}]
  %s2 = inlined_call_operand.vmem [shape: f32[8,128], index: 2, kind: input, shape index: {}]
  %s3 = inlined_call_operand.hbm [shape: f32[2048,128], index: 3, kind: output, shape index: {}]
  %s4 = sld [smem:[#allocation0]]
  $region22: #{tpu_custom_call.1} parent=0
    _
  %s6 = ssub.s32 1, %s4
  %s7 = scalar_select 0, %s6, %s4
  $region1: #{tpu_custom_call.1} parent=0
    #allocation2 [shape = 'u8[1048576]{0}', space=vmem, size = 0x100000, scoped, tag = 'output window, operand 0, single buffered']
    #allocation3 [shape = 's32[1]{0}', space=sflag, size = 0x4, scoped, tag = 'scoped memory for tpu_custom_call.1']
    %8 = vsyncpa [#allocation3], 0
    // Predicated region
    $region2: #{tpu_custom_call.1} parent=1 // pred_check
      _
    $region3: #{tpu_custom_call.1} parent=1 // pred_check_branch
      %10 = sbr.rel (0) target = $region5
    $region4: #{tpu_custom_call.1} parent=1 // pred_region
      _
    $region5: #{tpu_custom_call.1} parent=1 // pred_fallthru
      _
    // Predicated region
    $region6: #{tpu_custom_call.1} parent=1 // pred_check
      _
    $region7: #{tpu_custom_call.1} parent=1 // pred_check_branch
      %12 = sbr.rel (0) target = $region9
    $region8: #{tpu_custom_call.1} parent=1 // pred_region
      _
    $region9: #{tpu_custom_call.1} parent=1 // pred_fallthru
      _
    // Predicated region
    $region10: #{tpu_custom_call.1} parent=1 // pred_check
      _
    $region11: #{tpu_custom_call.1} parent=1 // pred_check_branch
      %14 = sbr.rel (0) target = $region13
    $region12: #{tpu_custom_call.1} parent=1 // pred_region
      _
    $region13: #{tpu_custom_call.1} parent=1 // pred_fallthru
      _
    %v15 = vld [vmem:[%s0] sm:$0xff]
    %v16 = vld [vmem:[%s0 + $0x8] sm:$0xff]
    %v17 = vld [vmem:[%s0 + $0x10] sm:$0xff]
    %v18 = vld [vmem:[%s0 + $0x18] sm:$0xff]
    %v19 = vld [vmem:[%s0 + $0x20] sm:$0xff]
    %v20 = vld [vmem:[%s0 + $0x28] sm:$0xff]
    %v21 = vld [vmem:[%s0 + $0x30] sm:$0xff]
    %v22 = vld [vmem:[%s0 + $0x38] sm:$0xff]
    %v23 = vld [vmem:[%s0 + $0x40] sm:$0xff]
    %v24 = vld [vmem:[%s0 + $0x48] sm:$0xff]
    %v25 = vld [vmem:[%s0 + $0x50] sm:$0xff]
    %v26 = vld [vmem:[%s0 + $0x58] sm:$0xff]
    %v27 = vld [vmem:[%s0 + $0x60] sm:$0xff]
    %v28 = vld [vmem:[%s0 + $0x68] sm:$0xff]
    %v29 = vld [vmem:[%s0 + $0x70] sm:$0xff]
    %v30 = vld [vmem:[%s0 + $0x78] sm:$0xff]
    %v31 = vld [vmem:[%s0 + $0x80] sm:$0xff]
    %v32 = vld [vmem:[%s0 + $0x88] sm:$0xff]
    %v33 = vld [vmem:[%s0 + $0x90] sm:$0xff]
    %v34 = vld [vmem:[%s0 + $0x98] sm:$0xff]
    %v35 = vld [vmem:[%s0 + $0xa0] sm:$0xff]
    %v36 = vld [vmem:[%s0 + $0xa8] sm:$0xff]
    %v37 = vld [vmem:[%s0 + $0xb0] sm:$0xff]
    %v38 = vld [vmem:[%s0 + $0xb8] sm:$0xff]
    %v39 = vld [vmem:[%s0 + $0xc0] sm:$0xff]
    %v40 = vld [vmem:[%s0 + $0xc8] sm:$0xff]
    %v41 = vld [vmem:[%s0 + $0xd0] sm:$0xff]
    %v42 = vld [vmem:[%s0 + $0xd8] sm:$0xff]
    %v43 = vld [vmem:[%s0 + $0xe0] sm:$0xff]
    %v44 = vld [vmem:[%s0 + $0xe8] sm:$0xff]
    %v45 = vld [vmem:[%s0 + $0xf0] sm:$0xff]
    %v46 = vld [vmem:[%s0 + $0xf8] sm:$0xff]
    %v47 = vld [vmem:[%s0 + $0x100] sm:$0xff]
    %v48 = vld [vmem:[%s0 + $0x108] sm:$0xff]
    %v49 = vld [vmem:[%s0 + $0x110] sm:$0xff]
    %v50 = vld [vmem:[%s0 + $0x118] sm:$0xff]
    %v51 = vld [vmem:[%s0 + $0x120] sm:$0xff]
    %v52 = vld [vmem:[%s0 + $0x128] sm:$0xff]
    %v53 = vld [vmem:[%s0 + $0x130] sm:$0xff]
    %v54 = vld [vmem:[%s0 + $0x138] sm:$0xff]
    %v55 = vld [vmem:[%s0 + $0x140] sm:$0xff]
    %v56 = vld [vmem:[%s0 + $0x148] sm:$0xff]
    %v57 = vld [vmem:[%s0 + $0x150] sm:$0xff]
    %v58 = vld [vmem:[%s0 + $0x158] sm:$0xff]
    %v59 = vld [vmem:[%s0 + $0x160] sm:$0xff]
    %v60 = vld [vmem:[%s0 + $0x168] sm:$0xff]
    %v61 = vld [vmem:[%s0 + $0x170] sm:$0xff]
    %v62 = vld [vmem:[%s0 + $0x178] sm:$0xff]
    %v63 = vld [vmem:[%s0 + $0x180] sm:$0xff]
    %v64 = vld [vmem:[%s0 + $0x188] sm:$0xff]
    %v65 = vld [vmem:[%s0 + $0x190] sm:$0xff]
    %v66 = vld [vmem:[%s0 + $0x198] sm:$0xff]
    %v67 = vld [vmem:[%s0 + $0x1a0] sm:$0xff]
    %v68 = vld [vmem:[%s0 + $0x1a8] sm:$0xff]
    %v69 = vld [vmem:[%s0 + $0x1b0] sm:$0xff]
    %v70 = vld [vmem:[%s0 + $0x1b8] sm:$0xff]
    %v71 = vld [vmem:[%s0 + $0x1c0] sm:$0xff]
    %v72 = vld [vmem:[%s0 + $0x1c8] sm:$0xff]
    %v73 = vld [vmem:[%s0 + $0x1d0] sm:$0xff]
    %v74 = vld [vmem:[%s0 + $0x1d8] sm:$0xff]
    %v75 = vld [vmem:[%s0 + $0x1e0] sm:$0xff]
    %v76 = vld [vmem:[%s0 + $0x1e8] sm:$0xff]
    %v77 = vld [vmem:[%s0 + $0x1f0] sm:$0xff]
    %v78 = vld [vmem:[%s0 + $0x1f8] sm:$0xff]
    %v79 = vld [vmem:[%s0 + $0x200] sm:$0xff]
    %v80 = vld [vmem:[%s0 + $0x208] sm:$0xff]
    %v81 = vld [vmem:[%s0 + $0x210] sm:$0xff]
    %v82 = vld [vmem:[%s0 + $0x218] sm:$0xff]
    %v83 = vld [vmem:[%s0 + $0x220] sm:$0xff]
    %v84 = vld [vmem:[%s0 + $0x228] sm:$0xff]
    %v85 = vld [vmem:[%s0 + $0x230] sm:$0xff]
    %v86 = vld [vmem:[%s0 + $0x238] sm:$0xff]
    %v87 = vld [vmem:[%s0 + $0x240] sm:$0xff]
    %v88 = vld [vmem:[%s0 + $0x248] sm:$0xff]
    %v89 = vld [vmem:[%s0 + $0x250] sm:$0xff]
    %v90 = vld [vmem:[%s0 + $0x258] sm:$0xff]
    %v91 = vld [vmem:[%s0 + $0x260] sm:$0xff]
    %v92 = vld [vmem:[%s0 + $0x268] sm:$0xff]
    %v93 = vld [vmem:[%s0 + $0x270] sm:$0xff]
    %v94 = vld [vmem:[%s0 + $0x278] sm:$0xff]
    %v95 = vld [vmem:[%s0 + $0x280] sm:$0xff]
    %v96 = vld [vmem:[%s0 + $0x288] sm:$0xff]
    %v97 = vld [vmem:[%s0 + $0x290] sm:$0xff]
    %v98 = vld [vmem:[%s0 + $0x298] sm:$0xff]
    %v99 = vld [vmem:[%s0 + $0x2a0] sm:$0xff]
    %v100 = vld [vmem:[%s0 + $0x2a8] sm:$0xff]
    %v101 = vld [vmem:[%s0 + $0x2b0] sm:$0xff]
    %v102 = vld [vmem:[%s0 + $0x2b8] sm:$0xff]
    %v103 = vld [vmem:[%s0 + $0x2c0] sm:$0xff]
    %v104 = vld [vmem:[%s0 + $0x2c8] sm:$0xff]
    %v105 = vld [vmem:[%s0 + $0x2d0] sm:$0xff]
    %v106 = vld [vmem:[%s0 + $0x2d8] sm:$0xff]
    %v107 = vld [vmem:[%s0 + $0x2e0] sm:$0xff]
    %v108 = vld [vmem:[%s0 + $0x2e8] sm:$0xff]
    %v109 = vld [vmem:[%s0 + $0x2f0] sm:$0xff]
    %v110 = vld [vmem:[%s0 + $0x2f8] sm:$0xff]
    %v111 = vld [vmem:[%s0 + $0x300] sm:$0xff]
    %v112 = vld [vmem:[%s0 + $0x308] sm:$0xff]
    %v113 = vld [vmem:[%s0 + $0x310] sm:$0xff]
    %v114 = vld [vmem:[%s0 + $0x318] sm:$0xff]
    %v115 = vld [vmem:[%s0 + $0x320] sm:$0xff]
    %v116 = vld [vmem:[%s0 + $0x328] sm:$0xff]
    %v117 = vld [vmem:[%s0 + $0x330] sm:$0xff]
    %v118 = vld [vmem:[%s0 + $0x338] sm:$0xff]
    %v119 = vld [vmem:[%s0 + $0x340] sm:$0xff]
    %v120 = vld [vmem:[%s0 + $0x348] sm:$0xff]
    %v121 = vld [vmem:[%s0 + $0x350] sm:$0xff]
    %v122 = vld [vmem:[%s0 + $0x358] sm:$0xff]
    %v123 = vld [vmem:[%s0 + $0x360] sm:$0xff]
    %v124 = vld [vmem:[%s0 + $0x368] sm:$0xff]
    %v125 = vld [vmem:[%s0 + $0x370] sm:$0xff]
    %v126 = vld [vmem:[%s0 + $0x378] sm:$0xff]
    %v127 = vld [vmem:[%s0 + $0x380] sm:$0xff]
    %v128 = vld [vmem:[%s0 + $0x388] sm:$0xff]
    %v129 = vld [vmem:[%s0 + $0x390] sm:$0xff]
    %v130 = vld [vmem:[%s0 + $0x398] sm:$0xff]
    %v131 = vld [vmem:[%s0 + $0x3a0] sm:$0xff]
    %v132 = vld [vmem:[%s0 + $0x3a8] sm:$0xff]
    %v133 = vld [vmem:[%s0 + $0x3b0] sm:$0xff]
    %v134 = vld [vmem:[%s0 + $0x3b8] sm:$0xff]
    %v135 = vld [vmem:[%s0 + $0x3c0] sm:$0xff]
    %v136 = vld [vmem:[%s0 + $0x3c8] sm:$0xff]
    %v137 = vld [vmem:[%s0 + $0x3d0] sm:$0xff]
    %v138 = vld [vmem:[%s0 + $0x3d8] sm:$0xff]
    %v139 = vld [vmem:[%s0 + $0x3e0] sm:$0xff]
    %v140 = vld [vmem:[%s0 + $0x3e8] sm:$0xff]
    %v141 = vld [vmem:[%s0 + $0x3f0] sm:$0xff]
    %v142 = vld [vmem:[%s0 + $0x3f8] sm:$0xff]
    %v143 = vld [vmem:[%s0 + $0x400] sm:$0xff]
    %v144 = vld [vmem:[%s0 + $0x408] sm:$0xff]
    %v145 = vld [vmem:[%s0 + $0x410] sm:$0xff]
    %v146 = vld [vmem:[%s0 + $0x418] sm:$0xff]
    %v147 = vld [vmem:[%s0 + $0x420] sm:$0xff]
    %v148 = vld [vmem:[%s0 + $0x428] sm:$0xff]
    %v149 = vld [vmem:[%s0 + $0x430] sm:$0xff]
    %v150 = vld [vmem:[%s0 + $0x438] sm:$0xff]
    %v151 = vld [vmem:[%s0 + $0x440] sm:$0xff]
    %v152 = vld [vmem:[%s0 + $0x448] sm:$0xff]
    %v153 = vld [vmem:[%s0 + $0x450] sm:$0xff]
    %v154 = vld [vmem:[%s0 + $0x458] sm:$0xff]
    %v155 = vld [vmem:[%s0 + $0x460] sm:$0xff]
    %v156 = vld [vmem:[%s0 + $0x468] sm:$0xff]
    %v157 = vld [vmem:[%s0 + $0x470] sm:$0xff]
    %v158 = vld [vmem:[%s0 + $0x478] sm:$0xff]
    %v159 = vld [vmem:[%s0 + $0x480] sm:$0xff]
    %v160 = vld [vmem:[%s0 + $0x488] sm:$0xff]
    %v161 = vld [vmem:[%s0 + $0x490] sm:$0xff]
    %v162 = vld [vmem:[%s0 + $0x498] sm:$0xff]
    %v163 = vld [vmem:[%s0 + $0x4a0] sm:$0xff]
    %v164 = vld [vmem:[%s0 + $0x4a8] sm:$0xff]
    %v165 = vld [vmem:[%s0 + $0x4b0] sm:$0xff]
    %v166 = vld [vmem:[%s0 + $0x4b8] sm:$0xff]
    %v167 = vld [vmem:[%s0 + $0x4c0] sm:$0xff]
    %v168 = vld [vmem:[%s0 + $0x4c8] sm:$0xff]
    %v169 = vld [vmem:[%s0 + $0x4d0] sm:$0xff]
    %v170 = vld [vmem:[%s0 + $0x4d8] sm:$0xff]
    %v171 = vld [vmem:[%s0 + $0x4e0] sm:$0xff]
    %v172 = vld [vmem:[%s0 + $0x4e8] sm:$0xff]
    %v173 = vld [vmem:[%s0 + $0x4f0] sm:$0xff]
    %v174 = vld [vmem:[%s0 + $0x4f8] sm:$0xff]
    %v175 = vld [vmem:[%s0 + $0x500] sm:$0xff]
    %v176 = vld [vmem:[%s0 + $0x508] sm:$0xff]
    %v177 = vld [vmem:[%s0 + $0x510] sm:$0xff]
    %v178 = vld [vmem:[%s0 + $0x518] sm:$0xff]
    %v179 = vld [vmem:[%s0 + $0x520] sm:$0xff]
    %v180 = vld [vmem:[%s0 + $0x528] sm:$0xff]
    %v181 = vld [vmem:[%s0 + $0x530] sm:$0xff]
    %v182 = vld [vmem:[%s0 + $0x538] sm:$0xff]
    %v183 = vld [vmem:[%s0 + $0x540] sm:$0xff]
    %v184 = vld [vmem:[%s0 + $0x548] sm:$0xff]
    %v185 = vld [vmem:[%s0 + $0x550] sm:$0xff]
    %v186 = vld [vmem:[%s0 + $0x558] sm:$0xff]
    %v187 = vld [vmem:[%s0 + $0x560] sm:$0xff]
    %v188 = vld [vmem:[%s0 + $0x568] sm:$0xff]
    %v189 = vld [vmem:[%s0 + $0x570] sm:$0xff]
    %v190 = vld [vmem:[%s0 + $0x578] sm:$0xff]
    %v191 = vld [vmem:[%s0 + $0x580] sm:$0xff]
    %v192 = vld [vmem:[%s0 + $0x588] sm:$0xff]
    %v193 = vld [vmem:[%s0 + $0x590] sm:$0xff]
    %v194 = vld [vmem:[%s0 + $0x598] sm:$0xff]
    %v195 = vld [vmem:[%s0 + $0x5a0] sm:$0xff]
    %v196 = vld [vmem:[%s0 + $0x5a8] sm:$0xff]
    %v197 = vld [vmem:[%s0 + $0x5b0] sm:$0xff]
    %v198 = vld [vmem:[%s0 + $0x5b8] sm:$0xff]
    %v199 = vld [vmem:[%s0 + $0x5c0] sm:$0xff]
    %v200 = vld [vmem:[%s0 + $0x5c8] sm:$0xff]
    %v201 = vld [vmem:[%s0 + $0x5d0] sm:$0xff]
    %v202 = vld [vmem:[%s0 + $0x5d8] sm:$0xff]
    %v203 = vld [vmem:[%s0 + $0x5e0] sm:$0xff]
    %v204 = vld [vmem:[%s0 + $0x5e8] sm:$0xff]
    %v205 = vld [vmem:[%s0 + $0x5f0] sm:$0xff]
    %v206 = vld [vmem:[%s0 + $0x5f8] sm:$0xff]
    %v207 = vld [vmem:[%s0 + $0x600] sm:$0xff]
    %v208 = vld [vmem:[%s0 + $0x608] sm:$0xff]
    %v209 = vld [vmem:[%s0 + $0x610] sm:$0xff]
    %v210 = vld [vmem:[%s0 + $0x618] sm:$0xff]
    %v211 = vld [vmem:[%s0 + $0x620] sm:$0xff]
    %v212 = vld [vmem:[%s0 + $0x628] sm:$0xff]
    %v213 = vld [vmem:[%s0 + $0x630] sm:$0xff]
    %v214 = vld [vmem:[%s0 + $0x638] sm:$0xff]
    %v215 = vld [vmem:[%s0 + $0x640] sm:$0xff]
    %v216 = vld [vmem:[%s0 + $0x648] sm:$0xff]
    %v217 = vld [vmem:[%s0 + $0x650] sm:$0xff]
    %v218 = vld [vmem:[%s0 + $0x658] sm:$0xff]
    %v219 = vld [vmem:[%s0 + $0x660] sm:$0xff]
    %v220 = vld [vmem:[%s0 + $0x668] sm:$0xff]
    %v221 = vld [vmem:[%s0 + $0x670] sm:$0xff]
    %v222 = vld [vmem:[%s0 + $0x678] sm:$0xff]
    %v223 = vld [vmem:[%s0 + $0x680] sm:$0xff]
    %v224 = vld [vmem:[%s0 + $0x688] sm:$0xff]
    %v225 = vld [vmem:[%s0 + $0x690] sm:$0xff]
    %v226 = vld [vmem:[%s0 + $0x698] sm:$0xff]
    %v227 = vld [vmem:[%s0 + $0x6a0] sm:$0xff]
    %v228 = vld [vmem:[%s0 + $0x6a8] sm:$0xff]
    %v229 = vld [vmem:[%s0 + $0x6b0] sm:$0xff]
    %v230 = vld [vmem:[%s0 + $0x6b8] sm:$0xff]
    %v231 = vld [vmem:[%s0 + $0x6c0] sm:$0xff]
    %v232 = vld [vmem:[%s0 + $0x6c8] sm:$0xff]
    %v233 = vld [vmem:[%s0 + $0x6d0] sm:$0xff]
    %v234 = vld [vmem:[%s0 + $0x6d8] sm:$0xff]
    %v235 = vld [vmem:[%s0 + $0x6e0] sm:$0xff]
    %v236 = vld [vmem:[%s0 + $0x6e8] sm:$0xff]
    %v237 = vld [vmem:[%s0 + $0x6f0] sm:$0xff]
    %v238 = vld [vmem:[%s0 + $0x6f8] sm:$0xff]
    %v239 = vld [vmem:[%s0 + $0x700] sm:$0xff]
    %v240 = vld [vmem:[%s0 + $0x708] sm:$0xff]
    %v241 = vld [vmem:[%s0 + $0x710] sm:$0xff]
    %v242 = vld [vmem:[%s0 + $0x718] sm:$0xff]
    %v243 = vld [vmem:[%s0 + $0x720] sm:$0xff]
    %v244 = vld [vmem:[%s0 + $0x728] sm:$0xff]
    %v245 = vld [vmem:[%s0 + $0x730] sm:$0xff]
    %v246 = vld [vmem:[%s0 + $0x738] sm:$0xff]
    %v247 = vld [vmem:[%s0 + $0x740] sm:$0xff]
    %v248 = vld [vmem:[%s0 + $0x748] sm:$0xff]
    %v249 = vld [vmem:[%s0 + $0x750] sm:$0xff]
    %v250 = vld [vmem:[%s0 + $0x758] sm:$0xff]
    %v251 = vld [vmem:[%s0 + $0x760] sm:$0xff]
    %v252 = vld [vmem:[%s0 + $0x768] sm:$0xff]
    %v253 = vld [vmem:[%s0 + $0x770] sm:$0xff]
    %v254 = vld [vmem:[%s0 + $0x778] sm:$0xff]
    %v255 = vld [vmem:[%s0 + $0x780] sm:$0xff]
    %v256 = vld [vmem:[%s0 + $0x788] sm:$0xff]
    %v257 = vld [vmem:[%s0 + $0x790] sm:$0xff]
    %v258 = vld [vmem:[%s0 + $0x798] sm:$0xff]
    %v259 = vld [vmem:[%s0 + $0x7a0] sm:$0xff]
    %v260 = vld [vmem:[%s0 + $0x7a8] sm:$0xff]
    %v261 = vld [vmem:[%s0 + $0x7b0] sm:$0xff]
    %v262 = vld [vmem:[%s0 + $0x7b8] sm:$0xff]
    %v263 = vld [vmem:[%s0 + $0x7c0] sm:$0xff]
    %v264 = vld [vmem:[%s0 + $0x7c8] sm:$0xff]
    %v265 = vld [vmem:[%s0 + $0x7d0] sm:$0xff]
    %v266 = vld [vmem:[%s0 + $0x7d8] sm:$0xff]
    %v267 = vld [vmem:[%s0 + $0x7e0] sm:$0xff]
    %v268 = vld [vmem:[%s0 + $0x7e8] sm:$0xff]
    %v269 = vld [vmem:[%s0 + $0x7f0] sm:$0xff]
    %v270 = vld [vmem:[%s0 + $0x7f8] sm:$0xff]
    %v271 = vld [vmem:[%s1] sm:$0x7]
    %v272 = vld [vmem:[%s2] sm:$0x1]
    %v273 = vlaneseq
    %v274 = vshrl.u32 %v273, 7
    %v275 = vsub.s32 0, %v274
    %v276 = vrot.slane %v272, %v275
    %vm277 = vcmask 23552
    %v279 = vsel %vm277, %v15, 0
    %v282 = vsel %vm277, %v16, 0
    %v285 = vsel %vm277, %v17, 0
    %v288 = vsel %vm277, %v18, 0
    %v291 = vsel %vm277, %v19, 0
    %v294 = vsel %vm277, %v20, 0
    %v297 = vsel %vm277, %v21, 0
    %v300 = vsel %vm277, %v22, 0
    %v303 = vsel %vm277, %v23, 0
    %v306 = vsel %vm277, %v24, 0
    %v309 = vsel %vm277, %v25, 0
    %v312 = vsel %vm277, %v26, 0
    %v315 = vsel %vm277, %v27, 0
    %v318 = vsel %vm277, %v28, 0
    %v321 = vsel %vm277, %v29, 0
    %v324 = vsel %vm277, %v30, 0
    %v327 = vsel %vm277, %v31, 0
    %v330 = vsel %vm277, %v32, 0
    %v333 = vsel %vm277, %v33, 0
    %v336 = vsel %vm277, %v34, 0
    %v339 = vsel %vm277, %v35, 0
    %v342 = vsel %vm277, %v36, 0
    %v345 = vsel %vm277, %v37, 0
    %v348 = vsel %vm277, %v38, 0
    %v351 = vsel %vm277, %v39, 0
    %v354 = vsel %vm277, %v40, 0
    %v357 = vsel %vm277, %v41, 0
    %v360 = vsel %vm277, %v42, 0
    %v363 = vsel %vm277, %v43, 0
    %v366 = vsel %vm277, %v44, 0
    %v369 = vsel %vm277, %v45, 0
    %v372 = vsel %vm277, %v46, 0
    %v375 = vsel %vm277, %v47, 0
    %v378 = vsel %vm277, %v48, 0
    %v381 = vsel %vm277, %v49, 0
    %v384 = vsel %vm277, %v50, 0
    %v387 = vsel %vm277, %v51, 0
    %v390 = vsel %vm277, %v52, 0
    %v393 = vsel %vm277, %v53, 0
    %v396 = vsel %vm277, %v54, 0
    %v399 = vsel %vm277, %v55, 0
    %v402 = vsel %vm277, %v56, 0
    %v405 = vsel %vm277, %v57, 0
    %v408 = vsel %vm277, %v58, 0
    %v411 = vsel %vm277, %v59, 0
    %v414 = vsel %vm277, %v60, 0
    %v417 = vsel %vm277, %v61, 0
    %v420 = vsel %vm277, %v62, 0
    %v423 = vsel %vm277, %v63, 0
    %v426 = vsel %vm277, %v64, 0
    %v429 = vsel %vm277, %v65, 0
    %v432 = vsel %vm277, %v66, 0
    %v435 = vsel %vm277, %v67, 0
    %v438 = vsel %vm277, %v68, 0
    %v441 = vsel %vm277, %v69, 0
    %v444 = vsel %vm277, %v70, 0
    %v447 = vsel %vm277, %v71, 0
    %v450 = vsel %vm277, %v72, 0
    %v453 = vsel %vm277, %v73, 0
    %v456 = vsel %vm277, %v74, 0
    %v459 = vsel %vm277, %v75, 0
    %v462 = vsel %vm277, %v76, 0
    %v465 = vsel %vm277, %v77, 0
    %v468 = vsel %vm277, %v78, 0
    %v471 = vsel %vm277, %v79, 0
    %v474 = vsel %vm277, %v80, 0
    %v477 = vsel %vm277, %v81, 0
    %v480 = vsel %vm277, %v82, 0
    %v483 = vsel %vm277, %v83, 0
    %v486 = vsel %vm277, %v84, 0
    %v489 = vsel %vm277, %v85, 0
    %v492 = vsel %vm277, %v86, 0
    %v495 = vsel %vm277, %v87, 0
    %v498 = vsel %vm277, %v88, 0
    %v501 = vsel %vm277, %v89, 0
    %v504 = vsel %vm277, %v90, 0
    %v507 = vsel %vm277, %v91, 0
    %v510 = vsel %vm277, %v92, 0
    %v513 = vsel %vm277, %v93, 0
    %v516 = vsel %vm277, %v94, 0
    %v519 = vsel %vm277, %v95, 0
    %v522 = vsel %vm277, %v96, 0
    %v525 = vsel %vm277, %v97, 0
    %v528 = vsel %vm277, %v98, 0
    %v531 = vsel %vm277, %v99, 0
    %v534 = vsel %vm277, %v100, 0
    %v537 = vsel %vm277, %v101, 0
    %v540 = vsel %vm277, %v102, 0
    %v543 = vsel %vm277, %v103, 0
    %v546 = vsel %vm277, %v104, 0
    %v549 = vsel %vm277, %v105, 0
    %v552 = vsel %vm277, %v106, 0
    %v555 = vsel %vm277, %v107, 0
    %v558 = vsel %vm277, %v108, 0
    %v561 = vsel %vm277, %v109, 0
    %v564 = vsel %vm277, %v110, 0
    %v567 = vsel %vm277, %v111, 0
    %v570 = vsel %vm277, %v112, 0
    %v573 = vsel %vm277, %v113, 0
    %v576 = vsel %vm277, %v114, 0
    %v579 = vsel %vm277, %v115, 0
    %v582 = vsel %vm277, %v116, 0
    %v585 = vsel %vm277, %v117, 0
    %v588 = vsel %vm277, %v118, 0
    %v591 = vsel %vm277, %v119, 0
    %v594 = vsel %vm277, %v120, 0
    %v597 = vsel %vm277, %v121, 0
    %v600 = vsel %vm277, %v122, 0
    %v603 = vsel %vm277, %v123, 0
    %v606 = vsel %vm277, %v124, 0
    %v609 = vsel %vm277, %v125, 0
    %v612 = vsel %vm277, %v126, 0
    %v615 = vsel %vm277, %v127, 0
    %v618 = vsel %vm277, %v128, 0
    %v621 = vsel %vm277, %v129, 0
    %v624 = vsel %vm277, %v130, 0
    %v627 = vsel %vm277, %v131, 0
    %v630 = vsel %vm277, %v132, 0
    %v633 = vsel %vm277, %v133, 0
    %v636 = vsel %vm277, %v134, 0
    %v639 = vsel %vm277, %v135, 0
    %v642 = vsel %vm277, %v136, 0
    %v645 = vsel %vm277, %v137, 0
    %v648 = vsel %vm277, %v138, 0
    %v651 = vsel %vm277, %v139, 0
    %v654 = vsel %vm277, %v140, 0
    %v657 = vsel %vm277, %v141, 0
    %v660 = vsel %vm277, %v142, 0
    %v663 = vsel %vm277, %v143, 0
    %v666 = vsel %vm277, %v144, 0
    %v669 = vsel %vm277, %v145, 0
    %v672 = vsel %vm277, %v146, 0
    %v675 = vsel %vm277, %v147, 0
    %v678 = vsel %vm277, %v148, 0
    %v681 = vsel %vm277, %v149, 0
    %v684 = vsel %vm277, %v150, 0
    %v687 = vsel %vm277, %v151, 0
    %v690 = vsel %vm277, %v152, 0
    %v693 = vsel %vm277, %v153, 0
    %v696 = vsel %vm277, %v154, 0
    %v699 = vsel %vm277, %v155, 0
    %v702 = vsel %vm277, %v156, 0
    %v705 = vsel %vm277, %v157, 0
    %v708 = vsel %vm277, %v158, 0
    %v711 = vsel %vm277, %v159, 0
    %v714 = vsel %vm277, %v160, 0
    %v717 = vsel %vm277, %v161, 0
    %v720 = vsel %vm277, %v162, 0
    %v723 = vsel %vm277, %v163, 0
    %v726 = vsel %vm277, %v164, 0
    %v729 = vsel %vm277, %v165, 0
    %v732 = vsel %vm277, %v166, 0
    %v735 = vsel %vm277, %v167, 0
    %v738 = vsel %vm277, %v168, 0
    %v741 = vsel %vm277, %v169, 0
    %v744 = vsel %vm277, %v170, 0
    %v747 = vsel %vm277, %v171, 0
    %v750 = vsel %vm277, %v172, 0
    %v753 = vsel %vm277, %v173, 0
    %v756 = vsel %vm277, %v174, 0
    %v759 = vsel %vm277, %v175, 0
    %v762 = vsel %vm277, %v176, 0
    %v765 = vsel %vm277, %v177, 0
    %v768 = vsel %vm277, %v178, 0
    %v771 = vsel %vm277, %v179, 0
    %v774 = vsel %vm277, %v180, 0
    %v777 = vsel %vm277, %v181, 0
    %v780 = vsel %vm277, %v182, 0
    %v783 = vsel %vm277, %v183, 0
    %v786 = vsel %vm277, %v184, 0
    %v789 = vsel %vm277, %v185, 0
    %v792 = vsel %vm277, %v186, 0
    %v795 = vsel %vm277, %v187, 0
    %v798 = vsel %vm277, %v188, 0
    %v801 = vsel %vm277, %v189, 0
    %v804 = vsel %vm277, %v190, 0
    %v807 = vsel %vm277, %v191, 0
    %v810 = vsel %vm277, %v192, 0
    %v813 = vsel %vm277, %v193, 0
    %v816 = vsel %vm277, %v194, 0
    %v819 = vsel %vm277, %v195, 0
    %v822 = vsel %vm277, %v196, 0
    %v825 = vsel %vm277, %v197, 0
    %v828 = vsel %vm277, %v198, 0
    %v831 = vsel %vm277, %v199, 0
    %v834 = vsel %vm277, %v200, 0
    %v837 = vsel %vm277, %v201, 0
    %v840 = vsel %vm277, %v202, 0
    %v843 = vsel %vm277, %v203, 0
    %v846 = vsel %vm277, %v204, 0
    %v849 = vsel %vm277, %v205, 0
    %v852 = vsel %vm277, %v206, 0
    %v855 = vsel %vm277, %v207, 0
    %v858 = vsel %vm277, %v208, 0
    %v861 = vsel %vm277, %v209, 0
    %v864 = vsel %vm277, %v210, 0
    %v867 = vsel %vm277, %v211, 0
    %v870 = vsel %vm277, %v212, 0
    %v873 = vsel %vm277, %v213, 0
    %v876 = vsel %vm277, %v214, 0
    %v879 = vsel %vm277, %v215, 0
    %v882 = vsel %vm277, %v216, 0
    %v885 = vsel %vm277, %v217, 0
    %v888 = vsel %vm277, %v218, 0
    %v891 = vsel %vm277, %v219, 0
    %v894 = vsel %vm277, %v220, 0
    %v897 = vsel %vm277, %v221, 0
    %v900 = vsel %vm277, %v222, 0
    %v903 = vsel %vm277, %v223, 0
    %v906 = vsel %vm277, %v224, 0
    %v909 = vsel %vm277, %v225, 0
    %v912 = vsel %vm277, %v226, 0
    %v915 = vsel %vm277, %v227, 0
    %v918 = vsel %vm277, %v228, 0
    %v921 = vsel %vm277, %v229, 0
    %v924 = vsel %vm277, %v230, 0
    %v927 = vsel %vm277, %v231, 0
    %v930 = vsel %vm277, %v232, 0
    %v933 = vsel %vm277, %v233, 0
    %v936 = vsel %vm277, %v234, 0
    %v939 = vsel %vm277, %v235, 0
    %v942 = vsel %vm277, %v236, 0
    %v945 = vsel %vm277, %v237, 0
    %v948 = vsel %vm277, %v238, 0
    %v951 = vsel %vm277, %v239, 0
    %v954 = vsel %vm277, %v240, 0
    %v957 = vsel %vm277, %v241, 0
    %v960 = vsel %vm277, %v242, 0
    %v963 = vsel %vm277, %v243, 0
    %v966 = vsel %vm277, %v244, 0
    %v969 = vsel %vm277, %v245, 0
    %v972 = vsel %vm277, %v246, 0
    %v975 = vsel %vm277, %v247, 0
    %v978 = vsel %vm277, %v248, 0
    %v981 = vsel %vm277, %v249, 0
    %v984 = vsel %vm277, %v250, 0
    %v987 = vsel %vm277, %v251, 0
    %v990 = vsel %vm277, %v252, 0
    %v993 = vsel %vm277, %v253, 0
    %v996 = vsel %vm277, %v254, 0
    %v999 = vsel %vm277, %v255, 0
    %v1002 = vsel %vm277, %v256, 0
    %v1005 = vsel %vm277, %v257, 0
    %v1008 = vsel %vm277, %v258, 0
    %v1011 = vsel %vm277, %v259, 0
    %v1014 = vsel %vm277, %v260, 0
    %v1017 = vsel %vm277, %v261, 0
    %v1020 = vsel %vm277, %v262, 0
    %v1023 = vsel %vm277, %v263, 0
    %v1026 = vsel %vm277, %v264, 0
    %v1029 = vsel %vm277, %v265, 0
    %v1032 = vsel %vm277, %v266, 0
    %v1035 = vsel %vm277, %v267, 0
    %v1038 = vsel %vm277, %v268, 0
    %v1041 = vsel %vm277, %v269, 0
    %v1044 = vsel %vm277, %v270, 0
    %vm1046 = vcmask 1042432
    %v1048 = vsel %vm1046, %v271, 0
    %1050 = vmatprep.subr.mxu0 0.0
    %1051 = vmatpush1.msra.mxu0 %v1048
    %1052 = vmatprep.subr.mxu0 0.0
    %1053 = vmatpush1.msra.mxu0 0.0
    %1054 = vmatprep.subr.mxu0 0.0
    %1055 = vmatpush1.msra.mxu0 0.0
    %1056 = vmatprep.subr.mxu0 0.0
    %1057 = vmatpush1.msra.mxu0 0.0
    %1058 = vmatprep.subr.mxu0 0.0
    %1059 = vmatpush1.msra.mxu0 0.0
    %1060 = vmatprep.subr.mxu0 0.0
    %1061 = vmatpush1.msra.mxu0 0.0
    %1062 = vmatprep.subr.mxu0 0.0
    %1063 = vmatpush1.msra.mxu0 0.0
    %1064 = vmatprep.subr.mxu0 0.0
    %1065 = vmatpush1.msra.mxu0 0.0
    %1066 = vmatprep.subr.mxu0 0.0
    %1067 = vmatpush1.msra.mxu0 0.0
    %1068 = vmatprep.subr.mxu0 0.0
    %1069 = vmatpush1.msra.mxu0 0.0
    %1070 = vmatprep.subr.mxu0 0.0
    %1071 = vmatpush1.msra.mxu0 0.0
    %1072 = vmatprep.subr.mxu0 0.0
    %1073 = vmatpush1.msra.mxu0 0.0
    %1074 = vmatprep.subr.mxu0 0.0
    %1075 = vmatpush1.msra.mxu0 0.0
    %1076 = vmatprep.subr.mxu0 0.0
    %1077 = vmatpush1.msra.mxu0 0.0
    %1078 = vmatprep.subr.mxu0 0.0
    %1079 = vmatpush1.msra.mxu0 0.0
    %1080 = vmatprep.subr.mxu0 0.0
    %1081 = vmatpush1.msra.mxu0 0.0
    %1082 = vmatprep.subr.mxu0 0.0
    %1083 = vmatpush1.msra.mxu0 0.0
    %1084 = vmatprep.subr.mxu0 0.0
    %1085 = vmatpush1.msra.mxu0 0.0
    %1086 = vmatprep.subr.mxu0 0.0
    %1087 = vmatpush1.msra.mxu0 0.0
    %1088 = vmatprep.subr.mxu0 0.0
    %1089 = vmatpush1.msra.mxu0 0.0
    %1090 = vmatprep.subr.mxu0 0.0
    %1091 = vmatpush1.msra.mxu0 0.0
    %1092 = vmatprep.subr.mxu0 0.0
    %1093 = vmatpush1.msra.mxu0 0.0
    %1094 = vmatprep.subr.mxu0 0.0
    %1095 = vmatpush1.msra.mxu0 0.0
    %1096 = vmatprep.subr.mxu0 0.0
    %1097 = vmatpush1.msra.mxu0 0.0
    %1098 = vmatprep.subr.mxu0 0.0
    %1099 = vmatpush1.msra.mxu0 0.0
    %1100 = vmatprep.subr.mxu0 0.0
    %1101 = vmatpush1.msra.mxu0 0.0
    %1102 = vmatprep.subr.mxu0 0.0
    %1103 = vmatpush1.msra.mxu0 0.0
    %1104 = vmatprep.subr.mxu0 0.0
    %1105 = vmatpush1.msra.mxu0 0.0
    %1106 = vmatprep.subr.mxu0 0.0
    %1107 = vmatpush1.msra.mxu0 0.0
    %1108 = vmatprep.subr.mxu0 0.0
    %1109 = vmatpush1.msra.mxu0 0.0
    %1110 = vmatprep.subr.mxu0 0.0
    %1111 = vmatpush1.msra.mxu0 0.0
    %1112 = vmatprep.subr.mxu0 0.0
    %1113 = vmatpush1.msra.mxu0 0.0
    %1114 = vmatprep.mubr.f32.mxu0 0.0
    %1115 = vmatmul.mubr.f32.gmra.mrb[0].mxu0 %v279
    %v1116 = vpop.f32.mrb[0].mxu0
    %v1117 = vadd.f32 %v276, %v1116
    %v1118 = vpop.f32.mrb[0].mxu0
    %1119 = vmatprep.mubr.f32.mxu0 0.0
    %1120 = vmatmul.mubr.f32.gmra.mrb[0].mxu0 %v282
    %v1121 = vpop.f32.mrb[0].mxu0
    %v1122 = vadd.f32 %v276, %v1121
    %v1123 = vpop.f32.mrb[0].mxu0
    %1124 = vmatprep.mubr.f32.mxu0 0.0
    %1125 = vmatmul.mubr.f32.gmra.mrb[0].mxu0 %v285
    %v1126 = vpop.f32.mrb[0].mxu0
    %v1127 = vadd.f32 %v276, %v1126
    %v1128 = vpop.f32.mrb[0].mxu0
    %1129 = vmatprep.mubr.f32.mxu0 0.0
    %1130 = vmatmul.mubr.f32.gmra.mrb[0].mxu0 %v288
    %v1131 = vpop.f32.mrb[0].mxu0
    %v1132 = vadd.f32 %v276, %v1131
    %v1133 = vpop.f32.mrb[0].mxu0
    %1134 = vmatprep.mubr.f32.mxu0 0.0
    %1135 = vmatmul.mubr.f32.gmra.mrb[0].mxu0 %v291
    %v1136 = vpop.f32.mrb[0].mxu0
    %v1137 = vadd.f32 %v276, %v1136
    %v1138 = vpop.f32.mrb[0].mxu0
    %1139 = vmatprep.mubr.f32.mxu0 0.0
    %1140 = vmatmul.mubr.f32.gmra.mrb[0].mxu0 %v294
    %v1141 = vpop.f32.mrb[0].mxu0
    %v1142 = vadd.f32 %v276, %v1141
    %v1143 = vpop.f32.mrb[0].mxu0
    %1144 = vmatprep.mubr.f32.mxu0 0.0
    %1145 = vmatmul.mubr.f32.gmra.mrb[0].mxu0 %v297
    %v1146 = vpop.f32.mrb[0].mxu0
    %v1147 = vadd.f32 %v276, %v1146
    %v1148 = vpop.f32.mrb[0].mxu0
    %1149 = vmatprep.mubr.f32.mxu0 0.0
    %1150 = vmatmul.mubr.f32.gmra.mrb[0].mxu0 %v300
    %v1151 = vpop.f32.mrb[0].mxu0
    %v1152 = vadd.f32 %v276, %v1151
    %v1153 = vpop.f32.mrb[0].mxu0
    %1154 = vmatprep.mubr.f32.mxu0 0.0
    %1155 = vmatmul.mubr.f32.gmra.mrb[0].mxu0 %v303
    %v1156 = vpop.f32.mrb[0].mxu0
    %v1157 = vadd.f32 %v276, %v1156
    %v1158 = vpop.f32.mrb[0].mxu0
    %1159 = vmatprep.mubr.f32.mxu0 0.0
    %1160 = vmatmul.mubr.f32.gmra.mrb[0].mxu0 %v306
    %v1161 = vpop.f32.mrb[0].mxu0
    %v1162 = vadd.f32 %v276, %v1161
    %v1163 = vpop.f32.mrb[0].mxu0
    %1164 = vmatprep.mubr.f32.mxu0 0.0
    %1165 = vmatmul.mubr.f32.gmra.mrb[0].mxu0 %v309
    %v1166 = vpop.f32.mrb[0].mxu0
    %v1167 = vadd.f32 %v276, %v1166
    %v1168 = vpop.f32.mrb[0].mxu0
    %1169 = vmatprep.mubr.f32.mxu0 0.0
    %1170 = vmatmul.mubr.f32.gmra.mrb[0].mxu0 %v312
    %v1171 = vpop.f32.mrb[0].mxu0
    %v1172 = vadd.f32 %v276, %v1171
    %v1173 = vpop.f32.mrb[0].mxu0
    %1174 = vmatprep.mubr.f32.mxu0 0.0
    %1175 = vmatmul.mubr.f32.gmra.mrb[0].mxu0 %v315
    %v1176 = vpop.f32.mrb[0].mxu0
    %v1177 = vadd.f32 %v276, %v1176
    %v1178 = vpop.f32.mrb[0].mxu0
    %1179 = vmatprep.mubr.f32.mxu0 0.0
    %1180 = vmatmul.mubr.f32.gmra.mrb[0].mxu0 %v318
    %v1181 = vpop.f32.mrb[0].mxu0
    %v1182 = vadd.f32 %v276, %v1181
    %v1183 = vpop.f32.mrb[0].mxu0
    %1184 = vmatprep.mubr.f32.mxu0 0.0
    %1185 = vmatmul.mubr.f32.gmra.mrb[0].mxu0 %v321
    %v1186 = vpop.f32.mrb[0].mxu0
    %v1187 = vadd.f32 %v276, %v1186
    %v1188 = vpop.f32.mrb[0].mxu0
    %1189 = vmatprep.mubr.f32.mxu0 0.0
    %1190 = vmatmul.mubr.f32.gmra.mrb[0].mxu0 %v324
    %v1191 = vpop.f32.mrb[0].mxu0
    %v1192 = vadd.f32 %v276, %v1191
    %v1193 = vpop.f32.mrb[0].mxu0
    %1194 = vmatprep.mubr.f32.mxu0 0.0
    %1195 = vmatmul.mubr.f32.gmra.mrb[0].mxu0 %v327
    %v1196 = vpop.f32.mrb[0].mxu0
    %v1197 = vadd.f32 %v276, %v1196
    %v1198 = vpop.f32.mrb[0].mxu0
    %1199 = vmatprep.mubr.f32.mxu0 0.0
    %1200 = vmatmul.mubr.f32.gmra.mrb[0].mxu0 %v330
    %v1201 = vpop.f32.mrb[0].mxu0
    %v1202 = vadd.f32 %v276, %v1201
    %v1203 = vpop.f32.mrb[0].mxu0
    %1204 = vmatprep.mubr.f32.mxu0 0.0
    %1205 = vmatmul.mubr.f32.gmra.mrb[0].mxu0 %v333
    %v1206 = vpop.f32.mrb[0].mxu0
    %v1207 = vadd.f32 %v276, %v1206
    %v1208 = vpop.f32.mrb[0].mxu0
    %1209 = vmatprep.mubr.f32.mxu0 0.0
    %1210 = vmatmul.mubr.f32.gmra.mrb[0].mxu0 %v336
    %v1211 = vpop.f32.mrb[0].mxu0
    %v1212 = vadd.f32 %v276, %v1211
    %v1213 = vpop.f32.mrb[0].mxu0
    %1214 = vmatprep.mubr.f32.mxu0 0.0
    %1215 = vmatmul.mubr.f32.gmra.mrb[0].mxu0 %v339
    %v1216 = vpop.f32.mrb[0].mxu0
    %v1217 = vadd.f32 %v276, %v1216
    %v1218 = vpop.f32.mrb[0].mxu0
    %1219 = vmatprep.mubr.f32.mxu0 0.0
    %1220 = vmatmul.mubr.f32.gmra.mrb[0].mxu0 %v342
    %v1221 = vpop.f32.mrb[0].mxu0
    %v1222 = vadd.f32 %v276, %v1221
    %v1223 = vpop.f32.mrb[0].mxu0
    %1224 = vmatprep.mubr.f32.mxu0 0.0
    %1225 = vmatmul.mubr.f32.gmra.mrb[0].mxu0 %v345
    %v1226 = vpop.f32.mrb[0].mxu0
    %v1227 = vadd.f32 %v276, %v1226
    %v1228 = vpop.f32.mrb[0].mxu0
    %1229 = vmatprep.mubr.f32.mxu0 0.0
    %1230 = vmatmul.mubr.f32.gmra.mrb[0].mxu0 %v348
    %v1231 = vpop.f32.mrb[0].mxu0
    %v1232 = vadd.f32 %v276, %v1231
    %v1233 = vpop.f32.mrb[0].mxu0
    %1234 = vmatprep.mubr.f32.mxu0 0.0
    %1235 = vmatmul.mubr.f32.gmra.mrb[0].mxu0 %v351
    %v1236 = vpop.f32.mrb[0].mxu0
    %v1237 = vadd.f32 %v276, %v1236
    %v1238 = vpop.f32.mrb[0].mxu0
    %1239 = vmatprep.mubr.f32.mxu0 0.0
    %1240 = vmatmul.mubr.f32.gmra.mrb[0].mxu0 %v354
    %v1241 = vpop.f32.mrb[0].mxu0
    %v1242 = vadd.f32 %v276, %v1241
    %v1243 = vpop.f32.mrb[0].mxu0
    %1244 = vmatprep.mubr.f32.mxu0 0.0
    %1245 = vmatmul.mubr.f32.gmra.mrb[0].mxu0 %v357
    %v1246 = vpop.f32.mrb[0].mxu0
    %v1247 = vadd.f32 %v276, %v1246
    %v1248 = vpop.f32.mrb[0].mxu0
    %1249 = vmatprep.mubr.f32.mxu0 0.0
    %1250 = vmatmul.mubr.f32.gmra.mrb[0].mxu0 %v360
    %v1251 = vpop.f32.mrb[0].mxu0
    %v1252 = vadd.f32 %v276, %v1251
    %v1253 = vpop.f32.mrb[0].mxu0
    %1254 = vmatprep.mubr.f32.mxu0 0.0
    %1255 = vmatmul.mubr.f32.gmra.mrb[0].mxu0 %v363
    %v1256 = vpop.f32.mrb[0].mxu0
    %v1257 = vadd.f32 %v276, %v1256
    %v1258 = vpop.f32.mrb[0].mxu0
    %1259 = vmatprep.mubr.f32.mxu0 0.0
    %1260 = vmatmul.mubr.f32.gmra.mrb[0].mxu0 %v366
    %v1261 = vpop.f32.mrb[0].mxu0
    %v1262 = vadd.f32 %v276, %v1261
    %v1263 = vpop.f32.mrb[0].mxu0
    %1264 = vmatprep.mubr.f32.mxu0 0.0
    %1265 = vmatmul.mubr.f32.gmra.mrb[0].mxu0 %v369
    %v1266 = vpop.f32.mrb[0].mxu0
    %v1267 = vadd.f32 %v276, %v1266
    %v1268 = vpop.f32.mrb[0].mxu0
    %1269 = vmatprep.mubr.f32.mxu0 0.0
    %1270 = vmatmul.mubr.f32.gmra.mrb[0].mxu0 %v372
    %v1271 = vpop.f32.mrb[0].mxu0
    %v1272 = vadd.f32 %v276, %v1271
    %v1273 = vpop.f32.mrb[0].mxu0
    %1274 = vmatprep.mubr.f32.mxu0 0.0
    %1275 = vmatmul.mubr.f32.gmra.mrb[0].mxu0 %v375
    %v1276 = vpop.f32.mrb[0].mxu0
    %v1277 = vadd.f32 %v276, %v1276
    %v1278 = vpop.f32.mrb[0].mxu0
    %1279 = vmatprep.mubr.f32.mxu0 0.0
    %1280 = vmatmul.mubr.f32.gmra.mrb[0].mxu0 %v378
    %v1281 = vpop.f32.mrb[0].mxu0
    %v1282 = vadd.f32 %v276, %v1281
    %v1283 = vpop.f32.mrb[0].mxu0
    %1284 = vmatprep.mubr.f32.mxu0 0.0
    %1285 = vmatmul.mubr.f32.gmra.mrb[0].mxu0 %v381
    %v1286 = vpop.f32.mrb[0].mxu0
    %v1287 = vadd.f32 %v276, %v1286
    %v1288 = vpop.f32.mrb[0].mxu0
    %1289 = vmatprep.mubr.f32.mxu0 0.0
    %1290 = vmatmul.mubr.f32.gmra.mrb[0].mxu0 %v384
    %v1291 = vpop.f32.mrb[0].mxu0
    %v1292 = vadd.f32 %v276, %v1291
    %v1293 = vpop.f32.mrb[0].mxu0
    %1294 = vmatprep.mubr.f32.mxu0 0.0
    %1295 = vmatmul.mubr.f32.gmra.mrb[0].mxu0 %v387
    %v1296 = vpop.f32.mrb[0].mxu0
    %v1297 = vadd.f32 %v276, %v1296
    %v1298 = vpop.f32.mrb[0].mxu0
    %1299 = vmatprep.mubr.f32.mxu0 0.0
    %1300 = vmatmul.mubr.f32.gmra.mrb[0].mxu0 %v390
    %v1301 = vpop.f32.mrb[0].mxu0
    %v1302 = vadd.f32 %v276, %v1301
    %v1303 = vpop.f32.mrb[0].mxu0
    %1304 = vmatprep.mubr.f32.mxu0 0.0
    %1305 = vmatmul.mubr.f32.gmra.mrb[0].mxu0 %v393
    %v1306 = vpop.f32.mrb[0].mxu0
    %v1307 = vadd.f32 %v276, %v1306
    %v1308 = vpop.f32.mrb[0].mxu0
    %1309 = vmatprep.mubr.f32.mxu0 0.0
    %1310 = vmatmul.mubr.f32.gmra.mrb[0].mxu0 %v396
    %v1311 = vpop.f32.mrb[0].mxu0
    %v1312 = vadd.f32 %v276, %v1311
    %v1313 = vpop.f32.mrb[0].mxu0
    %1314 = vmatprep.mubr.f32.mxu0 0.0
    %1315 = vmatmul.mubr.f32.gmra.mrb[0].mxu0 %v399
    %v1316 = vpop.f32.mrb[0].mxu0
    %v1317 = vadd.f32 %v276, %v1316
    %v1318 = vpop.f32.mrb[0].mxu0
    %1319 = vmatprep.mubr.f32.mxu0 0.0
    %1320 = vmatmul.mubr.f32.gmra.mrb[0].mxu0 %v402
    %v1321 = vpop.f32.mrb[0].mxu0
    %v1322 = vadd.f32 %v276, %v1321
    %v1323 = vpop.f32.mrb[0].mxu0
    %1324 = vmatprep.mubr.f32.mxu0 0.0
    %1325 = vmatmul.mubr.f32.gmra.mrb[0].mxu0 %v405
    %v1326 = vpop.f32.mrb[0].mxu0
    %v1327 = vadd.f32 %v276, %v1326
    %v1328 = vpop.f32.mrb[0].mxu0
    %1329 = vmatprep.mubr.f32.mxu0 0.0
    %1330 = vmatmul.mubr.f32.gmra.mrb[0].mxu0 %v408
    %v1331 = vpop.f32.mrb[0].mxu0
    %v1332 = vadd.f32 %v276, %v1331
    %v1333 = vpop.f32.mrb[0].mxu0
    %1334 = vmatprep.mubr.f32.mxu0 0.0
    %1335 = vmatmul.mubr.f32.gmra.mrb[0].mxu0 %v411
    %v1336 = vpop.f32.mrb[0].mxu0
    %v1337 = vadd.f32 %v276, %v1336
    %v1338 = vpop.f32.mrb[0].mxu0
    %1339 = vmatprep.mubr.f32.mxu0 0.0
    %1340 = vmatmul.mubr.f32.gmra.mrb[0].mxu0 %v414
    %v1341 = vpop.f32.mrb[0].mxu0
    %v1342 = vadd.f32 %v276, %v1341
    %v1343 = vpop.f32.mrb[0].mxu0
    %1344 = vmatprep.mubr.f32.mxu0 0.0
    %1345 = vmatmul.mubr.f32.gmra.mrb[0].mxu0 %v417
    %v1346 = vpop.f32.mrb[0].mxu0
    %v1347 = vadd.f32 %v276, %v1346
    %v1348 = vpop.f32.mrb[0].mxu0
    %1349 = vmatprep.mubr.f32.mxu0 0.0
    %1350 = vmatmul.mubr.f32.gmra.mrb[0].mxu0 %v420
    %v1351 = vpop.f32.mrb[0].mxu0
    %v1352 = vadd.f32 %v276, %v1351
    %v1353 = vpop.f32.mrb[0].mxu0
    %1354 = vmatprep.mubr.f32.mxu0 0.0
    %1355 = vmatmul.mubr.f32.gmra.mrb[0].mxu0 %v423
    %v1356 = vpop.f32.mrb[0].mxu0
    %v1357 = vadd.f32 %v276, %v1356
    %v1358 = vpop.f32.mrb[0].mxu0
    %1359 = vmatprep.mubr.f32.mxu0 0.0
    %1360 = vmatmul.mubr.f32.gmra.mrb[0].mxu0 %v426
    %v1361 = vpop.f32.mrb[0].mxu0
    %v1362 = vadd.f32 %v276, %v1361
    %v1363 = vpop.f32.mrb[0].mxu0
    %1364 = vmatprep.mubr.f32.mxu0 0.0
    %1365 = vmatmul.mubr.f32.gmra.mrb[0].mxu0 %v429
    %v1366 = vpop.f32.mrb[0].mxu0
    %v1367 = vadd.f32 %v276, %v1366
    %v1368 = vpop.f32.mrb[0].mxu0
    %1369 = vmatprep.mubr.f32.mxu0 0.0
    %1370 = vmatmul.mubr.f32.gmra.mrb[0].mxu0 %v432
    %v1371 = vpop.f32.mrb[0].mxu0
    %v1372 = vadd.f32 %v276, %v1371
    %v1373 = vpop.f32.mrb[0].mxu0
    %1374 = vmatprep.mubr.f32.mxu0 0.0
    %1375 = vmatmul.mubr.f32.gmra.mrb[0].mxu0 %v435
    %v1376 = vpop.f32.mrb[0].mxu0
    %v1377 = vadd.f32 %v276, %v1376
    %v1378 = vpop.f32.mrb[0].mxu0
    %1379 = vmatprep.mubr.f32.mxu0 0.0
    %1380 = vmatmul.mubr.f32.gmra.mrb[0].mxu0 %v438
    %v1381 = vpop.f32.mrb[0].mxu0
    %v1382 = vadd.f32 %v276, %v1381
    %v1383 = vpop.f32.mrb[0].mxu0
    %1384 = vmatprep.mubr.f32.mxu0 0.0
    %1385 = vmatmul.mubr.f32.gmra.mrb[0].mxu0 %v441
    %v1386 = vpop.f32.mrb[0].mxu0
    %v1387 = vadd.f32 %v276, %v1386
    %v1388 = vpop.f32.mrb[0].mxu0
    %1389 = vmatprep.mubr.f32.mxu0 0.0
    %1390 = vmatmul.mubr.f32.gmra.mrb[0].mxu0 %v444
    %v1391 = vpop.f32.mrb[0].mxu0
    %v1392 = vadd.f32 %v276, %v1391
    %v1393 = vpop.f32.mrb[0].mxu0
    %1394 = vmatprep.mubr.f32.mxu0 0.0
    %1395 = vmatmul.mubr.f32.gmra.mrb[0].mxu0 %v447
    %v1396 = vpop.f32.mrb[0].mxu0
    %v1397 = vadd.f32 %v276, %v1396
    %v1398 = vpop.f32.mrb[0].mxu0
    %1399 = vmatprep.mubr.f32.mxu0 0.0
    %1400 = vmatmul.mubr.f32.gmra.mrb[0].mxu0 %v450
    %v1401 = vpop.f32.mrb[0].mxu0
    %v1402 = vadd.f32 %v276, %v1401
    %v1403 = vpop.f32.mrb[0].mxu0
    %1404 = vmatprep.mubr.f32.mxu0 0.0
    %1405 = vmatmul.mubr.f32.gmra.mrb[0].mxu0 %v453
    %v1406 = vpop.f32.mrb[0].mxu0
    %v1407 = vadd.f32 %v276, %v1406
    %v1408 = vpop.f32.mrb[0].mxu0
    %1409 = vmatprep.mubr.f32.mxu0 0.0
    %1410 = vmatmul.mubr.f32.gmra.mrb[0].mxu0 %v456
    %v1411 = vpop.f32.mrb[0].mxu0
    %v1412 = vadd.f32 %v276, %v1411
    %v1413 = vpop.f32.mrb[0].mxu0
    %1414 = vmatprep.mubr.f32.mxu0 0.0
    %1415 = vmatmul.mubr.f32.gmra.mrb[0].mxu0 %v459
    %v1416 = vpop.f32.mrb[0].mxu0
    %v1417 = vadd.f32 %v276, %v1416
    %v1418 = vpop.f32.mrb[0].mxu0
    %1419 = vmatprep.mubr.f32.mxu0 0.0
    %1420 = vmatmul.mubr.f32.gmra.mrb[0].mxu0 %v462
    %v1421 = vpop.f32.mrb[0].mxu0
    %v1422 = vadd.f32 %v276, %v1421
    %v1423 = vpop.f32.mrb[0].mxu0
    %1424 = vmatprep.mubr.f32.mxu0 0.0
    %1425 = vmatmul.mubr.f32.gmra.mrb[0].mxu0 %v465
    %v1426 = vpop.f32.mrb[0].mxu0
    %v1427 = vadd.f32 %v276, %v1426
    %v1428 = vpop.f32.mrb[0].mxu0
    %1429 = vmatprep.mubr.f32.mxu0 0.0
    %1430 = vmatmul.mubr.f32.gmra.mrb[0].mxu0 %v468
    %v1431 = vpop.f32.mrb[0].mxu0
    %v1432 = vadd.f32 %v276, %v1431
    %v1433 = vpop.f32.mrb[0].mxu0
    %1434 = vmatprep.mubr.f32.mxu0 0.0
    %1435 = vmatmul.mubr.f32.gmra.mrb[0].mxu0 %v471
    %v1436 = vpop.f32.mrb[0].mxu0
    %v1437 = vadd.f32 %v276, %v1436
    %v1438 = vpop.f32.mrb[0].mxu0
    %1439 = vmatprep.mubr.f32.mxu0 0.0
    %1440 = vmatmul.mubr.f32.gmra.mrb[0].mxu0 %v474
    %v1441 = vpop.f32.mrb[0].mxu0
    %v1442 = vadd.f32 %v276, %v1441
    %v1443 = vpop.f32.mrb[0].mxu0
    %1444 = vmatprep.mubr.f32.mxu0 0.0
    %1445 = vmatmul.mubr.f32.gmra.mrb[0].mxu0 %v477
    %v1446 = vpop.f32.mrb[0].mxu0
    %v1447 = vadd.f32 %v276, %v1446
    %v1448 = vpop.f32.mrb[0].mxu0
    %1449 = vmatprep.mubr.f32.mxu0 0.0
    %1450 = vmatmul.mubr.f32.gmra.mrb[0].mxu0 %v480
    %v1451 = vpop.f32.mrb[0].mxu0
    %v1452 = vadd.f32 %v276, %v1451
    %v1453 = vpop.f32.mrb[0].mxu0
    %1454 = vmatprep.mubr.f32.mxu0 0.0
    %1455 = vmatmul.mubr.f32.gmra.mrb[0].mxu0 %v483
    %v1456 = vpop.f32.mrb[0].mxu0
    %v1457 = vadd.f32 %v276, %v1456
    %v1458 = vpop.f32.mrb[0].mxu0
    %1459 = vmatprep.mubr.f32.mxu0 0.0
    %1460 = vmatmul.mubr.f32.gmra.mrb[0].mxu0 %v486
    %v1461 = vpop.f32.mrb[0].mxu0
    %v1462 = vadd.f32 %v276, %v1461
    %v1463 = vpop.f32.mrb[0].mxu0
    %1464 = vmatprep.mubr.f32.mxu0 0.0
    %1465 = vmatmul.mubr.f32.gmra.mrb[0].mxu0 %v489
    %v1466 = vpop.f32.mrb[0].mxu0
    %v1467 = vadd.f32 %v276, %v1466
    %v1468 = vpop.f32.mrb[0].mxu0
    %1469 = vmatprep.mubr.f32.mxu0 0.0
    %1470 = vmatmul.mubr.f32.gmra.mrb[0].mxu0 %v492
    %v1471 = vpop.f32.mrb[0].mxu0
    %v1472 = vadd.f32 %v276, %v1471
    %v1473 = vpop.f32.mrb[0].mxu0
    %1474 = vmatprep.mubr.f32.mxu0 0.0
    %1475 = vmatmul.mubr.f32.gmra.mrb[0].mxu0 %v495
    %v1476 = vpop.f32.mrb[0].mxu0
    %v1477 = vadd.f32 %v276, %v1476
    %v1478 = vpop.f32.mrb[0].mxu0
    %1479 = vmatprep.mubr.f32.mxu0 0.0
    %1480 = vmatmul.mubr.f32.gmra.mrb[0].mxu0 %v498
    %v1481 = vpop.f32.mrb[0].mxu0
    %v1482 = vadd.f32 %v276, %v1481
    %v1483 = vpop.f32.mrb[0].mxu0
    %1484 = vmatprep.mubr.f32.mxu0 0.0
    %1485 = vmatmul.mubr.f32.gmra.mrb[0].mxu0 %v501
    %v1486 = vpop.f32.mrb[0].mxu0
    %v1487 = vadd.f32 %v276, %v1486
    %v1488 = vpop.f32.mrb[0].mxu0
    %1489 = vmatprep.mubr.f32.mxu0 0.0
    %1490 = vmatmul.mubr.f32.gmra.mrb[0].mxu0 %v504
    %v1491 = vpop.f32.mrb[0].mxu0
    %v1492 = vadd.f32 %v276, %v1491
    %v1493 = vpop.f32.mrb[0].mxu0
    %1494 = vmatprep.mubr.f32.mxu0 0.0
    %1495 = vmatmul.mubr.f32.gmra.mrb[0].mxu0 %v507
    %v1496 = vpop.f32.mrb[0].mxu0
    %v1497 = vadd.f32 %v276, %v1496
    %v1498 = vpop.f32.mrb[0].mxu0
    %1499 = vmatprep.mubr.f32.mxu0 0.0
    %1500 = vmatmul.mubr.f32.gmra.mrb[0].mxu0 %v510
    %v1501 = vpop.f32.mrb[0].mxu0
    %v1502 = vadd.f32 %v276, %v1501
    %v1503 = vpop.f32.mrb[0].mxu0
    %1504 = vmatprep.mubr.f32.mxu0 0.0
    %1505 = vmatmul.mubr.f32.gmra.mrb[0].mxu0 %v513
    %v1506 = vpop.f32.mrb[0].mxu0
    %v1507 = vadd.f32 %v276, %v1506
    %v1508 = vpop.f32.mrb[0].mxu0
    %1509 = vmatprep.mubr.f32.mxu0 0.0
    %1510 = vmatmul.mubr.f32.gmra.mrb[0].mxu0 %v516
    %v1511 = vpop.f32.mrb[0].mxu0
    %v1512 = vadd.f32 %v276, %v1511
    %v1513 = vpop.f32.mrb[0].mxu0
    %1514 = vmatprep.mubr.f32.mxu0 0.0
    %1515 = vmatmul.mubr.f32.gmra.mrb[0].mxu0 %v519
    %v1516 = vpop.f32.mrb[0].mxu0
    %v1517 = vadd.f32 %v276, %v1516
    %v1518 = vpop.f32.mrb[0].mxu0
    %1519 = vmatprep.mubr.f32.mxu0 0.0
    %1520 = vmatmul.mubr.f32.gmra.mrb[0].mxu0 %v522
    %v1521 = vpop.f32.mrb[0].mxu0
    %v1522 = vadd.f32 %v276, %v1521
    %v1523 = vpop.f32.mrb[0].mxu0
    %1524 = vmatprep.mubr.f32.mxu0 0.0
    %1525 = vmatmul.mubr.f32.gmra.mrb[0].mxu0 %v525
    %v1526 = vpop.f32.mrb[0].mxu0
    %v1527 = vadd.f32 %v276, %v1526
    %v1528 = vpop.f32.mrb[0].mxu0
    %1529 = vmatprep.mubr.f32.mxu0 0.0
    %1530 = vmatmul.mubr.f32.gmra.mrb[0].mxu0 %v528
    %v1531 = vpop.f32.mrb[0].mxu0
    %v1532 = vadd.f32 %v276, %v1531
    %v1533 = vpop.f32.mrb[0].mxu0
    %1534 = vmatprep.mubr.f32.mxu0 0.0
    %1535 = vmatmul.mubr.f32.gmra.mrb[0].mxu0 %v531
    %v1536 = vpop.f32.mrb[0].mxu0
    %v1537 = vadd.f32 %v276, %v1536
    %v1538 = vpop.f32.mrb[0].mxu0
    %1539 = vmatprep.mubr.f32.mxu0 0.0
    %1540 = vmatmul.mubr.f32.gmra.mrb[0].mxu0 %v534
    %v1541 = vpop.f32.mrb[0].mxu0
    %v1542 = vadd.f32 %v276, %v1541
    %v1543 = vpop.f32.mrb[0].mxu0
    %1544 = vmatprep.mubr.f32.mxu0 0.0
    %1545 = vmatmul.mubr.f32.gmra.mrb[0].mxu0 %v537
    %v1546 = vpop.f32.mrb[0].mxu0
    %v1547 = vadd.f32 %v276, %v1546
    %v1548 = vpop.f32.mrb[0].mxu0
    %1549 = vmatprep.mubr.f32.mxu0 0.0
    %1550 = vmatmul.mubr.f32.gmra.mrb[0].mxu0 %v540
    %v1551 = vpop.f32.mrb[0].mxu0
    %v1552 = vadd.f32 %v276, %v1551
    %v1553 = vpop.f32.mrb[0].mxu0
    %1554 = vmatprep.mubr.f32.mxu0 0.0
    %1555 = vmatmul.mubr.f32.gmra.mrb[0].mxu0 %v543
    %v1556 = vpop.f32.mrb[0].mxu0
    %v1557 = vadd.f32 %v276, %v1556
    %v1558 = vpop.f32.mrb[0].mxu0
    %1559 = vmatprep.mubr.f32.mxu0 0.0
    %1560 = vmatmul.mubr.f32.gmra.mrb[0].mxu0 %v546
    %v1561 = vpop.f32.mrb[0].mxu0
    %v1562 = vadd.f32 %v276, %v1561
    %v1563 = vpop.f32.mrb[0].mxu0
    %1564 = vmatprep.mubr.f32.mxu0 0.0
    %1565 = vmatmul.mubr.f32.gmra.mrb[0].mxu0 %v549
    %v1566 = vpop.f32.mrb[0].mxu0
    %v1567 = vadd.f32 %v276, %v1566
    %v1568 = vpop.f32.mrb[0].mxu0
    %1569 = vmatprep.mubr.f32.mxu0 0.0
    %1570 = vmatmul.mubr.f32.gmra.mrb[0].mxu0 %v552
    %v1571 = vpop.f32.mrb[0].mxu0
    %v1572 = vadd.f32 %v276, %v1571
    %v1573 = vpop.f32.mrb[0].mxu0
    %1574 = vmatprep.mubr.f32.mxu0 0.0
    %1575 = vmatmul.mubr.f32.gmra.mrb[0].mxu0 %v555
    %v1576 = vpop.f32.mrb[0].mxu0
    %v1577 = vadd.f32 %v276, %v1576
    %v1578 = vpop.f32.mrb[0].mxu0
    %1579 = vmatprep.mubr.f32.mxu0 0.0
    %1580 = vmatmul.mubr.f32.gmra.mrb[0].mxu0 %v558
    %v1581 = vpop.f32.mrb[0].mxu0
    %v1582 = vadd.f32 %v276, %v1581
    %v1583 = vpop.f32.mrb[0].mxu0
    %1584 = vmatprep.mubr.f32.mxu0 0.0
    %1585 = vmatmul.mubr.f32.gmra.mrb[0].mxu0 %v561
    %v1586 = vpop.f32.mrb[0].mxu0
    %v1587 = vadd.f32 %v276, %v1586
    %v1588 = vpop.f32.mrb[0].mxu0
    %1589 = vmatprep.mubr.f32.mxu0 0.0
    %1590 = vmatmul.mubr.f32.gmra.mrb[0].mxu0 %v564
    %v1591 = vpop.f32.mrb[0].mxu0
    %v1592 = vadd.f32 %v276, %v1591
    %v1593 = vpop.f32.mrb[0].mxu0
    %1594 = vmatprep.mubr.f32.mxu0 0.0
    %1595 = vmatmul.mubr.f32.gmra.mrb[0].mxu0 %v567
    %v1596 = vpop.f32.mrb[0].mxu0
    %v1597 = vadd.f32 %v276, %v1596
    %v1598 = vpop.f32.mrb[0].mxu0
    %1599 = vmatprep.mubr.f32.mxu0 0.0
    %1600 = vmatmul.mubr.f32.gmra.mrb[0].mxu0 %v570
    %v1601 = vpop.f32.mrb[0].mxu0
    %v1602 = vadd.f32 %v276, %v1601
    %v1603 = vpop.f32.mrb[0].mxu0
    %1604 = vmatprep.mubr.f32.mxu0 0.0
    %1605 = vmatmul.mubr.f32.gmra.mrb[0].mxu0 %v573
    %v1606 = vpop.f32.mrb[0].mxu0
    %v1607 = vadd.f32 %v276, %v1606
    %v1608 = vpop.f32.mrb[0].mxu0
    %1609 = vmatprep.mubr.f32.mxu0 0.0
    %1610 = vmatmul.mubr.f32.gmra.mrb[0].mxu0 %v576
    %v1611 = vpop.f32.mrb[0].mxu0
    %v1612 = vadd.f32 %v276, %v1611
    %v1613 = vpop.f32.mrb[0].mxu0
    %1614 = vmatprep.mubr.f32.mxu0 0.0
    %1615 = vmatmul.mubr.f32.gmra.mrb[0].mxu0 %v579
    %v1616 = vpop.f32.mrb[0].mxu0
    %v1617 = vadd.f32 %v276, %v1616
    %v1618 = vpop.f32.mrb[0].mxu0
    %1619 = vmatprep.mubr.f32.mxu0 0.0
    %1620 = vmatmul.mubr.f32.gmra.mrb[0].mxu0 %v582
    %v1621 = vpop.f32.mrb[0].mxu0
    %v1622 = vadd.f32 %v276, %v1621
    %v1623 = vpop.f32.mrb[0].mxu0
    %1624 = vmatprep.mubr.f32.mxu0 0.0
    %1625 = vmatmul.mubr.f32.gmra.mrb[0].mxu0 %v585
    %v1626 = vpop.f32.mrb[0].mxu0
    %v1627 = vadd.f32 %v276, %v1626
    %v1628 = vpop.f32.mrb[0].mxu0
    %1629 = vmatprep.mubr.f32.mxu0 0.0
    %1630 = vmatmul.mubr.f32.gmra.mrb[0].mxu0 %v588
    %v1631 = vpop.f32.mrb[0].mxu0
    %v1632 = vadd.f32 %v276, %v1631
    %v1633 = vpop.f32.mrb[0].mxu0
    %1634 = vmatprep.mubr.f32.mxu0 0.0
    %1635 = vmatmul.mubr.f32.gmra.mrb[0].mxu0 %v591
    %v1636 = vpop.f32.mrb[0].mxu0
    %v1637 = vadd.f32 %v276, %v1636
    %v1638 = vpop.f32.mrb[0].mxu0
    %1639 = vmatprep.mubr.f32.mxu0 0.0
    %1640 = vmatmul.mubr.f32.gmra.mrb[0].mxu0 %v594
    %v1641 = vpop.f32.mrb[0].mxu0
    %v1642 = vadd.f32 %v276, %v1641
    %v1643 = vpop.f32.mrb[0].mxu0
    %1644 = vmatprep.mubr.f32.mxu0 0.0
    %1645 = vmatmul.mubr.f32.gmra.mrb[0].mxu0 %v597
    %v1646 = vpop.f32.mrb[0].mxu0
    %v1647 = vadd.f32 %v276, %v1646
    %v1648 = vpop.f32.mrb[0].mxu0
    %1649 = vmatprep.mubr.f32.mxu0 0.0
    %1650 = vmatmul.mubr.f32.gmra.mrb[0].mxu0 %v600
    %v1651 = vpop.f32.mrb[0].mxu0
    %v1652 = vadd.f32 %v276, %v1651
    %v1653 = vpop.f32.mrb[0].mxu0
    %1654 = vmatprep.mubr.f32.mxu0 0.0
    %1655 = vmatmul.mubr.f32.gmra.mrb[0].mxu0 %v603
    %v1656 = vpop.f32.mrb[0].mxu0
    %v1657 = vadd.f32 %v276, %v1656
    %v1658 = vpop.f32.mrb[0].mxu0
    %1659 = vmatprep.mubr.f32.mxu0 0.0
    %1660 = vmatmul.mubr.f32.gmra.mrb[0].mxu0 %v606
    %v1661 = vpop.f32.mrb[0].mxu0
    %v1662 = vadd.f32 %v276, %v1661
    %v1663 = vpop.f32.mrb[0].mxu0
    %1664 = vmatprep.mubr.f32.mxu0 0.0
    %1665 = vmatmul.mubr.f32.gmra.mrb[0].mxu0 %v609
    %v1666 = vpop.f32.mrb[0].mxu0
    %v1667 = vadd.f32 %v276, %v1666
    %v1668 = vpop.f32.mrb[0].mxu0
    %1669 = vmatprep.mubr.f32.mxu0 0.0
    %1670 = vmatmul.mubr.f32.gmra.mrb[0].mxu0 %v612
    %v1671 = vpop.f32.mrb[0].mxu0
    %v1672 = vadd.f32 %v276, %v1671
    %v1673 = vpop.f32.mrb[0].mxu0
    %1674 = vmatprep.mubr.f32.mxu0 0.0
    %1675 = vmatmul.mubr.f32.gmra.mrb[0].mxu0 %v615
    %v1676 = vpop.f32.mrb[0].mxu0
    %v1677 = vadd.f32 %v276, %v1676
    %v1678 = vpop.f32.mrb[0].mxu0
    %1679 = vmatprep.mubr.f32.mxu0 0.0
    %1680 = vmatmul.mubr.f32.gmra.mrb[0].mxu0 %v618
    %v1681 = vpop.f32.mrb[0].mxu0
    %v1682 = vadd.f32 %v276, %v1681
    %v1683 = vpop.f32.mrb[0].mxu0
    %1684 = vmatprep.mubr.f32.mxu0 0.0
    %1685 = vmatmul.mubr.f32.gmra.mrb[0].mxu0 %v621
    %v1686 = vpop.f32.mrb[0].mxu0
    %v1687 = vadd.f32 %v276, %v1686
    %v1688 = vpop.f32.mrb[0].mxu0
    %1689 = vmatprep.mubr.f32.mxu0 0.0
    %1690 = vmatmul.mubr.f32.gmra.mrb[0].mxu0 %v624
    %v1691 = vpop.f32.mrb[0].mxu0
    %v1692 = vadd.f32 %v276, %v1691
    %v1693 = vpop.f32.mrb[0].mxu0
    %1694 = vmatprep.mubr.f32.mxu0 0.0
    %1695 = vmatmul.mubr.f32.gmra.mrb[0].mxu0 %v627
    %v1696 = vpop.f32.mrb[0].mxu0
    %v1697 = vadd.f32 %v276, %v1696
    %v1698 = vpop.f32.mrb[0].mxu0
    %1699 = vmatprep.mubr.f32.mxu0 0.0
    %1700 = vmatmul.mubr.f32.gmra.mrb[0].mxu0 %v630
    %v1701 = vpop.f32.mrb[0].mxu0
    %v1702 = vadd.f32 %v276, %v1701
    %v1703 = vpop.f32.mrb[0].mxu0
    %1704 = vmatprep.mubr.f32.mxu0 0.0
    %1705 = vmatmul.mubr.f32.gmra.mrb[0].mxu0 %v633
    %v1706 = vpop.f32.mrb[0].mxu0
    %v1707 = vadd.f32 %v276, %v1706
    %v1708 = vpop.f32.mrb[0].mxu0
    %1709 = vmatprep.mubr.f32.mxu0 0.0
    %1710 = vmatmul.mubr.f32.gmra.mrb[0].mxu0 %v636
    %v1711 = vpop.f32.mrb[0].mxu0
    %v1712 = vadd.f32 %v276, %v1711
    %v1713 = vpop.f32.mrb[0].mxu0
    %1714 = vmatprep.mubr.f32.mxu0 0.0
    %1715 = vmatmul.mubr.f32.gmra.mrb[0].mxu0 %v639
    %v1716 = vpop.f32.mrb[0].mxu0
    %v1717 = vadd.f32 %v276, %v1716
    %v1718 = vpop.f32.mrb[0].mxu0
    %1719 = vmatprep.mubr.f32.mxu0 0.0
    %1720 = vmatmul.mubr.f32.gmra.mrb[0].mxu0 %v642
    %v1721 = vpop.f32.mrb[0].mxu0
    %v1722 = vadd.f32 %v276, %v1721
    %v1723 = vpop.f32.mrb[0].mxu0
    %1724 = vmatprep.mubr.f32.mxu0 0.0
    %1725 = vmatmul.mubr.f32.gmra.mrb[0].mxu0 %v645
    %v1726 = vpop.f32.mrb[0].mxu0
    %v1727 = vadd.f32 %v276, %v1726
    %v1728 = vpop.f32.mrb[0].mxu0
    %1729 = vmatprep.mubr.f32.mxu0 0.0
    %1730 = vmatmul.mubr.f32.gmra.mrb[0].mxu0 %v648
    %v1731 = vpop.f32.mrb[0].mxu0
    %v1732 = vadd.f32 %v276, %v1731
    %v1733 = vpop.f32.mrb[0].mxu0
    %1734 = vmatprep.mubr.f32.mxu0 0.0
    %1735 = vmatmul.mubr.f32.gmra.mrb[0].mxu0 %v651
    %v1736 = vpop.f32.mrb[0].mxu0
    %v1737 = vadd.f32 %v276, %v1736
    %v1738 = vpop.f32.mrb[0].mxu0
    %1739 = vmatprep.mubr.f32.mxu0 0.0
    %1740 = vmatmul.mubr.f32.gmra.mrb[0].mxu0 %v654
    %v1741 = vpop.f32.mrb[0].mxu0
    %v1742 = vadd.f32 %v276, %v1741
    %v1743 = vpop.f32.mrb[0].mxu0
    %1744 = vmatprep.mubr.f32.mxu0 0.0
    %1745 = vmatmul.mubr.f32.gmra.mrb[0].mxu0 %v657
    %v1746 = vpop.f32.mrb[0].mxu0
    %v1747 = vadd.f32 %v276, %v1746
    %v1748 = vpop.f32.mrb[0].mxu0
    %1749 = vmatprep.mubr.f32.mxu0 0.0
    %1750 = vmatmul.mubr.f32.gmra.mrb[0].mxu0 %v660
    %v1751 = vpop.f32.mrb[0].mxu0
    %v1752 = vadd.f32 %v276, %v1751
    %v1753 = vpop.f32.mrb[0].mxu0
    %1754 = vmatprep.mubr.f32.mxu0 0.0
    %1755 = vmatmul.mubr.f32.gmra.mrb[0].mxu0 %v663
    %v1756 = vpop.f32.mrb[0].mxu0
    %v1757 = vadd.f32 %v276, %v1756
    %v1758 = vpop.f32.mrb[0].mxu0
    %1759 = vmatprep.mubr.f32.mxu0 0.0
    %1760 = vmatmul.mubr.f32.gmra.mrb[0].mxu0 %v666
    %v1761 = vpop.f32.mrb[0].mxu0
    %v1762 = vadd.f32 %v276, %v1761
    %v1763 = vpop.f32.mrb[0].mxu0
    %1764 = vmatprep.mubr.f32.mxu0 0.0
    %1765 = vmatmul.mubr.f32.gmra.mrb[0].mxu0 %v669
    %v1766 = vpop.f32.mrb[0].mxu0
    %v1767 = vadd.f32 %v276, %v1766
    %v1768 = vpop.f32.mrb[0].mxu0
    %1769 = vmatprep.mubr.f32.mxu0 0.0
    %1770 = vmatmul.mubr.f32.gmra.mrb[0].mxu0 %v672
    %v1771 = vpop.f32.mrb[0].mxu0
    %v1772 = vadd.f32 %v276, %v1771
    %v1773 = vpop.f32.mrb[0].mxu0
    %1774 = vmatprep.mubr.f32.mxu0 0.0
    %1775 = vmatmul.mubr.f32.gmra.mrb[0].mxu0 %v675
    %v1776 = vpop.f32.mrb[0].mxu0
    %v1777 = vadd.f32 %v276, %v1776
    %v1778 = vpop.f32.mrb[0].mxu0
    %1779 = vmatprep.mubr.f32.mxu0 0.0
    %1780 = vmatmul.mubr.f32.gmra.mrb[0].mxu0 %v678
    %v1781 = vpop.f32.mrb[0].mxu0
    %v1782 = vadd.f32 %v276, %v1781
    %v1783 = vpop.f32.mrb[0].mxu0
    %1784 = vmatprep.mubr.f32.mxu0 0.0
    %1785 = vmatmul.mubr.f32.gmra.mrb[0].mxu0 %v681
    %v1786 = vpop.f32.mrb[0].mxu0
    %v1787 = vadd.f32 %v276, %v1786
    %v1788 = vpop.f32.mrb[0].mxu0
    %1789 = vmatprep.mubr.f32.mxu0 0.0
    %1790 = vmatmul.mubr.f32.gmra.mrb[0].mxu0 %v684
    %v1791 = vpop.f32.mrb[0].mxu0
    %v1792 = vadd.f32 %v276, %v1791
    %v1793 = vpop.f32.mrb[0].mxu0
    %1794 = vmatprep.mubr.f32.mxu0 0.0
    %1795 = vmatmul.mubr.f32.gmra.mrb[0].mxu0 %v687
    %v1796 = vpop.f32.mrb[0].mxu0
    %v1797 = vadd.f32 %v276, %v1796
    %v1798 = vpop.f32.mrb[0].mxu0
    %1799 = vmatprep.mubr.f32.mxu0 0.0
    %1800 = vmatmul.mubr.f32.gmra.mrb[0].mxu0 %v690
    %v1801 = vpop.f32.mrb[0].mxu0
    %v1802 = vadd.f32 %v276, %v1801
    %v1803 = vpop.f32.mrb[0].mxu0
    %1804 = vmatprep.mubr.f32.mxu0 0.0
    %1805 = vmatmul.mubr.f32.gmra.mrb[0].mxu0 %v693
    %v1806 = vpop.f32.mrb[0].mxu0
    %v1807 = vadd.f32 %v276, %v1806
    %v1808 = vpop.f32.mrb[0].mxu0
    %1809 = vmatprep.mubr.f32.mxu0 0.0
    %1810 = vmatmul.mubr.f32.gmra.mrb[0].mxu0 %v696
    %v1811 = vpop.f32.mrb[0].mxu0
    %v1812 = vadd.f32 %v276, %v1811
    %v1813 = vpop.f32.mrb[0].mxu0
    %1814 = vmatprep.mubr.f32.mxu0 0.0
    %1815 = vmatmul.mubr.f32.gmra.mrb[0].mxu0 %v699
    %v1816 = vpop.f32.mrb[0].mxu0
    %v1817 = vadd.f32 %v276, %v1816
    %v1818 = vpop.f32.mrb[0].mxu0
    %1819 = vmatprep.mubr.f32.mxu0 0.0
    %1820 = vmatmul.mubr.f32.gmra.mrb[0].mxu0 %v702
    %v1821 = vpop.f32.mrb[0].mxu0
    %v1822 = vadd.f32 %v276, %v1821
    %v1823 = vpop.f32.mrb[0].mxu0
    %1824 = vmatprep.mubr.f32.mxu0 0.0
    %1825 = vmatmul.mubr.f32.gmra.mrb[0].mxu0 %v705
    %v1826 = vpop.f32.mrb[0].mxu0
    %v1827 = vadd.f32 %v276, %v1826
    %v1828 = vpop.f32.mrb[0].mxu0
    %1829 = vmatprep.mubr.f32.mxu0 0.0
    %1830 = vmatmul.mubr.f32.gmra.mrb[0].mxu0 %v708
    %v1831 = vpop.f32.mrb[0].mxu0
    %v1832 = vadd.f32 %v276, %v1831
    %v1833 = vpop.f32.mrb[0].mxu0
    %1834 = vmatprep.mubr.f32.mxu0 0.0
    %1835 = vmatmul.mubr.f32.gmra.mrb[0].mxu0 %v711
    %v1836 = vpop.f32.mrb[0].mxu0
    %v1837 = vadd.f32 %v276, %v1836
    %v1838 = vpop.f32.mrb[0].mxu0
    %1839 = vmatprep.mubr.f32.mxu0 0.0
    %1840 = vmatmul.mubr.f32.gmra.mrb[0].mxu0 %v714
    %v1841 = vpop.f32.mrb[0].mxu0
    %v1842 = vadd.f32 %v276, %v1841
    %v1843 = vpop.f32.mrb[0].mxu0
    %1844 = vmatprep.mubr.f32.mxu0 0.0
    %1845 = vmatmul.mubr.f32.gmra.mrb[0].mxu0 %v717
    %v1846 = vpop.f32.mrb[0].mxu0
    %v1847 = vadd.f32 %v276, %v1846
    %v1848 = vpop.f32.mrb[0].mxu0
    %1849 = vmatprep.mubr.f32.mxu0 0.0
    %1850 = vmatmul.mubr.f32.gmra.mrb[0].mxu0 %v720
    %v1851 = vpop.f32.mrb[0].mxu0
    %v1852 = vadd.f32 %v276, %v1851
    %v1853 = vpop.f32.mrb[0].mxu0
    %1854 = vmatprep.mubr.f32.mxu0 0.0
    %1855 = vmatmul.mubr.f32.gmra.mrb[0].mxu0 %v723
    %v1856 = vpop.f32.mrb[0].mxu0
    %v1857 = vadd.f32 %v276, %v1856
    %v1858 = vpop.f32.mrb[0].mxu0
    %1859 = vmatprep.mubr.f32.mxu0 0.0
    %1860 = vmatmul.mubr.f32.gmra.mrb[0].mxu0 %v726
    %v1861 = vpop.f32.mrb[0].mxu0
    %v1862 = vadd.f32 %v276, %v1861
    %v1863 = vpop.f32.mrb[0].mxu0
    %1864 = vmatprep.mubr.f32.mxu0 0.0
    %1865 = vmatmul.mubr.f32.gmra.mrb[0].mxu0 %v729
    %v1866 = vpop.f32.mrb[0].mxu0
    %v1867 = vadd.f32 %v276, %v1866
    %v1868 = vpop.f32.mrb[0].mxu0
    %1869 = vmatprep.mubr.f32.mxu0 0.0
    %1870 = vmatmul.mubr.f32.gmra.mrb[0].mxu0 %v732
    %v1871 = vpop.f32.mrb[0].mxu0
    %v1872 = vadd.f32 %v276, %v1871
    %v1873 = vpop.f32.mrb[0].mxu0
    %1874 = vmatprep.mubr.f32.mxu0 0.0
    %1875 = vmatmul.mubr.f32.gmra.mrb[0].mxu0 %v735
    %v1876 = vpop.f32.mrb[0].mxu0
    %v1877 = vadd.f32 %v276, %v1876
    %v1878 = vpop.f32.mrb[0].mxu0
    %1879 = vmatprep.mubr.f32.mxu0 0.0
    %1880 = vmatmul.mubr.f32.gmra.mrb[0].mxu0 %v738
    %v1881 = vpop.f32.mrb[0].mxu0
    %v1882 = vadd.f32 %v276, %v1881
    %v1883 = vpop.f32.mrb[0].mxu0
    %1884 = vmatprep.mubr.f32.mxu0 0.0
    %1885 = vmatmul.mubr.f32.gmra.mrb[0].mxu0 %v741
    %v1886 = vpop.f32.mrb[0].mxu0
    %v1887 = vadd.f32 %v276, %v1886
    %v1888 = vpop.f32.mrb[0].mxu0
    %1889 = vmatprep.mubr.f32.mxu0 0.0
    %1890 = vmatmul.mubr.f32.gmra.mrb[0].mxu0 %v744
    %v1891 = vpop.f32.mrb[0].mxu0
    %v1892 = vadd.f32 %v276, %v1891
    %v1893 = vpop.f32.mrb[0].mxu0
    %1894 = vmatprep.mubr.f32.mxu0 0.0
    %1895 = vmatmul.mubr.f32.gmra.mrb[0].mxu0 %v747
    %v1896 = vpop.f32.mrb[0].mxu0
    %v1897 = vadd.f32 %v276, %v1896
    %v1898 = vpop.f32.mrb[0].mxu0
    %1899 = vmatprep.mubr.f32.mxu0 0.0
    %1900 = vmatmul.mubr.f32.gmra.mrb[0].mxu0 %v750
    %v1901 = vpop.f32.mrb[0].mxu0
    %v1902 = vadd.f32 %v276, %v1901
    %v1903 = vpop.f32.mrb[0].mxu0
    %1904 = vmatprep.mubr.f32.mxu0 0.0
    %1905 = vmatmul.mubr.f32.gmra.mrb[0].mxu0 %v753
    %v1906 = vpop.f32.mrb[0].mxu0
    %v1907 = vadd.f32 %v276, %v1906
    %v1908 = vpop.f32.mrb[0].mxu0
    %1909 = vmatprep.mubr.f32.mxu0 0.0
    %1910 = vmatmul.mubr.f32.gmra.mrb[0].mxu0 %v756
    %v1911 = vpop.f32.mrb[0].mxu0
    %v1912 = vadd.f32 %v276, %v1911
    %v1913 = vpop.f32.mrb[0].mxu0
    %1914 = vmatprep.mubr.f32.mxu0 0.0
    %1915 = vmatmul.mubr.f32.gmra.mrb[0].mxu0 %v759
    %v1916 = vpop.f32.mrb[0].mxu0
    %v1917 = vadd.f32 %v276, %v1916
    %v1918 = vpop.f32.mrb[0].mxu0
    %1919 = vmatprep.mubr.f32.mxu0 0.0
    %1920 = vmatmul.mubr.f32.gmra.mrb[0].mxu0 %v762
    %v1921 = vpop.f32.mrb[0].mxu0
    %v1922 = vadd.f32 %v276, %v1921
    %v1923 = vpop.f32.mrb[0].mxu0
    %1924 = vmatprep.mubr.f32.mxu0 0.0
    %1925 = vmatmul.mubr.f32.gmra.mrb[0].mxu0 %v765
    %v1926 = vpop.f32.mrb[0].mxu0
    %v1927 = vadd.f32 %v276, %v1926
    %v1928 = vpop.f32.mrb[0].mxu0
    %1929 = vmatprep.mubr.f32.mxu0 0.0
    %1930 = vmatmul.mubr.f32.gmra.mrb[0].mxu0 %v768
    %v1931 = vpop.f32.mrb[0].mxu0
    %v1932 = vadd.f32 %v276, %v1931
    %v1933 = vpop.f32.mrb[0].mxu0
    %1934 = vmatprep.mubr.f32.mxu0 0.0
    %1935 = vmatmul.mubr.f32.gmra.mrb[0].mxu0 %v771
    %v1936 = vpop.f32.mrb[0].mxu0
    %v1937 = vadd.f32 %v276, %v1936
    %v1938 = vpop.f32.mrb[0].mxu0
    %1939 = vmatprep.mubr.f32.mxu0 0.0
    %1940 = vmatmul.mubr.f32.gmra.mrb[0].mxu0 %v774
    %v1941 = vpop.f32.mrb[0].mxu0
    %v1942 = vadd.f32 %v276, %v1941
    %v1943 = vpop.f32.mrb[0].mxu0
    %1944 = vmatprep.mubr.f32.mxu0 0.0
    %1945 = vmatmul.mubr.f32.gmra.mrb[0].mxu0 %v777
    %v1946 = vpop.f32.mrb[0].mxu0
    %v1947 = vadd.f32 %v276, %v1946
    %v1948 = vpop.f32.mrb[0].mxu0
    %1949 = vmatprep.mubr.f32.mxu0 0.0
    %1950 = vmatmul.mubr.f32.gmra.mrb[0].mxu0 %v780
    %v1951 = vpop.f32.mrb[0].mxu0
    %v1952 = vadd.f32 %v276, %v1951
    %v1953 = vpop.f32.mrb[0].mxu0
    %1954 = vmatprep.mubr.f32.mxu0 0.0
    %1955 = vmatmul.mubr.f32.gmra.mrb[0].mxu0 %v783
    %v1956 = vpop.f32.mrb[0].mxu0
    %v1957 = vadd.f32 %v276, %v1956
    %v1958 = vpop.f32.mrb[0].mxu0
    %1959 = vmatprep.mubr.f32.mxu0 0.0
    %1960 = vmatmul.mubr.f32.gmra.mrb[0].mxu0 %v786
    %v1961 = vpop.f32.mrb[0].mxu0
    %v1962 = vadd.f32 %v276, %v1961
    %v1963 = vpop.f32.mrb[0].mxu0
    %1964 = vmatprep.mubr.f32.mxu0 0.0
    %1965 = vmatmul.mubr.f32.gmra.mrb[0].mxu0 %v789
    %v1966 = vpop.f32.mrb[0].mxu0
    %v1967 = vadd.f32 %v276, %v1966
    %v1968 = vpop.f32.mrb[0].mxu0
    %1969 = vmatprep.mubr.f32.mxu0 0.0
    %1970 = vmatmul.mubr.f32.gmra.mrb[0].mxu0 %v792
    %v1971 = vpop.f32.mrb[0].mxu0
    %v1972 = vadd.f32 %v276, %v1971
    %v1973 = vpop.f32.mrb[0].mxu0
    %1974 = vmatprep.mubr.f32.mxu0 0.0
    %1975 = vmatmul.mubr.f32.gmra.mrb[0].mxu0 %v795
    %v1976 = vpop.f32.mrb[0].mxu0
    %v1977 = vadd.f32 %v276, %v1976
    %v1978 = vpop.f32.mrb[0].mxu0
    %1979 = vmatprep.mubr.f32.mxu0 0.0
    %1980 = vmatmul.mubr.f32.gmra.mrb[0].mxu0 %v798
    %v1981 = vpop.f32.mrb[0].mxu0
    %v1982 = vadd.f32 %v276, %v1981
    %v1983 = vpop.f32.mrb[0].mxu0
    %1984 = vmatprep.mubr.f32.mxu0 0.0
    %1985 = vmatmul.mubr.f32.gmra.mrb[0].mxu0 %v801
    %v1986 = vpop.f32.mrb[0].mxu0
    %v1987 = vadd.f32 %v276, %v1986
    %v1988 = vpop.f32.mrb[0].mxu0
    %1989 = vmatprep.mubr.f32.mxu0 0.0
    %1990 = vmatmul.mubr.f32.gmra.mrb[0].mxu0 %v804
    %v1991 = vpop.f32.mrb[0].mxu0
    %v1992 = vadd.f32 %v276, %v1991
    %v1993 = vpop.f32.mrb[0].mxu0
    %1994 = vmatprep.mubr.f32.mxu0 0.0
    %1995 = vmatmul.mubr.f32.gmra.mrb[0].mxu0 %v807
    %v1996 = vpop.f32.mrb[0].mxu0
    %v1997 = vadd.f32 %v276, %v1996
    %v1998 = vpop.f32.mrb[0].mxu0
    %1999 = vmatprep.mubr.f32.mxu0 0.0
    %2000 = vmatmul.mubr.f32.gmra.mrb[0].mxu0 %v810
    %v2001 = vpop.f32.mrb[0].mxu0
    %v2002 = vadd.f32 %v276, %v2001
    %v2003 = vpop.f32.mrb[0].mxu0
    %2004 = vmatprep.mubr.f32.mxu0 0.0
    %2005 = vmatmul.mubr.f32.gmra.mrb[0].mxu0 %v813
    %v2006 = vpop.f32.mrb[0].mxu0
    %v2007 = vadd.f32 %v276, %v2006
    %v2008 = vpop.f32.mrb[0].mxu0
    %2009 = vmatprep.mubr.f32.mxu0 0.0
    %2010 = vmatmul.mubr.f32.gmra.mrb[0].mxu0 %v816
    %v2011 = vpop.f32.mrb[0].mxu0
    %v2012 = vadd.f32 %v276, %v2011
    %v2013 = vpop.f32.mrb[0].mxu0
    %2014 = vmatprep.mubr.f32.mxu0 0.0
    %2015 = vmatmul.mubr.f32.gmra.mrb[0].mxu0 %v819
    %v2016 = vpop.f32.mrb[0].mxu0
    %v2017 = vadd.f32 %v276, %v2016
    %v2018 = vpop.f32.mrb[0].mxu0
    %2019 = vmatprep.mubr.f32.mxu0 0.0
    %2020 = vmatmul.mubr.f32.gmra.mrb[0].mxu0 %v822
    %v2021 = vpop.f32.mrb[0].mxu0
    %v2022 = vadd.f32 %v276, %v2021
    %v2023 = vpop.f32.mrb[0].mxu0
    %2024 = vmatprep.mubr.f32.mxu0 0.0
    %2025 = vmatmul.mubr.f32.gmra.mrb[0].mxu0 %v825
    %v2026 = vpop.f32.mrb[0].mxu0
    %v2027 = vadd.f32 %v276, %v2026
    %v2028 = vpop.f32.mrb[0].mxu0
    %2029 = vmatprep.mubr.f32.mxu0 0.0
    %2030 = vmatmul.mubr.f32.gmra.mrb[0].mxu0 %v828
    %v2031 = vpop.f32.mrb[0].mxu0
    %v2032 = vadd.f32 %v276, %v2031
    %v2033 = vpop.f32.mrb[0].mxu0
    %2034 = vmatprep.mubr.f32.mxu0 0.0
    %2035 = vmatmul.mubr.f32.gmra.mrb[0].mxu0 %v831
    %v2036 = vpop.f32.mrb[0].mxu0
    %v2037 = vadd.f32 %v276, %v2036
    %v2038 = vpop.f32.mrb[0].mxu0
    %2039 = vmatprep.mubr.f32.mxu0 0.0
    %2040 = vmatmul.mubr.f32.gmra.mrb[0].mxu0 %v834
    %v2041 = vpop.f32.mrb[0].mxu0
    %v2042 = vadd.f32 %v276, %v2041
    %v2043 = vpop.f32.mrb[0].mxu0
    %2044 = vmatprep.mubr.f32.mxu0 0.0
    %2045 = vmatmul.mubr.f32.gmra.mrb[0].mxu0 %v837
    %v2046 = vpop.f32.mrb[0].mxu0
    %v2047 = vadd.f32 %v276, %v2046
    %v2048 = vpop.f32.mrb[0].mxu0
    %2049 = vmatprep.mubr.f32.mxu0 0.0
    %2050 = vmatmul.mubr.f32.gmra.mrb[0].mxu0 %v840
    %v2051 = vpop.f32.mrb[0].mxu0
    %v2052 = vadd.f32 %v276, %v2051
    %v2053 = vpop.f32.mrb[0].mxu0
    %2054 = vmatprep.mubr.f32.mxu0 0.0
    %2055 = vmatmul.mubr.f32.gmra.mrb[0].mxu0 %v843
    %v2056 = vpop.f32.mrb[0].mxu0
    %v2057 = vadd.f32 %v276, %v2056
    %v2058 = vpop.f32.mrb[0].mxu0
    %2059 = vmatprep.mubr.f32.mxu0 0.0
    %2060 = vmatmul.mubr.f32.gmra.mrb[0].mxu0 %v846
    %v2061 = vpop.f32.mrb[0].mxu0
    %v2062 = vadd.f32 %v276, %v2061
    %v2063 = vpop.f32.mrb[0].mxu0
    %2064 = vmatprep.mubr.f32.mxu0 0.0
    %2065 = vmatmul.mubr.f32.gmra.mrb[0].mxu0 %v849
    %v2066 = vpop.f32.mrb[0].mxu0
    %v2067 = vadd.f32 %v276, %v2066
    %v2068 = vpop.f32.mrb[0].mxu0
    %2069 = vmatprep.mubr.f32.mxu0 0.0
    %2070 = vmatmul.mubr.f32.gmra.mrb[0].mxu0 %v852
    %v2071 = vpop.f32.mrb[0].mxu0
    %v2072 = vadd.f32 %v276, %v2071
    %v2073 = vpop.f32.mrb[0].mxu0
    %2074 = vmatprep.mubr.f32.mxu0 0.0
    %2075 = vmatmul.mubr.f32.gmra.mrb[0].mxu0 %v855
    %v2076 = vpop.f32.mrb[0].mxu0
    %v2077 = vadd.f32 %v276, %v2076
    %v2078 = vpop.f32.mrb[0].mxu0
    %2079 = vmatprep.mubr.f32.mxu0 0.0
    %2080 = vmatmul.mubr.f32.gmra.mrb[0].mxu0 %v858
    %v2081 = vpop.f32.mrb[0].mxu0
    %v2082 = vadd.f32 %v276, %v2081
    %v2083 = vpop.f32.mrb[0].mxu0
    %2084 = vmatprep.mubr.f32.mxu0 0.0
    %2085 = vmatmul.mubr.f32.gmra.mrb[0].mxu0 %v861
    %v2086 = vpop.f32.mrb[0].mxu0
    %v2087 = vadd.f32 %v276, %v2086
    %v2088 = vpop.f32.mrb[0].mxu0
    %2089 = vmatprep.mubr.f32.mxu0 0.0
    %2090 = vmatmul.mubr.f32.gmra.mrb[0].mxu0 %v864
    %v2091 = vpop.f32.mrb[0].mxu0
    %v2092 = vadd.f32 %v276, %v2091
    %v2093 = vpop.f32.mrb[0].mxu0
    %2094 = vmatprep.mubr.f32.mxu0 0.0
    %2095 = vmatmul.mubr.f32.gmra.mrb[0].mxu0 %v867
    %v2096 = vpop.f32.mrb[0].mxu0
    %v2097 = vadd.f32 %v276, %v2096
    %v2098 = vpop.f32.mrb[0].mxu0
    %2099 = vmatprep.mubr.f32.mxu0 0.0
    %2100 = vmatmul.mubr.f32.gmra.mrb[0].mxu0 %v870
    %v2101 = vpop.f32.mrb[0].mxu0
    %v2102 = vadd.f32 %v276, %v2101
    %v2103 = vpop.f32.mrb[0].mxu0
    %2104 = vmatprep.mubr.f32.mxu0 0.0
    %2105 = vmatmul.mubr.f32.gmra.mrb[0].mxu0 %v873
    %v2106 = vpop.f32.mrb[0].mxu0
    %v2107 = vadd.f32 %v276, %v2106
    %v2108 = vpop.f32.mrb[0].mxu0
    %2109 = vmatprep.mubr.f32.mxu0 0.0
    %2110 = vmatmul.mubr.f32.gmra.mrb[0].mxu0 %v876
    %v2111 = vpop.f32.mrb[0].mxu0
    %v2112 = vadd.f32 %v276, %v2111
    %v2113 = vpop.f32.mrb[0].mxu0
    %2114 = vmatprep.mubr.f32.mxu0 0.0
    %2115 = vmatmul.mubr.f32.gmra.mrb[0].mxu0 %v879
    %v2116 = vpop.f32.mrb[0].mxu0
    %v2117 = vadd.f32 %v276, %v2116
    %v2118 = vpop.f32.mrb[0].mxu0
    %2119 = vmatprep.mubr.f32.mxu0 0.0
    %2120 = vmatmul.mubr.f32.gmra.mrb[0].mxu0 %v882
    %v2121 = vpop.f32.mrb[0].mxu0
    %v2122 = vadd.f32 %v276, %v2121
    %v2123 = vpop.f32.mrb[0].mxu0
    %2124 = vmatprep.mubr.f32.mxu0 0.0
    %2125 = vmatmul.mubr.f32.gmra.mrb[0].mxu0 %v885
    %v2126 = vpop.f32.mrb[0].mxu0
    %v2127 = vadd.f32 %v276, %v2126
    %v2128 = vpop.f32.mrb[0].mxu0
    %2129 = vmatprep.mubr.f32.mxu0 0.0
    %2130 = vmatmul.mubr.f32.gmra.mrb[0].mxu0 %v888
    %v2131 = vpop.f32.mrb[0].mxu0
    %v2132 = vadd.f32 %v276, %v2131
    %v2133 = vpop.f32.mrb[0].mxu0
    %2134 = vmatprep.mubr.f32.mxu0 0.0
    %2135 = vmatmul.mubr.f32.gmra.mrb[0].mxu0 %v891
    %v2136 = vpop.f32.mrb[0].mxu0
    %v2137 = vadd.f32 %v276, %v2136
    %v2138 = vpop.f32.mrb[0].mxu0
    %2139 = vmatprep.mubr.f32.mxu0 0.0
    %2140 = vmatmul.mubr.f32.gmra.mrb[0].mxu0 %v894
    %v2141 = vpop.f32.mrb[0].mxu0
    %v2142 = vadd.f32 %v276, %v2141
    %v2143 = vpop.f32.mrb[0].mxu0
    %2144 = vmatprep.mubr.f32.mxu0 0.0
    %2145 = vmatmul.mubr.f32.gmra.mrb[0].mxu0 %v897
    %v2146 = vpop.f32.mrb[0].mxu0
    %v2147 = vadd.f32 %v276, %v2146
    %v2148 = vpop.f32.mrb[0].mxu0
    %2149 = vmatprep.mubr.f32.mxu0 0.0
    %2150 = vmatmul.mubr.f32.gmra.mrb[0].mxu0 %v900
    %v2151 = vpop.f32.mrb[0].mxu0
    %v2152 = vadd.f32 %v276, %v2151
    %v2153 = vpop.f32.mrb[0].mxu0
    %2154 = vmatprep.mubr.f32.mxu0 0.0
    %2155 = vmatmul.mubr.f32.gmra.mrb[0].mxu0 %v903
    %v2156 = vpop.f32.mrb[0].mxu0
    %v2157 = vadd.f32 %v276, %v2156
    %v2158 = vpop.f32.mrb[0].mxu0
    %2159 = vmatprep.mubr.f32.mxu0 0.0
    %2160 = vmatmul.mubr.f32.gmra.mrb[0].mxu0 %v906
    %v2161 = vpop.f32.mrb[0].mxu0
    %v2162 = vadd.f32 %v276, %v2161
    %v2163 = vpop.f32.mrb[0].mxu0
    %2164 = vmatprep.mubr.f32.mxu0 0.0
    %2165 = vmatmul.mubr.f32.gmra.mrb[0].mxu0 %v909
    %v2166 = vpop.f32.mrb[0].mxu0
    %v2167 = vadd.f32 %v276, %v2166
    %v2168 = vpop.f32.mrb[0].mxu0
    %2169 = vmatprep.mubr.f32.mxu0 0.0
    %2170 = vmatmul.mubr.f32.gmra.mrb[0].mxu0 %v912
    %v2171 = vpop.f32.mrb[0].mxu0
    %v2172 = vadd.f32 %v276, %v2171
    %v2173 = vpop.f32.mrb[0].mxu0
    %2174 = vmatprep.mubr.f32.mxu0 0.0
    %2175 = vmatmul.mubr.f32.gmra.mrb[0].mxu0 %v915
    %v2176 = vpop.f32.mrb[0].mxu0
    %v2177 = vadd.f32 %v276, %v2176
    %v2178 = vpop.f32.mrb[0].mxu0
    %2179 = vmatprep.mubr.f32.mxu0 0.0
    %2180 = vmatmul.mubr.f32.gmra.mrb[0].mxu0 %v918
    %v2181 = vpop.f32.mrb[0].mxu0
    %v2182 = vadd.f32 %v276, %v2181
    %v2183 = vpop.f32.mrb[0].mxu0
    %2184 = vmatprep.mubr.f32.mxu0 0.0
    %2185 = vmatmul.mubr.f32.gmra.mrb[0].mxu0 %v921
    %v2186 = vpop.f32.mrb[0].mxu0
    %v2187 = vadd.f32 %v276, %v2186
    %v2188 = vpop.f32.mrb[0].mxu0
    %2189 = vmatprep.mubr.f32.mxu0 0.0
    %2190 = vmatmul.mubr.f32.gmra.mrb[0].mxu0 %v924
    %v2191 = vpop.f32.mrb[0].mxu0
    %v2192 = vadd.f32 %v276, %v2191
    %v2193 = vpop.f32.mrb[0].mxu0
    %2194 = vmatprep.mubr.f32.mxu0 0.0
    %2195 = vmatmul.mubr.f32.gmra.mrb[0].mxu0 %v927
    %v2196 = vpop.f32.mrb[0].mxu0
    %v2197 = vadd.f32 %v276, %v2196
    %v2198 = vpop.f32.mrb[0].mxu0
    %2199 = vmatprep.mubr.f32.mxu0 0.0
    %2200 = vmatmul.mubr.f32.gmra.mrb[0].mxu0 %v930
    %v2201 = vpop.f32.mrb[0].mxu0
    %v2202 = vadd.f32 %v276, %v2201
    %v2203 = vpop.f32.mrb[0].mxu0
    %2204 = vmatprep.mubr.f32.mxu0 0.0
    %2205 = vmatmul.mubr.f32.gmra.mrb[0].mxu0 %v933
    %v2206 = vpop.f32.mrb[0].mxu0
    %v2207 = vadd.f32 %v276, %v2206
    %v2208 = vpop.f32.mrb[0].mxu0
    %2209 = vmatprep.mubr.f32.mxu0 0.0
    %2210 = vmatmul.mubr.f32.gmra.mrb[0].mxu0 %v936
    %v2211 = vpop.f32.mrb[0].mxu0
    %v2212 = vadd.f32 %v276, %v2211
    %v2213 = vpop.f32.mrb[0].mxu0
    %2214 = vmatprep.mubr.f32.mxu0 0.0
    %2215 = vmatmul.mubr.f32.gmra.mrb[0].mxu0 %v939
    %v2216 = vpop.f32.mrb[0].mxu0
    %v2217 = vadd.f32 %v276, %v2216
    %v2218 = vpop.f32.mrb[0].mxu0
    %2219 = vmatprep.mubr.f32.mxu0 0.0
    %2220 = vmatmul.mubr.f32.gmra.mrb[0].mxu0 %v942
    %v2221 = vpop.f32.mrb[0].mxu0
    %v2222 = vadd.f32 %v276, %v2221
    %v2223 = vpop.f32.mrb[0].mxu0
    %2224 = vmatprep.mubr.f32.mxu0 0.0
    %2225 = vmatmul.mubr.f32.gmra.mrb[0].mxu0 %v945
    %v2226 = vpop.f32.mrb[0].mxu0
    %v2227 = vadd.f32 %v276, %v2226
    %v2228 = vpop.f32.mrb[0].mxu0
    %2229 = vmatprep.mubr.f32.mxu0 0.0
    %2230 = vmatmul.mubr.f32.gmra.mrb[0].mxu0 %v948
    %v2231 = vpop.f32.mrb[0].mxu0
    %v2232 = vadd.f32 %v276, %v2231
    %v2233 = vpop.f32.mrb[0].mxu0
    %2234 = vmatprep.mubr.f32.mxu0 0.0
    %2235 = vmatmul.mubr.f32.gmra.mrb[0].mxu0 %v951
    %v2236 = vpop.f32.mrb[0].mxu0
    %v2237 = vadd.f32 %v276, %v2236
    %v2238 = vpop.f32.mrb[0].mxu0
    %2239 = vmatprep.mubr.f32.mxu0 0.0
    %2240 = vmatmul.mubr.f32.gmra.mrb[0].mxu0 %v954
    %v2241 = vpop.f32.mrb[0].mxu0
    %v2242 = vadd.f32 %v276, %v2241
    %v2243 = vpop.f32.mrb[0].mxu0
    %2244 = vmatprep.mubr.f32.mxu0 0.0
    %2245 = vmatmul.mubr.f32.gmra.mrb[0].mxu0 %v957
    %v2246 = vpop.f32.mrb[0].mxu0
    %v2247 = vadd.f32 %v276, %v2246
    %v2248 = vpop.f32.mrb[0].mxu0
    %2249 = vmatprep.mubr.f32.mxu0 0.0
    %2250 = vmatmul.mubr.f32.gmra.mrb[0].mxu0 %v960
    %v2251 = vpop.f32.mrb[0].mxu0
    %v2252 = vadd.f32 %v276, %v2251
    %v2253 = vpop.f32.mrb[0].mxu0
    %2254 = vmatprep.mubr.f32.mxu0 0.0
    %2255 = vmatmul.mubr.f32.gmra.mrb[0].mxu0 %v963
    %v2256 = vpop.f32.mrb[0].mxu0
    %v2257 = vadd.f32 %v276, %v2256
    %v2258 = vpop.f32.mrb[0].mxu0
    %2259 = vmatprep.mubr.f32.mxu0 0.0
    %2260 = vmatmul.mubr.f32.gmra.mrb[0].mxu0 %v966
    %v2261 = vpop.f32.mrb[0].mxu0
    %v2262 = vadd.f32 %v276, %v2261
    %v2263 = vpop.f32.mrb[0].mxu0
    %2264 = vmatprep.mubr.f32.mxu0 0.0
    %2265 = vmatmul.mubr.f32.gmra.mrb[0].mxu0 %v969
    %v2266 = vpop.f32.mrb[0].mxu0
    %v2267 = vadd.f32 %v276, %v2266
    %v2268 = vpop.f32.mrb[0].mxu0
    %2269 = vmatprep.mubr.f32.mxu0 0.0
    %2270 = vmatmul.mubr.f32.gmra.mrb[0].mxu0 %v972
    %v2271 = vpop.f32.mrb[0].mxu0
    %v2272 = vadd.f32 %v276, %v2271
    %v2273 = vpop.f32.mrb[0].mxu0
    %2274 = vmatprep.mubr.f32.mxu0 0.0
    %2275 = vmatmul.mubr.f32.gmra.mrb[0].mxu0 %v975
    %v2276 = vpop.f32.mrb[0].mxu0
    %v2277 = vadd.f32 %v276, %v2276
    %v2278 = vpop.f32.mrb[0].mxu0
    %2279 = vmatprep.mubr.f32.mxu0 0.0
    %2280 = vmatmul.mubr.f32.gmra.mrb[0].mxu0 %v978
    %v2281 = vpop.f32.mrb[0].mxu0
    %v2282 = vadd.f32 %v276, %v2281
    %v2283 = vpop.f32.mrb[0].mxu0
    %2284 = vmatprep.mubr.f32.mxu0 0.0
    %2285 = vmatmul.mubr.f32.gmra.mrb[0].mxu0 %v981
    %v2286 = vpop.f32.mrb[0].mxu0
    %v2287 = vadd.f32 %v276, %v2286
    %v2288 = vpop.f32.mrb[0].mxu0
    %2289 = vmatprep.mubr.f32.mxu0 0.0
    %2290 = vmatmul.mubr.f32.gmra.mrb[0].mxu0 %v984
    %v2291 = vpop.f32.mrb[0].mxu0
    %v2292 = vadd.f32 %v276, %v2291
    %v2293 = vpop.f32.mrb[0].mxu0
    %2294 = vmatprep.mubr.f32.mxu0 0.0
    %2295 = vmatmul.mubr.f32.gmra.mrb[0].mxu0 %v987
    %v2296 = vpop.f32.mrb[0].mxu0
    %v2297 = vadd.f32 %v276, %v2296
    %v2298 = vpop.f32.mrb[0].mxu0
    %2299 = vmatprep.mubr.f32.mxu0 0.0
    %2300 = vmatmul.mubr.f32.gmra.mrb[0].mxu0 %v990
    %v2301 = vpop.f32.mrb[0].mxu0
    %v2302 = vadd.f32 %v276, %v2301
    %v2303 = vpop.f32.mrb[0].mxu0
    %2304 = vmatprep.mubr.f32.mxu0 0.0
    %2305 = vmatmul.mubr.f32.gmra.mrb[0].mxu0 %v993
    %v2306 = vpop.f32.mrb[0].mxu0
    %v2307 = vadd.f32 %v276, %v2306
    %v2308 = vpop.f32.mrb[0].mxu0
    %2309 = vmatprep.mubr.f32.mxu0 0.0
    %2310 = vmatmul.mubr.f32.gmra.mrb[0].mxu0 %v996
    %v2311 = vpop.f32.mrb[0].mxu0
    %v2312 = vadd.f32 %v276, %v2311
    %v2313 = vpop.f32.mrb[0].mxu0
    %2314 = vmatprep.mubr.f32.mxu0 0.0
    %2315 = vmatmul.mubr.f32.gmra.mrb[0].mxu0 %v999
    %v2316 = vpop.f32.mrb[0].mxu0
    %v2317 = vadd.f32 %v276, %v2316
    %v2318 = vpop.f32.mrb[0].mxu0
    %2319 = vmatprep.mubr.f32.mxu0 0.0
    %2320 = vmatmul.mubr.f32.gmra.mrb[0].mxu0 %v1002
    %v2321 = vpop.f32.mrb[0].mxu0
    %v2322 = vadd.f32 %v276, %v2321
    %v2323 = vpop.f32.mrb[0].mxu0
    %2324 = vmatprep.mubr.f32.mxu0 0.0
    %2325 = vmatmul.mubr.f32.gmra.mrb[0].mxu0 %v1005
    %v2326 = vpop.f32.mrb[0].mxu0
    %v2327 = vadd.f32 %v276, %v2326
    %v2328 = vpop.f32.mrb[0].mxu0
    %2329 = vmatprep.mubr.f32.mxu0 0.0
    %2330 = vmatmul.mubr.f32.gmra.mrb[0].mxu0 %v1008
    %v2331 = vpop.f32.mrb[0].mxu0
    %v2332 = vadd.f32 %v276, %v2331
    %v2333 = vpop.f32.mrb[0].mxu0
    %2334 = vmatprep.mubr.f32.mxu0 0.0
    %2335 = vmatmul.mubr.f32.gmra.mrb[0].mxu0 %v1011
    %v2336 = vpop.f32.mrb[0].mxu0
    %v2337 = vadd.f32 %v276, %v2336
    %v2338 = vpop.f32.mrb[0].mxu0
    %2339 = vmatprep.mubr.f32.mxu0 0.0
    %2340 = vmatmul.mubr.f32.gmra.mrb[0].mxu0 %v1014
    %v2341 = vpop.f32.mrb[0].mxu0
    %v2342 = vadd.f32 %v276, %v2341
    %v2343 = vpop.f32.mrb[0].mxu0
    %2344 = vmatprep.mubr.f32.mxu0 0.0
    %2345 = vmatmul.mubr.f32.gmra.mrb[0].mxu0 %v1017
    %v2346 = vpop.f32.mrb[0].mxu0
    %v2347 = vadd.f32 %v276, %v2346
    %v2348 = vpop.f32.mrb[0].mxu0
    %2349 = vmatprep.mubr.f32.mxu0 0.0
    %2350 = vmatmul.mubr.f32.gmra.mrb[0].mxu0 %v1020
    %v2351 = vpop.f32.mrb[0].mxu0
    %v2352 = vadd.f32 %v276, %v2351
    %v2353 = vpop.f32.mrb[0].mxu0
    %2354 = vmatprep.mubr.f32.mxu0 0.0
    %2355 = vmatmul.mubr.f32.gmra.mrb[0].mxu0 %v1023
    %v2356 = vpop.f32.mrb[0].mxu0
    %v2357 = vadd.f32 %v276, %v2356
    %v2358 = vpop.f32.mrb[0].mxu0
    %2359 = vmatprep.mubr.f32.mxu0 0.0
    %2360 = vmatmul.mubr.f32.gmra.mrb[0].mxu0 %v1026
    %v2361 = vpop.f32.mrb[0].mxu0
    %v2362 = vadd.f32 %v276, %v2361
    %v2363 = vpop.f32.mrb[0].mxu0
    %2364 = vmatprep.mubr.f32.mxu0 0.0
    %2365 = vmatmul.mubr.f32.gmra.mrb[0].mxu0 %v1029
    %v2366 = vpop.f32.mrb[0].mxu0
    %v2367 = vadd.f32 %v276, %v2366
    %v2368 = vpop.f32.mrb[0].mxu0
    %2369 = vmatprep.mubr.f32.mxu0 0.0
    %2370 = vmatmul.mubr.f32.gmra.mrb[0].mxu0 %v1032
    %v2371 = vpop.f32.mrb[0].mxu0
    %v2372 = vadd.f32 %v276, %v2371
    %v2373 = vpop.f32.mrb[0].mxu0
    %2374 = vmatprep.mubr.f32.mxu0 0.0
    %2375 = vmatmul.mubr.f32.gmra.mrb[0].mxu0 %v1035
    %v2376 = vpop.f32.mrb[0].mxu0
    %v2377 = vadd.f32 %v276, %v2376
    %v2378 = vpop.f32.mrb[0].mxu0
    %2379 = vmatprep.mubr.f32.mxu0 0.0
    %2380 = vmatmul.mubr.f32.gmra.mrb[0].mxu0 %v1038
    %v2381 = vpop.f32.mrb[0].mxu0
    %v2382 = vadd.f32 %v276, %v2381
    %v2383 = vpop.f32.mrb[0].mxu0
    %2384 = vmatprep.mubr.f32.mxu0 0.0
    %2385 = vmatmul.mubr.f32.gmra.mrb[0].mxu0 %v1041
    %v2386 = vpop.f32.mrb[0].mxu0
    %v2387 = vadd.f32 %v276, %v2386
    %v2388 = vpop.f32.mrb[0].mxu0
    %2389 = vmatprep.mubr.f32.mxu0 0.0
    %2390 = vmatmul.mubr.f32.gmra.mrb[0].mxu0 %v1044
    %v2391 = vpop.f32.mrb[0].mxu0
    %v2392 = vadd.f32 %v276, %v2391
    %v2393 = vpop.f32.mrb[0].mxu0
    %2394 = vdwg.mxu0
    %v2395 = vadd.f32 %v1117, %v1122
    %v2396 = vadd.f32 %v2395, %v1127
    %v2397 = vadd.f32 %v2396, %v1132
    %v2398 = vadd.f32 %v2397, %v1137
    %v2399 = vadd.f32 %v2398, %v1142
    %v2400 = vadd.f32 %v2399, %v1147
    %v2401 = vadd.f32 %v2400, %v1152
    %v2402 = vadd.f32 %v2401, %v1157
    %v2403 = vadd.f32 %v2402, %v1162
    %v2404 = vadd.f32 %v2403, %v1167
    %v2405 = vadd.f32 %v2404, %v1172
    %v2406 = vadd.f32 %v2405, %v1177
    %v2407 = vadd.f32 %v2406, %v1182
    %v2408 = vadd.f32 %v2407, %v1187
    %v2409 = vadd.f32 %v2408, %v1192
    %v2410 = vadd.f32 %v2409, %v1197
    %v2411 = vadd.f32 %v2410, %v1202
    %v2412 = vadd.f32 %v2411, %v1207
    %v2413 = vadd.f32 %v2412, %v1212
    %v2414 = vadd.f32 %v2413, %v1217
    %v2415 = vadd.f32 %v2414, %v1222
    %v2416 = vadd.f32 %v2415, %v1227
    %v2417 = vadd.f32 %v2416, %v1232
    %v2418 = vadd.f32 %v2417, %v1237
    %v2419 = vadd.f32 %v2418, %v1242
    %v2420 = vadd.f32 %v2419, %v1247
    %v2421 = vadd.f32 %v2420, %v1252
    %v2422 = vadd.f32 %v2421, %v1257
    %v2423 = vadd.f32 %v2422, %v1262
    %v2424 = vadd.f32 %v2423, %v1267
    %v2425 = vadd.f32 %v2424, %v1272
    %v2426 = vadd.f32 %v2425, %v1277
    %v2427 = vadd.f32 %v2426, %v1282
    %v2428 = vadd.f32 %v2427, %v1287
    %v2429 = vadd.f32 %v2428, %v1292
    %v2430 = vadd.f32 %v2429, %v1297
    %v2431 = vadd.f32 %v2430, %v1302
    %v2432 = vadd.f32 %v2431, %v1307
    %v2433 = vadd.f32 %v2432, %v1312
    %v2434 = vadd.f32 %v2433, %v1317
    %v2435 = vadd.f32 %v2434, %v1322
    %v2436 = vadd.f32 %v2435, %v1327
    %v2437 = vadd.f32 %v2436, %v1332
    %v2438 = vadd.f32 %v2437, %v1337
    %v2439 = vadd.f32 %v2438, %v1342
    %v2440 = vadd.f32 %v2439, %v1347
    %v2441 = vadd.f32 %v2440, %v1352
    %v2442 = vadd.f32 %v2441, %v1357
    %v2443 = vadd.f32 %v2442, %v1362
    %v2444 = vadd.f32 %v2443, %v1367
    %v2445 = vadd.f32 %v2444, %v1372
    %v2446 = vadd.f32 %v2445, %v1377
    %v2447 = vadd.f32 %v2446, %v1382
    %v2448 = vadd.f32 %v2447, %v1387
    %v2449 = vadd.f32 %v2448, %v1392
    %v2450 = vadd.f32 %v2449, %v1397
    %v2451 = vadd.f32 %v2450, %v1402
    %v2452 = vadd.f32 %v2451, %v1407
    %v2453 = vadd.f32 %v2452, %v1412
    %v2454 = vadd.f32 %v2453, %v1417
    %v2455 = vadd.f32 %v2454, %v1422
    %v2456 = vadd.f32 %v2455, %v1427
    %v2457 = vadd.f32 %v2456, %v1432
    %v2458 = vadd.f32 %v2457, %v1437
    %v2459 = vadd.f32 %v2458, %v1442
    %v2460 = vadd.f32 %v2459, %v1447
    %v2461 = vadd.f32 %v2460, %v1452
    %v2462 = vadd.f32 %v2461, %v1457
    %v2463 = vadd.f32 %v2462, %v1462
    %v2464 = vadd.f32 %v2463, %v1467
    %v2465 = vadd.f32 %v2464, %v1472
    %v2466 = vadd.f32 %v2465, %v1477
    %v2467 = vadd.f32 %v2466, %v1482
    %v2468 = vadd.f32 %v2467, %v1487
    %v2469 = vadd.f32 %v2468, %v1492
    %v2470 = vadd.f32 %v2469, %v1497
    %v2471 = vadd.f32 %v2470, %v1502
    %v2472 = vadd.f32 %v2471, %v1507
    %v2473 = vadd.f32 %v2472, %v1512
    %v2474 = vadd.f32 %v2473, %v1517
    %v2475 = vadd.f32 %v2474, %v1522
    %v2476 = vadd.f32 %v2475, %v1527
    %v2477 = vadd.f32 %v2476, %v1532
    %v2478 = vadd.f32 %v2477, %v1537
    %v2479 = vadd.f32 %v2478, %v1542
    %v2480 = vadd.f32 %v2479, %v1547
    %v2481 = vadd.f32 %v2480, %v1552
    %v2482 = vadd.f32 %v2481, %v1557
    %v2483 = vadd.f32 %v2482, %v1562
    %v2484 = vadd.f32 %v2483, %v1567
    %v2485 = vadd.f32 %v2484, %v1572
    %v2486 = vadd.f32 %v2485, %v1577
    %v2487 = vadd.f32 %v2486, %v1582
    %v2488 = vadd.f32 %v2487, %v1587
    %v2489 = vadd.f32 %v2488, %v1592
    %v2490 = vadd.f32 %v2489, %v1597
    %v2491 = vadd.f32 %v2490, %v1602
    %v2492 = vadd.f32 %v2491, %v1607
    %v2493 = vadd.f32 %v2492, %v1612
    %v2494 = vadd.f32 %v2493, %v1617
    %v2495 = vadd.f32 %v2494, %v1622
    %v2496 = vadd.f32 %v2495, %v1627
    %v2497 = vadd.f32 %v2496, %v1632
    %v2498 = vadd.f32 %v2497, %v1637
    %v2499 = vadd.f32 %v2498, %v1642
    %v2500 = vadd.f32 %v2499, %v1647
    %v2501 = vadd.f32 %v2500, %v1652
    %v2502 = vadd.f32 %v2501, %v1657
    %v2503 = vadd.f32 %v2502, %v1662
    %v2504 = vadd.f32 %v2503, %v1667
    %v2505 = vadd.f32 %v2504, %v1672
    %v2506 = vadd.f32 %v2505, %v1677
    %v2507 = vadd.f32 %v2506, %v1682
    %v2508 = vadd.f32 %v2507, %v1687
    %v2509 = vadd.f32 %v2508, %v1692
    %v2510 = vadd.f32 %v2509, %v1697
    %v2511 = vadd.f32 %v2510, %v1702
    %v2512 = vadd.f32 %v2511, %v1707
    %v2513 = vadd.f32 %v2512, %v1712
    %v2514 = vadd.f32 %v2513, %v1717
    %v2515 = vadd.f32 %v2514, %v1722
    %v2516 = vadd.f32 %v2515, %v1727
    %v2517 = vadd.f32 %v2516, %v1732
    %v2518 = vadd.f32 %v2517, %v1737
    %v2519 = vadd.f32 %v2518, %v1742
    %v2520 = vadd.f32 %v2519, %v1747
    %v2521 = vadd.f32 %v2520, %v1752
    %v2522 = vadd.f32 %v2521, %v1757
    %v2523 = vadd.f32 %v2522, %v1762
    %v2524 = vadd.f32 %v2523, %v1767
    %v2525 = vadd.f32 %v2524, %v1772
    %v2526 = vadd.f32 %v2525, %v1777
    %v2527 = vadd.f32 %v2526, %v1782
    %v2528 = vadd.f32 %v2527, %v1787
    %v2529 = vadd.f32 %v2528, %v1792
    %v2530 = vadd.f32 %v2529, %v1797
    %v2531 = vadd.f32 %v2530, %v1802
    %v2532 = vadd.f32 %v2531, %v1807
    %v2533 = vadd.f32 %v2532, %v1812
    %v2534 = vadd.f32 %v2533, %v1817
    %v2535 = vadd.f32 %v2534, %v1822
    %v2536 = vadd.f32 %v2535, %v1827
    %v2537 = vadd.f32 %v2536, %v1832
    %v2538 = vadd.f32 %v2537, %v1837
    %v2539 = vadd.f32 %v2538, %v1842
    %v2540 = vadd.f32 %v2539, %v1847
    %v2541 = vadd.f32 %v2540, %v1852
    %v2542 = vadd.f32 %v2541, %v1857
    %v2543 = vadd.f32 %v2542, %v1862
    %v2544 = vadd.f32 %v2543, %v1867
    %v2545 = vadd.f32 %v2544, %v1872
    %v2546 = vadd.f32 %v2545, %v1877
    %v2547 = vadd.f32 %v2546, %v1882
    %v2548 = vadd.f32 %v2547, %v1887
    %v2549 = vadd.f32 %v2548, %v1892
    %v2550 = vadd.f32 %v2549, %v1897
    %v2551 = vadd.f32 %v2550, %v1902
    %v2552 = vadd.f32 %v2551, %v1907
    %v2553 = vadd.f32 %v2552, %v1912
    %v2554 = vadd.f32 %v2553, %v1917
    %v2555 = vadd.f32 %v2554, %v1922
    %v2556 = vadd.f32 %v2555, %v1927
    %v2557 = vadd.f32 %v2556, %v1932
    %v2558 = vadd.f32 %v2557, %v1937
    %v2559 = vadd.f32 %v2558, %v1942
    %v2560 = vadd.f32 %v2559, %v1947
    %v2561 = vadd.f32 %v2560, %v1952
    %v2562 = vadd.f32 %v2561, %v1957
    %v2563 = vadd.f32 %v2562, %v1962
    %v2564 = vadd.f32 %v2563, %v1967
    %v2565 = vadd.f32 %v2564, %v1972
    %v2566 = vadd.f32 %v2565, %v1977
    %v2567 = vadd.f32 %v2566, %v1982
    %v2568 = vadd.f32 %v2567, %v1987
    %v2569 = vadd.f32 %v2568, %v1992
    %v2570 = vadd.f32 %v2569, %v1997
    %v2571 = vadd.f32 %v2570, %v2002
    %v2572 = vadd.f32 %v2571, %v2007
    %v2573 = vadd.f32 %v2572, %v2012
    %v2574 = vadd.f32 %v2573, %v2017
    %v2575 = vadd.f32 %v2574, %v2022
    %v2576 = vadd.f32 %v2575, %v2027
    %v2577 = vadd.f32 %v2576, %v2032
    %v2578 = vadd.f32 %v2577, %v2037
    %v2579 = vadd.f32 %v2578, %v2042
    %v2580 = vadd.f32 %v2579, %v2047
    %v2581 = vadd.f32 %v2580, %v2052
    %v2582 = vadd.f32 %v2581, %v2057
    %v2583 = vadd.f32 %v2582, %v2062
    %v2584 = vadd.f32 %v2583, %v2067
    %v2585 = vadd.f32 %v2584, %v2072
    %v2586 = vadd.f32 %v2585, %v2077
    %v2587 = vadd.f32 %v2586, %v2082
    %v2588 = vadd.f32 %v2587, %v2087
    %v2589 = vadd.f32 %v2588, %v2092
    %v2590 = vadd.f32 %v2589, %v2097
    %v2591 = vadd.f32 %v2590, %v2102
    %v2592 = vadd.f32 %v2591, %v2107
    %v2593 = vadd.f32 %v2592, %v2112
    %v2594 = vadd.f32 %v2593, %v2117
    %v2595 = vadd.f32 %v2594, %v2122
    %v2596 = vadd.f32 %v2595, %v2127
    %v2597 = vadd.f32 %v2596, %v2132
    %v2598 = vadd.f32 %v2597, %v2137
    %v2599 = vadd.f32 %v2598, %v2142
    %v2600 = vadd.f32 %v2599, %v2147
    %v2601 = vadd.f32 %v2600, %v2152
    %v2602 = vadd.f32 %v2601, %v2157
    %v2603 = vadd.f32 %v2602, %v2162
    %v2604 = vadd.f32 %v2603, %v2167
    %v2605 = vadd.f32 %v2604, %v2172
    %v2606 = vadd.f32 %v2605, %v2177
    %v2607 = vadd.f32 %v2606, %v2182
    %v2608 = vadd.f32 %v2607, %v2187
    %v2609 = vadd.f32 %v2608, %v2192
    %v2610 = vadd.f32 %v2609, %v2197
    %v2611 = vadd.f32 %v2610, %v2202
    %v2612 = vadd.f32 %v2611, %v2207
    %v2613 = vadd.f32 %v2612, %v2212
    %v2614 = vadd.f32 %v2613, %v2217
    %v2615 = vadd.f32 %v2614, %v2222
    %v2616 = vadd.f32 %v2615, %v2227
    %v2617 = vadd.f32 %v2616, %v2232
    %v2618 = vadd.f32 %v2617, %v2237
    %v2619 = vadd.f32 %v2618, %v2242
    %v2620 = vadd.f32 %v2619, %v2247
    %v2621 = vadd.f32 %v2620, %v2252
    %v2622 = vadd.f32 %v2621, %v2257
    %v2623 = vadd.f32 %v2622, %v2262
    %v2624 = vadd.f32 %v2623, %v2267
    %v2625 = vadd.f32 %v2624, %v2272
    %v2626 = vadd.f32 %v2625, %v2277
    %v2627 = vadd.f32 %v2626, %v2282
    %v2628 = vadd.f32 %v2627, %v2287
    %v2629 = vadd.f32 %v2628, %v2292
    %v2630 = vadd.f32 %v2629, %v2297
    %v2631 = vadd.f32 %v2630, %v2302
    %v2632 = vadd.f32 %v2631, %v2307
    %v2633 = vadd.f32 %v2632, %v2312
    %v2634 = vadd.f32 %v2633, %v2317
    %v2635 = vadd.f32 %v2634, %v2322
    %v2636 = vadd.f32 %v2635, %v2327
    %v2637 = vadd.f32 %v2636, %v2332
    %v2638 = vadd.f32 %v2637, %v2337
    %v2639 = vadd.f32 %v2638, %v2342
    %v2640 = vadd.f32 %v2639, %v2347
    %v2641 = vadd.f32 %v2640, %v2352
    %v2642 = vadd.f32 %v2641, %v2357
    %v2643 = vadd.f32 %v2642, %v2362
    %v2644 = vadd.f32 %v2643, %v2367
    %v2645 = vadd.f32 %v2644, %v2372
    %v2646 = vadd.f32 %v2645, %v2377
    %v2647 = vadd.f32 %v2646, %v2382
    %v2648 = vadd.f32 %v2647, %v2387
    %v2649 = vadd.f32 %v2648, %v2392
    %v2650 = vrot.slane %v2649, 4
    %v2651 = vadd.f32 %v2649, %v2650
    %v2652 = vrot.slane %v2651, 2
    %v2653 = vadd.f32 %v2651, %v2652
    %v2654 = vrot.slane %v2653, 1
    %v2655 = vadd.f32 %v2653, %v2654
    %v2656 = vrcp.pop 2048.0
    %v2657 = vmul.f32 %v2655, %v2656
    %v2658 = vsub.f32 %v1117, %v2657
    %v2659 = vsub.f32 %v1122, %v2657
    %v2660 = vsub.f32 %v1127, %v2657
    %v2661 = vsub.f32 %v1132, %v2657
    %v2662 = vsub.f32 %v1137, %v2657
    %v2663 = vsub.f32 %v1142, %v2657
    %v2664 = vsub.f32 %v1147, %v2657
    %v2665 = vsub.f32 %v1152, %v2657
    %v2666 = vsub.f32 %v1157, %v2657
    %v2667 = vsub.f32 %v1162, %v2657
    %v2668 = vsub.f32 %v1167, %v2657
    %v2669 = vsub.f32 %v1172, %v2657
    %v2670 = vsub.f32 %v1177, %v2657
    %v2671 = vsub.f32 %v1182, %v2657
    %v2672 = vsub.f32 %v1187, %v2657
    %v2673 = vsub.f32 %v1192, %v2657
    %v2674 = vsub.f32 %v1197, %v2657
    %v2675 = vsub.f32 %v1202, %v2657
    %v2676 = vsub.f32 %v1207, %v2657
    %v2677 = vsub.f32 %v1212, %v2657
    %v2678 = vsub.f32 %v1217, %v2657
    %v2679 = vsub.f32 %v1222, %v2657
    %v2680 = vsub.f32 %v1227, %v2657
    %v2681 = vsub.f32 %v1232, %v2657
    %v2682 = vsub.f32 %v1237, %v2657
    %v2683 = vsub.f32 %v1242, %v2657
    %v2684 = vsub.f32 %v1247, %v2657
    %v2685 = vsub.f32 %v1252, %v2657
    %v2686 = vsub.f32 %v1257, %v2657
    %v2687 = vsub.f32 %v1262, %v2657
    %v2688 = vsub.f32 %v1267, %v2657
    %v2689 = vsub.f32 %v1272, %v2657
    %v2690 = vsub.f32 %v1277, %v2657
    %v2691 = vsub.f32 %v1282, %v2657
    %v2692 = vsub.f32 %v1287, %v2657
    %v2693 = vsub.f32 %v1292, %v2657
    %v2694 = vsub.f32 %v1297, %v2657
    %v2695 = vsub.f32 %v1302, %v2657
    %v2696 = vsub.f32 %v1307, %v2657
    %v2697 = vsub.f32 %v1312, %v2657
    %v2698 = vsub.f32 %v1317, %v2657
    %v2699 = vsub.f32 %v1322, %v2657
    %v2700 = vsub.f32 %v1327, %v2657
    %v2701 = vsub.f32 %v1332, %v2657
    %v2702 = vsub.f32 %v1337, %v2657
    %v2703 = vsub.f32 %v1342, %v2657
    %v2704 = vsub.f32 %v1347, %v2657
    %v2705 = vsub.f32 %v1352, %v2657
    %v2706 = vsub.f32 %v1357, %v2657
    %v2707 = vsub.f32 %v1362, %v2657
    %v2708 = vsub.f32 %v1367, %v2657
    %v2709 = vsub.f32 %v1372, %v2657
    %v2710 = vsub.f32 %v1377, %v2657
    %v2711 = vsub.f32 %v1382, %v2657
    %v2712 = vsub.f32 %v1387, %v2657
    %v2713 = vsub.f32 %v1392, %v2657
    %v2714 = vsub.f32 %v1397, %v2657
    %v2715 = vsub.f32 %v1402, %v2657
    %v2716 = vsub.f32 %v1407, %v2657
    %v2717 = vsub.f32 %v1412, %v2657
    %v2718 = vsub.f32 %v1417, %v2657
    %v2719 = vsub.f32 %v1422, %v2657
    %v2720 = vsub.f32 %v1427, %v2657
    %v2721 = vsub.f32 %v1432, %v2657
    %v2722 = vsub.f32 %v1437, %v2657
    %v2723 = vsub.f32 %v1442, %v2657
    %v2724 = vsub.f32 %v1447, %v2657
    %v2725 = vsub.f32 %v1452, %v2657
    %v2726 = vsub.f32 %v1457, %v2657
    %v2727 = vsub.f32 %v1462, %v2657
    %v2728 = vsub.f32 %v1467, %v2657
    %v2729 = vsub.f32 %v1472, %v2657
    %v2730 = vsub.f32 %v1477, %v2657
    %v2731 = vsub.f32 %v1482, %v2657
    %v2732 = vsub.f32 %v1487, %v2657
    %v2733 = vsub.f32 %v1492, %v2657
    %v2734 = vsub.f32 %v1497, %v2657
    %v2735 = vsub.f32 %v1502, %v2657
    %v2736 = vsub.f32 %v1507, %v2657
    %v2737 = vsub.f32 %v1512, %v2657
    %v2738 = vsub.f32 %v1517, %v2657
    %v2739 = vsub.f32 %v1522, %v2657
    %v2740 = vsub.f32 %v1527, %v2657
    %v2741 = vsub.f32 %v1532, %v2657
    %v2742 = vsub.f32 %v1537, %v2657
    %v2743 = vsub.f32 %v1542, %v2657
    %v2744 = vsub.f32 %v1547, %v2657
    %v2745 = vsub.f32 %v1552, %v2657
    %v2746 = vsub.f32 %v1557, %v2657
    %v2747 = vsub.f32 %v1562, %v2657
    %v2748 = vsub.f32 %v1567, %v2657
    %v2749 = vsub.f32 %v1572, %v2657
    %v2750 = vsub.f32 %v1577, %v2657
    %v2751 = vsub.f32 %v1582, %v2657
    %v2752 = vsub.f32 %v1587, %v2657
    %v2753 = vsub.f32 %v1592, %v2657
    %v2754 = vsub.f32 %v1597, %v2657
    %v2755 = vsub.f32 %v1602, %v2657
    %v2756 = vsub.f32 %v1607, %v2657
    %v2757 = vsub.f32 %v1612, %v2657
    %v2758 = vsub.f32 %v1617, %v2657
    %v2759 = vsub.f32 %v1622, %v2657
    %v2760 = vsub.f32 %v1627, %v2657
    %v2761 = vsub.f32 %v1632, %v2657
    %v2762 = vsub.f32 %v1637, %v2657
    %v2763 = vsub.f32 %v1642, %v2657
    %v2764 = vsub.f32 %v1647, %v2657
    %v2765 = vsub.f32 %v1652, %v2657
    %v2766 = vsub.f32 %v1657, %v2657
    %v2767 = vsub.f32 %v1662, %v2657
    %v2768 = vsub.f32 %v1667, %v2657
    %v2769 = vsub.f32 %v1672, %v2657
    %v2770 = vsub.f32 %v1677, %v2657
    %v2771 = vsub.f32 %v1682, %v2657
    %v2772 = vsub.f32 %v1687, %v2657
    %v2773 = vsub.f32 %v1692, %v2657
    %v2774 = vsub.f32 %v1697, %v2657
    %v2775 = vsub.f32 %v1702, %v2657
    %v2776 = vsub.f32 %v1707, %v2657
    %v2777 = vsub.f32 %v1712, %v2657
    %v2778 = vsub.f32 %v1717, %v2657
    %v2779 = vsub.f32 %v1722, %v2657
    %v2780 = vsub.f32 %v1727, %v2657
    %v2781 = vsub.f32 %v1732, %v2657
    %v2782 = vsub.f32 %v1737, %v2657
    %v2783 = vsub.f32 %v1742, %v2657
    %v2784 = vsub.f32 %v1747, %v2657
    %v2785 = vsub.f32 %v1752, %v2657
    %v2786 = vsub.f32 %v1757, %v2657
    %v2787 = vsub.f32 %v1762, %v2657
    %v2788 = vsub.f32 %v1767, %v2657
    %v2789 = vsub.f32 %v1772, %v2657
    %v2790 = vsub.f32 %v1777, %v2657
    %v2791 = vsub.f32 %v1782, %v2657
    %v2792 = vsub.f32 %v1787, %v2657
    %v2793 = vsub.f32 %v1792, %v2657
    %v2794 = vsub.f32 %v1797, %v2657
    %v2795 = vsub.f32 %v1802, %v2657
    %v2796 = vsub.f32 %v1807, %v2657
    %v2797 = vsub.f32 %v1812, %v2657
    %v2798 = vsub.f32 %v1817, %v2657
    %v2799 = vsub.f32 %v1822, %v2657
    %v2800 = vsub.f32 %v1827, %v2657
    %v2801 = vsub.f32 %v1832, %v2657
    %v2802 = vsub.f32 %v1837, %v2657
    %v2803 = vsub.f32 %v1842, %v2657
    %v2804 = vsub.f32 %v1847, %v2657
    %v2805 = vsub.f32 %v1852, %v2657
    %v2806 = vsub.f32 %v1857, %v2657
    %v2807 = vsub.f32 %v1862, %v2657
    %v2808 = vsub.f32 %v1867, %v2657
    %v2809 = vsub.f32 %v1872, %v2657
    %v2810 = vsub.f32 %v1877, %v2657
    %v2811 = vsub.f32 %v1882, %v2657
    %v2812 = vsub.f32 %v1887, %v2657
    %v2813 = vsub.f32 %v1892, %v2657
    %v2814 = vsub.f32 %v1897, %v2657
    %v2815 = vsub.f32 %v1902, %v2657
    %v2816 = vsub.f32 %v1907, %v2657
    %v2817 = vsub.f32 %v1912, %v2657
    %v2818 = vsub.f32 %v1917, %v2657
    %v2819 = vsub.f32 %v1922, %v2657
    %v2820 = vsub.f32 %v1927, %v2657
    %v2821 = vsub.f32 %v1932, %v2657
    %v2822 = vsub.f32 %v1937, %v2657
    %v2823 = vsub.f32 %v1942, %v2657
    %v2824 = vsub.f32 %v1947, %v2657
    %v2825 = vsub.f32 %v1952, %v2657
    %v2826 = vsub.f32 %v1957, %v2657
    %v2827 = vsub.f32 %v1962, %v2657
    %v2828 = vsub.f32 %v1967, %v2657
    %v2829 = vsub.f32 %v1972, %v2657
    %v2830 = vsub.f32 %v1977, %v2657
    %v2831 = vsub.f32 %v1982, %v2657
    %v2832 = vsub.f32 %v1987, %v2657
    %v2833 = vsub.f32 %v1992, %v2657
    %v2834 = vsub.f32 %v1997, %v2657
    %v2835 = vsub.f32 %v2002, %v2657
    %v2836 = vsub.f32 %v2007, %v2657
    %v2837 = vsub.f32 %v2012, %v2657
    %v2838 = vsub.f32 %v2017, %v2657
    %v2839 = vsub.f32 %v2022, %v2657
    %v2840 = vsub.f32 %v2027, %v2657
    %v2841 = vsub.f32 %v2032, %v2657
    %v2842 = vsub.f32 %v2037, %v2657
    %v2843 = vsub.f32 %v2042, %v2657
    %v2844 = vsub.f32 %v2047, %v2657
    %v2845 = vsub.f32 %v2052, %v2657
    %v2846 = vsub.f32 %v2057, %v2657
    %v2847 = vsub.f32 %v2062, %v2657
    %v2848 = vsub.f32 %v2067, %v2657
    %v2849 = vsub.f32 %v2072, %v2657
    %v2850 = vsub.f32 %v2077, %v2657
    %v2851 = vsub.f32 %v2082, %v2657
    %v2852 = vsub.f32 %v2087, %v2657
    %v2853 = vsub.f32 %v2092, %v2657
    %v2854 = vsub.f32 %v2097, %v2657
    %v2855 = vsub.f32 %v2102, %v2657
    %v2856 = vsub.f32 %v2107, %v2657
    %v2857 = vsub.f32 %v2112, %v2657
    %v2858 = vsub.f32 %v2117, %v2657
    %v2859 = vsub.f32 %v2122, %v2657
    %v2860 = vsub.f32 %v2127, %v2657
    %v2861 = vsub.f32 %v2132, %v2657
    %v2862 = vsub.f32 %v2137, %v2657
    %v2863 = vsub.f32 %v2142, %v2657
    %v2864 = vsub.f32 %v2147, %v2657
    %v2865 = vsub.f32 %v2152, %v2657
    %v2866 = vsub.f32 %v2157, %v2657
    %v2867 = vsub.f32 %v2162, %v2657
    %v2868 = vsub.f32 %v2167, %v2657
    %v2869 = vsub.f32 %v2172, %v2657
    %v2870 = vsub.f32 %v2177, %v2657
    %v2871 = vsub.f32 %v2182, %v2657
    %v2872 = vsub.f32 %v2187, %v2657
    %v2873 = vsub.f32 %v2192, %v2657
    %v2874 = vsub.f32 %v2197, %v2657
    %v2875 = vsub.f32 %v2202, %v2657
    %v2876 = vsub.f32 %v2207, %v2657
    %v2877 = vsub.f32 %v2212, %v2657
    %v2878 = vsub.f32 %v2217, %v2657
    %v2879 = vsub.f32 %v2222, %v2657
    %v2880 = vsub.f32 %v2227, %v2657
    %v2881 = vsub.f32 %v2232, %v2657
    %v2882 = vsub.f32 %v2237, %v2657
    %v2883 = vsub.f32 %v2242, %v2657
    %v2884 = vsub.f32 %v2247, %v2657
    %v2885 = vsub.f32 %v2252, %v2657
    %v2886 = vsub.f32 %v2257, %v2657
    %v2887 = vsub.f32 %v2262, %v2657
    %v2888 = vsub.f32 %v2267, %v2657
    %v2889 = vsub.f32 %v2272, %v2657
    %v2890 = vsub.f32 %v2277, %v2657
    %v2891 = vsub.f32 %v2282, %v2657
    %v2892 = vsub.f32 %v2287, %v2657
    %v2893 = vsub.f32 %v2292, %v2657
    %v2894 = vsub.f32 %v2297, %v2657
    %v2895 = vsub.f32 %v2302, %v2657
    %v2896 = vsub.f32 %v2307, %v2657
    %v2897 = vsub.f32 %v2312, %v2657
    %v2898 = vsub.f32 %v2317, %v2657
    %v2899 = vsub.f32 %v2322, %v2657
    %v2900 = vsub.f32 %v2327, %v2657
    %v2901 = vsub.f32 %v2332, %v2657
    %v2902 = vsub.f32 %v2337, %v2657
    %v2903 = vsub.f32 %v2342, %v2657
    %v2904 = vsub.f32 %v2347, %v2657
    %v2905 = vsub.f32 %v2352, %v2657
    %v2906 = vsub.f32 %v2357, %v2657
    %v2907 = vsub.f32 %v2362, %v2657
    %v2908 = vsub.f32 %v2367, %v2657
    %v2909 = vsub.f32 %v2372, %v2657
    %v2910 = vsub.f32 %v2377, %v2657
    %v2911 = vsub.f32 %v2382, %v2657
    %v2912 = vsub.f32 %v2387, %v2657
    %v2913 = vsub.f32 %v2392, %v2657
    %v2914 = vmul.f32 %v2658, %v2658
    %v2915 = vmul.f32 %v2659, %v2659
    %v2916 = vmul.f32 %v2660, %v2660
    %v2917 = vmul.f32 %v2661, %v2661
    %v2918 = vmul.f32 %v2662, %v2662
    %v2919 = vmul.f32 %v2663, %v2663
    %v2920 = vmul.f32 %v2664, %v2664
    %v2921 = vmul.f32 %v2665, %v2665
    %v2922 = vmul.f32 %v2666, %v2666
    %v2923 = vmul.f32 %v2667, %v2667
    %v2924 = vmul.f32 %v2668, %v2668
    %v2925 = vmul.f32 %v2669, %v2669
    %v2926 = vmul.f32 %v2670, %v2670
    %v2927 = vmul.f32 %v2671, %v2671
    %v2928 = vmul.f32 %v2672, %v2672
    %v2929 = vmul.f32 %v2673, %v2673
    %v2930 = vmul.f32 %v2674, %v2674
    %v2931 = vmul.f32 %v2675, %v2675
    %v2932 = vmul.f32 %v2676, %v2676
    %v2933 = vmul.f32 %v2677, %v2677
    %v2934 = vmul.f32 %v2678, %v2678
    %v2935 = vmul.f32 %v2679, %v2679
    %v2936 = vmul.f32 %v2680, %v2680
    %v2937 = vmul.f32 %v2681, %v2681
    %v2938 = vmul.f32 %v2682, %v2682
    %v2939 = vmul.f32 %v2683, %v2683
    %v2940 = vmul.f32 %v2684, %v2684
    %v2941 = vmul.f32 %v2685, %v2685
    %v2942 = vmul.f32 %v2686, %v2686
    %v2943 = vmul.f32 %v2687, %v2687
    %v2944 = vmul.f32 %v2688, %v2688
    %v2945 = vmul.f32 %v2689, %v2689
    %v2946 = vmul.f32 %v2690, %v2690
    %v2947 = vmul.f32 %v2691, %v2691
    %v2948 = vmul.f32 %v2692, %v2692
    %v2949 = vmul.f32 %v2693, %v2693
    %v2950 = vmul.f32 %v2694, %v2694
    %v2951 = vmul.f32 %v2695, %v2695
    %v2952 = vmul.f32 %v2696, %v2696
    %v2953 = vmul.f32 %v2697, %v2697
    %v2954 = vmul.f32 %v2698, %v2698
    %v2955 = vmul.f32 %v2699, %v2699
    %v2956 = vmul.f32 %v2700, %v2700
    %v2957 = vmul.f32 %v2701, %v2701
    %v2958 = vmul.f32 %v2702, %v2702
    %v2959 = vmul.f32 %v2703, %v2703
    %v2960 = vmul.f32 %v2704, %v2704
    %v2961 = vmul.f32 %v2705, %v2705
    %v2962 = vmul.f32 %v2706, %v2706
    %v2963 = vmul.f32 %v2707, %v2707
    %v2964 = vmul.f32 %v2708, %v2708
    %v2965 = vmul.f32 %v2709, %v2709
    %v2966 = vmul.f32 %v2710, %v2710
    %v2967 = vmul.f32 %v2711, %v2711
    %v2968 = vmul.f32 %v2712, %v2712
    %v2969 = vmul.f32 %v2713, %v2713
    %v2970 = vmul.f32 %v2714, %v2714
    %v2971 = vmul.f32 %v2715, %v2715
    %v2972 = vmul.f32 %v2716, %v2716
    %v2973 = vmul.f32 %v2717, %v2717
    %v2974 = vmul.f32 %v2718, %v2718
    %v2975 = vmul.f32 %v2719, %v2719
    %v2976 = vmul.f32 %v2720, %v2720
    %v2977 = vmul.f32 %v2721, %v2721
    %v2978 = vmul.f32 %v2722, %v2722
    %v2979 = vmul.f32 %v2723, %v2723
    %v2980 = vmul.f32 %v2724, %v2724
    %v2981 = vmul.f32 %v2725, %v2725
    %v2982 = vmul.f32 %v2726, %v2726
    %v2983 = vmul.f32 %v2727, %v2727
    %v2984 = vmul.f32 %v2728, %v2728
    %v2985 = vmul.f32 %v2729, %v2729
    %v2986 = vmul.f32 %v2730, %v2730
    %v2987 = vmul.f32 %v2731, %v2731
    %v2988 = vmul.f32 %v2732, %v2732
    %v2989 = vmul.f32 %v2733, %v2733
    %v2990 = vmul.f32 %v2734, %v2734
    %v2991 = vmul.f32 %v2735, %v2735
    %v2992 = vmul.f32 %v2736, %v2736
    %v2993 = vmul.f32 %v2737, %v2737
    %v2994 = vmul.f32 %v2738, %v2738
    %v2995 = vmul.f32 %v2739, %v2739
    %v2996 = vmul.f32 %v2740, %v2740
    %v2997 = vmul.f32 %v2741, %v2741
    %v2998 = vmul.f32 %v2742, %v2742
    %v2999 = vmul.f32 %v2743, %v2743
    %v3000 = vmul.f32 %v2744, %v2744
    %v3001 = vmul.f32 %v2745, %v2745
    %v3002 = vmul.f32 %v2746, %v2746
    %v3003 = vmul.f32 %v2747, %v2747
    %v3004 = vmul.f32 %v2748, %v2748
    %v3005 = vmul.f32 %v2749, %v2749
    %v3006 = vmul.f32 %v2750, %v2750
    %v3007 = vmul.f32 %v2751, %v2751
    %v3008 = vmul.f32 %v2752, %v2752
    %v3009 = vmul.f32 %v2753, %v2753
    %v3010 = vmul.f32 %v2754, %v2754
    %v3011 = vmul.f32 %v2755, %v2755
    %v3012 = vmul.f32 %v2756, %v2756
    %v3013 = vmul.f32 %v2757, %v2757
    %v3014 = vmul.f32 %v2758, %v2758
    %v3015 = vmul.f32 %v2759, %v2759
    %v3016 = vmul.f32 %v2760, %v2760
    %v3017 = vmul.f32 %v2761, %v2761
    %v3018 = vmul.f32 %v2762, %v2762
    %v3019 = vmul.f32 %v2763, %v2763
    %v3020 = vmul.f32 %v2764, %v2764
    %v3021 = vmul.f32 %v2765, %v2765
    %v3022 = vmul.f32 %v2766, %v2766
    %v3023 = vmul.f32 %v2767, %v2767
    %v3024 = vmul.f32 %v2768, %v2768
    %v3025 = vmul.f32 %v2769, %v2769
    %v3026 = vmul.f32 %v2770, %v2770
    %v3027 = vmul.f32 %v2771, %v2771
    %v3028 = vmul.f32 %v2772, %v2772
    %v3029 = vmul.f32 %v2773, %v2773
    %v3030 = vmul.f32 %v2774, %v2774
    %v3031 = vmul.f32 %v2775, %v2775
    %v3032 = vmul.f32 %v2776, %v2776
    %v3033 = vmul.f32 %v2777, %v2777
    %v3034 = vmul.f32 %v2778, %v2778
    %v3035 = vmul.f32 %v2779, %v2779
    %v3036 = vmul.f32 %v2780, %v2780
    %v3037 = vmul.f32 %v2781, %v2781
    %v3038 = vmul.f32 %v2782, %v2782
    %v3039 = vmul.f32 %v2783, %v2783
    %v3040 = vmul.f32 %v2784, %v2784
    %v3041 = vmul.f32 %v2785, %v2785
    %v3042 = vmul.f32 %v2786, %v2786
    %v3043 = vmul.f32 %v2787, %v2787
    %v3044 = vmul.f32 %v2788, %v2788
    %v3045 = vmul.f32 %v2789, %v2789
    %v3046 = vmul.f32 %v2790, %v2790
    %v3047 = vmul.f32 %v2791, %v2791
    %v3048 = vmul.f32 %v2792, %v2792
    %v3049 = vmul.f32 %v2793, %v2793
    %v3050 = vmul.f32 %v2794, %v2794
    %v3051 = vmul.f32 %v2795, %v2795
    %v3052 = vmul.f32 %v2796, %v2796
    %v3053 = vmul.f32 %v2797, %v2797
    %v3054 = vmul.f32 %v2798, %v2798
    %v3055 = vmul.f32 %v2799, %v2799
    %v3056 = vmul.f32 %v2800, %v2800
    %v3057 = vmul.f32 %v2801, %v2801
    %v3058 = vmul.f32 %v2802, %v2802
    %v3059 = vmul.f32 %v2803, %v2803
    %v3060 = vmul.f32 %v2804, %v2804
    %v3061 = vmul.f32 %v2805, %v2805
    %v3062 = vmul.f32 %v2806, %v2806
    %v3063 = vmul.f32 %v2807, %v2807
    %v3064 = vmul.f32 %v2808, %v2808
    %v3065 = vmul.f32 %v2809, %v2809
    %v3066 = vmul.f32 %v2810, %v2810
    %v3067 = vmul.f32 %v2811, %v2811
    %v3068 = vmul.f32 %v2812, %v2812
    %v3069 = vmul.f32 %v2813, %v2813
    %v3070 = vmul.f32 %v2814, %v2814
    %v3071 = vmul.f32 %v2815, %v2815
    %v3072 = vmul.f32 %v2816, %v2816
    %v3073 = vmul.f32 %v2817, %v2817
    %v3074 = vmul.f32 %v2818, %v2818
    %v3075 = vmul.f32 %v2819, %v2819
    %v3076 = vmul.f32 %v2820, %v2820
    %v3077 = vmul.f32 %v2821, %v2821
    %v3078 = vmul.f32 %v2822, %v2822
    %v3079 = vmul.f32 %v2823, %v2823
    %v3080 = vmul.f32 %v2824, %v2824
    %v3081 = vmul.f32 %v2825, %v2825
    %v3082 = vmul.f32 %v2826, %v2826
    %v3083 = vmul.f32 %v2827, %v2827
    %v3084 = vmul.f32 %v2828, %v2828
    %v3085 = vmul.f32 %v2829, %v2829
    %v3086 = vmul.f32 %v2830, %v2830
    %v3087 = vmul.f32 %v2831, %v2831
    %v3088 = vmul.f32 %v2832, %v2832
    %v3089 = vmul.f32 %v2833, %v2833
    %v3090 = vmul.f32 %v2834, %v2834
    %v3091 = vmul.f32 %v2835, %v2835
    %v3092 = vmul.f32 %v2836, %v2836
    %v3093 = vmul.f32 %v2837, %v2837
    %v3094 = vmul.f32 %v2838, %v2838
    %v3095 = vmul.f32 %v2839, %v2839
    %v3096 = vmul.f32 %v2840, %v2840
    %v3097 = vmul.f32 %v2841, %v2841
    %v3098 = vmul.f32 %v2842, %v2842
    %v3099 = vmul.f32 %v2843, %v2843
    %v3100 = vmul.f32 %v2844, %v2844
    %v3101 = vmul.f32 %v2845, %v2845
    %v3102 = vmul.f32 %v2846, %v2846
    %v3103 = vmul.f32 %v2847, %v2847
    %v3104 = vmul.f32 %v2848, %v2848
    %v3105 = vmul.f32 %v2849, %v2849
    %v3106 = vmul.f32 %v2850, %v2850
    %v3107 = vmul.f32 %v2851, %v2851
    %v3108 = vmul.f32 %v2852, %v2852
    %v3109 = vmul.f32 %v2853, %v2853
    %v3110 = vmul.f32 %v2854, %v2854
    %v3111 = vmul.f32 %v2855, %v2855
    %v3112 = vmul.f32 %v2856, %v2856
    %v3113 = vmul.f32 %v2857, %v2857
    %v3114 = vmul.f32 %v2858, %v2858
    %v3115 = vmul.f32 %v2859, %v2859
    %v3116 = vmul.f32 %v2860, %v2860
    %v3117 = vmul.f32 %v2861, %v2861
    %v3118 = vmul.f32 %v2862, %v2862
    %v3119 = vmul.f32 %v2863, %v2863
    %v3120 = vmul.f32 %v2864, %v2864
    %v3121 = vmul.f32 %v2865, %v2865
    %v3122 = vmul.f32 %v2866, %v2866
    %v3123 = vmul.f32 %v2867, %v2867
    %v3124 = vmul.f32 %v2868, %v2868
    %v3125 = vmul.f32 %v2869, %v2869
    %v3126 = vmul.f32 %v2870, %v2870
    %v3127 = vmul.f32 %v2871, %v2871
    %v3128 = vmul.f32 %v2872, %v2872
    %v3129 = vmul.f32 %v2873, %v2873
    %v3130 = vmul.f32 %v2874, %v2874
    %v3131 = vmul.f32 %v2875, %v2875
    %v3132 = vmul.f32 %v2876, %v2876
    %v3133 = vmul.f32 %v2877, %v2877
    %v3134 = vmul.f32 %v2878, %v2878
    %v3135 = vmul.f32 %v2879, %v2879
    %v3136 = vmul.f32 %v2880, %v2880
    %v3137 = vmul.f32 %v2881, %v2881
    %v3138 = vmul.f32 %v2882, %v2882
    %v3139 = vmul.f32 %v2883, %v2883
    %v3140 = vmul.f32 %v2884, %v2884
    %v3141 = vmul.f32 %v2885, %v2885
    %v3142 = vmul.f32 %v2886, %v2886
    %v3143 = vmul.f32 %v2887, %v2887
    %v3144 = vmul.f32 %v2888, %v2888
    %v3145 = vmul.f32 %v2889, %v2889
    %v3146 = vmul.f32 %v2890, %v2890
    %v3147 = vmul.f32 %v2891, %v2891
    %v3148 = vmul.f32 %v2892, %v2892
    %v3149 = vmul.f32 %v2893, %v2893
    %v3150 = vmul.f32 %v2894, %v2894
    %v3151 = vmul.f32 %v2895, %v2895
    %v3152 = vmul.f32 %v2896, %v2896
    %v3153 = vmul.f32 %v2897, %v2897
    %v3154 = vmul.f32 %v2898, %v2898
    %v3155 = vmul.f32 %v2899, %v2899
    %v3156 = vmul.f32 %v2900, %v2900
    %v3157 = vmul.f32 %v2901, %v2901
    %v3158 = vmul.f32 %v2902, %v2902
    %v3159 = vmul.f32 %v2903, %v2903
    %v3160 = vmul.f32 %v2904, %v2904
    %v3161 = vmul.f32 %v2905, %v2905
    %v3162 = vmul.f32 %v2906, %v2906
    %v3163 = vmul.f32 %v2907, %v2907
    %v3164 = vmul.f32 %v2908, %v2908
    %v3165 = vmul.f32 %v2909, %v2909
    %v3166 = vmul.f32 %v2910, %v2910
    %v3167 = vmul.f32 %v2911, %v2911
    %v3168 = vmul.f32 %v2912, %v2912
    %v3169 = vmul.f32 %v2913, %v2913
    %v3170 = vadd.f32 %v2914, %v2915
    %v3171 = vadd.f32 %v3170, %v2916
    %v3172 = vadd.f32 %v3171, %v2917
    %v3173 = vadd.f32 %v3172, %v2918
    %v3174 = vadd.f32 %v3173, %v2919
    %v3175 = vadd.f32 %v3174, %v2920
    %v3176 = vadd.f32 %v3175, %v2921
    %v3177 = vadd.f32 %v3176, %v2922
    %v3178 = vadd.f32 %v3177, %v2923
    %v3179 = vadd.f32 %v3178, %v2924
    %v3180 = vadd.f32 %v3179, %v2925
    %v3181 = vadd.f32 %v3180, %v2926
    %v3182 = vadd.f32 %v3181, %v2927
    %v3183 = vadd.f32 %v3182, %v2928
    %v3184 = vadd.f32 %v3183, %v2929
    %v3185 = vadd.f32 %v3184, %v2930
    %v3186 = vadd.f32 %v3185, %v2931
    %v3187 = vadd.f32 %v3186, %v2932
    %v3188 = vadd.f32 %v3187, %v2933
    %v3189 = vadd.f32 %v3188, %v2934
    %v3190 = vadd.f32 %v3189, %v2935
    %v3191 = vadd.f32 %v3190, %v2936
    %v3192 = vadd.f32 %v3191, %v2937
    %v3193 = vadd.f32 %v3192, %v2938
    %v3194 = vadd.f32 %v3193, %v2939
    %v3195 = vadd.f32 %v3194, %v2940
    %v3196 = vadd.f32 %v3195, %v2941
    %v3197 = vadd.f32 %v3196, %v2942
    %v3198 = vadd.f32 %v3197, %v2943
    %v3199 = vadd.f32 %v3198, %v2944
    %v3200 = vadd.f32 %v3199, %v2945
    %v3201 = vadd.f32 %v3200, %v2946
    %v3202 = vadd.f32 %v3201, %v2947
    %v3203 = vadd.f32 %v3202, %v2948
    %v3204 = vadd.f32 %v3203, %v2949
    %v3205 = vadd.f32 %v3204, %v2950
    %v3206 = vadd.f32 %v3205, %v2951
    %v3207 = vadd.f32 %v3206, %v2952
    %v3208 = vadd.f32 %v3207, %v2953
    %v3209 = vadd.f32 %v3208, %v2954
    %v3210 = vadd.f32 %v3209, %v2955
    %v3211 = vadd.f32 %v3210, %v2956
    %v3212 = vadd.f32 %v3211, %v2957
    %v3213 = vadd.f32 %v3212, %v2958
    %v3214 = vadd.f32 %v3213, %v2959
    %v3215 = vadd.f32 %v3214, %v2960
    %v3216 = vadd.f32 %v3215, %v2961
    %v3217 = vadd.f32 %v3216, %v2962
    %v3218 = vadd.f32 %v3217, %v2963
    %v3219 = vadd.f32 %v3218, %v2964
    %v3220 = vadd.f32 %v3219, %v2965
    %v3221 = vadd.f32 %v3220, %v2966
    %v3222 = vadd.f32 %v3221, %v2967
    %v3223 = vadd.f32 %v3222, %v2968
    %v3224 = vadd.f32 %v3223, %v2969
    %v3225 = vadd.f32 %v3224, %v2970
    %v3226 = vadd.f32 %v3225, %v2971
    %v3227 = vadd.f32 %v3226, %v2972
    %v3228 = vadd.f32 %v3227, %v2973
    %v3229 = vadd.f32 %v3228, %v2974
    %v3230 = vadd.f32 %v3229, %v2975
    %v3231 = vadd.f32 %v3230, %v2976
    %v3232 = vadd.f32 %v3231, %v2977
    %v3233 = vadd.f32 %v3232, %v2978
    %v3234 = vadd.f32 %v3233, %v2979
    %v3235 = vadd.f32 %v3234, %v2980
    %v3236 = vadd.f32 %v3235, %v2981
    %v3237 = vadd.f32 %v3236, %v2982
    %v3238 = vadd.f32 %v3237, %v2983
    %v3239 = vadd.f32 %v3238, %v2984
    %v3240 = vadd.f32 %v3239, %v2985
    %v3241 = vadd.f32 %v3240, %v2986
    %v3242 = vadd.f32 %v3241, %v2987
    %v3243 = vadd.f32 %v3242, %v2988
    %v3244 = vadd.f32 %v3243, %v2989
    %v3245 = vadd.f32 %v3244, %v2990
    %v3246 = vadd.f32 %v3245, %v2991
    %v3247 = vadd.f32 %v3246, %v2992
    %v3248 = vadd.f32 %v3247, %v2993
    %v3249 = vadd.f32 %v3248, %v2994
    %v3250 = vadd.f32 %v3249, %v2995
    %v3251 = vadd.f32 %v3250, %v2996
    %v3252 = vadd.f32 %v3251, %v2997
    %v3253 = vadd.f32 %v3252, %v2998
    %v3254 = vadd.f32 %v3253, %v2999
    %v3255 = vadd.f32 %v3254, %v3000
    %v3256 = vadd.f32 %v3255, %v3001
    %v3257 = vadd.f32 %v3256, %v3002
    %v3258 = vadd.f32 %v3257, %v3003
    %v3259 = vadd.f32 %v3258, %v3004
    %v3260 = vadd.f32 %v3259, %v3005
    %v3261 = vadd.f32 %v3260, %v3006
    %v3262 = vadd.f32 %v3261, %v3007
    %v3263 = vadd.f32 %v3262, %v3008
    %v3264 = vadd.f32 %v3263, %v3009
    %v3265 = vadd.f32 %v3264, %v3010
    %v3266 = vadd.f32 %v3265, %v3011
    %v3267 = vadd.f32 %v3266, %v3012
    %v3268 = vadd.f32 %v3267, %v3013
    %v3269 = vadd.f32 %v3268, %v3014
    %v3270 = vadd.f32 %v3269, %v3015
    %v3271 = vadd.f32 %v3270, %v3016
    %v3272 = vadd.f32 %v3271, %v3017
    %v3273 = vadd.f32 %v3272, %v3018
    %v3274 = vadd.f32 %v3273, %v3019
    %v3275 = vadd.f32 %v3274, %v3020
    %v3276 = vadd.f32 %v3275, %v3021
    %v3277 = vadd.f32 %v3276, %v3022
    %v3278 = vadd.f32 %v3277, %v3023
    %v3279 = vadd.f32 %v3278, %v3024
    %v3280 = vadd.f32 %v3279, %v3025
    %v3281 = vadd.f32 %v3280, %v3026
    %v3282 = vadd.f32 %v3281, %v3027
    %v3283 = vadd.f32 %v3282, %v3028
    %v3284 = vadd.f32 %v3283, %v3029
    %v3285 = vadd.f32 %v3284, %v3030
    %v3286 = vadd.f32 %v3285, %v3031
    %v3287 = vadd.f32 %v3286, %v3032
    %v3288 = vadd.f32 %v3287, %v3033
    %v3289 = vadd.f32 %v3288, %v3034
    %v3290 = vadd.f32 %v3289, %v3035
    %v3291 = vadd.f32 %v3290, %v3036
    %v3292 = vadd.f32 %v3291, %v3037
    %v3293 = vadd.f32 %v3292, %v3038
    %v3294 = vadd.f32 %v3293, %v3039
    %v3295 = vadd.f32 %v3294, %v3040
    %v3296 = vadd.f32 %v3295, %v3041
    %v3297 = vadd.f32 %v3296, %v3042
    %v3298 = vadd.f32 %v3297, %v3043
    %v3299 = vadd.f32 %v3298, %v3044
    %v3300 = vadd.f32 %v3299, %v3045
    %v3301 = vadd.f32 %v3300, %v3046
    %v3302 = vadd.f32 %v3301, %v3047
    %v3303 = vadd.f32 %v3302, %v3048
    %v3304 = vadd.f32 %v3303, %v3049
    %v3305 = vadd.f32 %v3304, %v3050
    %v3306 = vadd.f32 %v3305, %v3051
    %v3307 = vadd.f32 %v3306, %v3052
    %v3308 = vadd.f32 %v3307, %v3053
    %v3309 = vadd.f32 %v3308, %v3054
    %v3310 = vadd.f32 %v3309, %v3055
    %v3311 = vadd.f32 %v3310, %v3056
    %v3312 = vadd.f32 %v3311, %v3057
    %v3313 = vadd.f32 %v3312, %v3058
    %v3314 = vadd.f32 %v3313, %v3059
    %v3315 = vadd.f32 %v3314, %v3060
    %v3316 = vadd.f32 %v3315, %v3061
    %v3317 = vadd.f32 %v3316, %v3062
    %v3318 = vadd.f32 %v3317, %v3063
    %v3319 = vadd.f32 %v3318, %v3064
    %v3320 = vadd.f32 %v3319, %v3065
    %v3321 = vadd.f32 %v3320, %v3066
    %v3322 = vadd.f32 %v3321, %v3067
    %v3323 = vadd.f32 %v3322, %v3068
    %v3324 = vadd.f32 %v3323, %v3069
    %v3325 = vadd.f32 %v3324, %v3070
    %v3326 = vadd.f32 %v3325, %v3071
    %v3327 = vadd.f32 %v3326, %v3072
    %v3328 = vadd.f32 %v3327, %v3073
    %v3329 = vadd.f32 %v3328, %v3074
    %v3330 = vadd.f32 %v3329, %v3075
    %v3331 = vadd.f32 %v3330, %v3076
    %v3332 = vadd.f32 %v3331, %v3077
    %v3333 = vadd.f32 %v3332, %v3078
    %v3334 = vadd.f32 %v3333, %v3079
    %v3335 = vadd.f32 %v3334, %v3080
    %v3336 = vadd.f32 %v3335, %v3081
    %v3337 = vadd.f32 %v3336, %v3082
    %v3338 = vadd.f32 %v3337, %v3083
    %v3339 = vadd.f32 %v3338, %v3084
    %v3340 = vadd.f32 %v3339, %v3085
    %v3341 = vadd.f32 %v3340, %v3086
    %v3342 = vadd.f32 %v3341, %v3087
    %v3343 = vadd.f32 %v3342, %v3088
    %v3344 = vadd.f32 %v3343, %v3089
    %v3345 = vadd.f32 %v3344, %v3090
    %v3346 = vadd.f32 %v3345, %v3091
    %v3347 = vadd.f32 %v3346, %v3092
    %v3348 = vadd.f32 %v3347, %v3093
    %v3349 = vadd.f32 %v3348, %v3094
    %v3350 = vadd.f32 %v3349, %v3095
    %v3351 = vadd.f32 %v3350, %v3096
    %v3352 = vadd.f32 %v3351, %v3097
    %v3353 = vadd.f32 %v3352, %v3098
    %v3354 = vadd.f32 %v3353, %v3099
    %v3355 = vadd.f32 %v3354, %v3100
    %v3356 = vadd.f32 %v3355, %v3101
    %v3357 = vadd.f32 %v3356, %v3102
    %v3358 = vadd.f32 %v3357, %v3103
    %v3359 = vadd.f32 %v3358, %v3104
    %v3360 = vadd.f32 %v3359, %v3105
    %v3361 = vadd.f32 %v3360, %v3106
    %v3362 = vadd.f32 %v3361, %v3107
    %v3363 = vadd.f32 %v3362, %v3108
    %v3364 = vadd.f32 %v3363, %v3109
    %v3365 = vadd.f32 %v3364, %v3110
    %v3366 = vadd.f32 %v3365, %v3111
    %v3367 = vadd.f32 %v3366, %v3112
    %v3368 = vadd.f32 %v3367, %v3113
    %v3369 = vadd.f32 %v3368, %v3114
    %v3370 = vadd.f32 %v3369, %v3115
    %v3371 = vadd.f32 %v3370, %v3116
    %v3372 = vadd.f32 %v3371, %v3117
    %v3373 = vadd.f32 %v3372, %v3118
    %v3374 = vadd.f32 %v3373, %v3119
    %v3375 = vadd.f32 %v3374, %v3120
    %v3376 = vadd.f32 %v3375, %v3121
    %v3377 = vadd.f32 %v3376, %v3122
    %v3378 = vadd.f32 %v3377, %v3123
    %v3379 = vadd.f32 %v3378, %v3124
    %v3380 = vadd.f32 %v3379, %v3125
    %v3381 = vadd.f32 %v3380, %v3126
    %v3382 = vadd.f32 %v3381, %v3127
    %v3383 = vadd.f32 %v3382, %v3128
    %v3384 = vadd.f32 %v3383, %v3129
    %v3385 = vadd.f32 %v3384, %v3130
    %v3386 = vadd.f32 %v3385, %v3131
    %v3387 = vadd.f32 %v3386, %v3132
    %v3388 = vadd.f32 %v3387, %v3133
    %v3389 = vadd.f32 %v3388, %v3134
    %v3390 = vadd.f32 %v3389, %v3135
    %v3391 = vadd.f32 %v3390, %v3136
    %v3392 = vadd.f32 %v3391, %v3137
    %v3393 = vadd.f32 %v3392, %v3138
    %v3394 = vadd.f32 %v3393, %v3139
    %v3395 = vadd.f32 %v3394, %v3140
    %v3396 = vadd.f32 %v3395, %v3141
    %v3397 = vadd.f32 %v3396, %v3142
    %v3398 = vadd.f32 %v3397, %v3143
    %v3399 = vadd.f32 %v3398, %v3144
    %v3400 = vadd.f32 %v3399, %v3145
    %v3401 = vadd.f32 %v3400, %v3146
    %v3402 = vadd.f32 %v3401, %v3147
    %v3403 = vadd.f32 %v3402, %v3148
    %v3404 = vadd.f32 %v3403, %v3149
    %v3405 = vadd.f32 %v3404, %v3150
    %v3406 = vadd.f32 %v3405, %v3151
    %v3407 = vadd.f32 %v3406, %v3152
    %v3408 = vadd.f32 %v3407, %v3153
    %v3409 = vadd.f32 %v3408, %v3154
    %v3410 = vadd.f32 %v3409, %v3155
    %v3411 = vadd.f32 %v3410, %v3156
    %v3412 = vadd.f32 %v3411, %v3157
    %v3413 = vadd.f32 %v3412, %v3158
    %v3414 = vadd.f32 %v3413, %v3159
    %v3415 = vadd.f32 %v3414, %v3160
    %v3416 = vadd.f32 %v3415, %v3161
    %v3417 = vadd.f32 %v3416, %v3162
    %v3418 = vadd.f32 %v3417, %v3163
    %v3419 = vadd.f32 %v3418, %v3164
    %v3420 = vadd.f32 %v3419, %v3165
    %v3421 = vadd.f32 %v3420, %v3166
    %v3422 = vadd.f32 %v3421, %v3167
    %v3423 = vadd.f32 %v3422, %v3168
    %v3424 = vadd.f32 %v3423, %v3169
    %v3425 = vrot.slane %v3424, 4
    %v3426 = vadd.f32 %v3424, %v3425
    %v3427 = vrot.slane %v3426, 2
    %v3428 = vadd.f32 %v3426, %v3427
    %v3429 = vrot.slane %v3428, 1
    %v3430 = vadd.f32 %v3428, %v3429
    %v3431 = vmul.f32 %v3430, %v2656
    %v3432 = vadd.f32 %v3431, 1e-05
    %v3433 = vrsqrt.pop %v3432
    %v3434 = vmul.f32 %v2658, %v3433
    %v3435 = vmul.f32 %v2659, %v3433
    %v3436 = vmul.f32 %v2660, %v3433
    %v3437 = vmul.f32 %v2661, %v3433
    %v3438 = vmul.f32 %v2662, %v3433
    %v3439 = vmul.f32 %v2663, %v3433
    %v3440 = vmul.f32 %v2664, %v3433
    %v3441 = vmul.f32 %v2665, %v3433
    %v3442 = vmul.f32 %v2666, %v3433
    %v3443 = vmul.f32 %v2667, %v3433
    %v3444 = vmul.f32 %v2668, %v3433
    %v3445 = vmul.f32 %v2669, %v3433
    %v3446 = vmul.f32 %v2670, %v3433
    %v3447 = vmul.f32 %v2671, %v3433
    %v3448 = vmul.f32 %v2672, %v3433
    %v3449 = vmul.f32 %v2673, %v3433
    %v3450 = vmul.f32 %v2674, %v3433
    %v3451 = vmul.f32 %v2675, %v3433
    %v3452 = vmul.f32 %v2676, %v3433
    %v3453 = vmul.f32 %v2677, %v3433
    %v3454 = vmul.f32 %v2678, %v3433
    %v3455 = vmul.f32 %v2679, %v3433
    %v3456 = vmul.f32 %v2680, %v3433
    %v3457 = vmul.f32 %v2681, %v3433
    %v3458 = vmul.f32 %v2682, %v3433
    %v3459 = vmul.f32 %v2683, %v3433
    %v3460 = vmul.f32 %v2684, %v3433
    %v3461 = vmul.f32 %v2685, %v3433
    %v3462 = vmul.f32 %v2686, %v3433
    %v3463 = vmul.f32 %v2687, %v3433
    %v3464 = vmul.f32 %v2688, %v3433
    %v3465 = vmul.f32 %v2689, %v3433
    %v3466 = vmul.f32 %v2690, %v3433
    %v3467 = vmul.f32 %v2691, %v3433
    %v3468 = vmul.f32 %v2692, %v3433
    %v3469 = vmul.f32 %v2693, %v3433
    %v3470 = vmul.f32 %v2694, %v3433
    %v3471 = vmul.f32 %v2695, %v3433
    %v3472 = vmul.f32 %v2696, %v3433
    %v3473 = vmul.f32 %v2697, %v3433
    %v3474 = vmul.f32 %v2698, %v3433
    %v3475 = vmul.f32 %v2699, %v3433
    %v3476 = vmul.f32 %v2700, %v3433
    %v3477 = vmul.f32 %v2701, %v3433
    %v3478 = vmul.f32 %v2702, %v3433
    %v3479 = vmul.f32 %v2703, %v3433
    %v3480 = vmul.f32 %v2704, %v3433
    %v3481 = vmul.f32 %v2705, %v3433
    %v3482 = vmul.f32 %v2706, %v3433
    %v3483 = vmul.f32 %v2707, %v3433
    %v3484 = vmul.f32 %v2708, %v3433
    %v3485 = vmul.f32 %v2709, %v3433
    %v3486 = vmul.f32 %v2710, %v3433
    %v3487 = vmul.f32 %v2711, %v3433
    %v3488 = vmul.f32 %v2712, %v3433
    %v3489 = vmul.f32 %v2713, %v3433
    %v3490 = vmul.f32 %v2714, %v3433
    %v3491 = vmul.f32 %v2715, %v3433
    %v3492 = vmul.f32 %v2716, %v3433
    %v3493 = vmul.f32 %v2717, %v3433
    %v3494 = vmul.f32 %v2718, %v3433
    %v3495 = vmul.f32 %v2719, %v3433
    %v3496 = vmul.f32 %v2720, %v3433
    %v3497 = vmul.f32 %v2721, %v3433
    %v3498 = vmul.f32 %v2722, %v3433
    %v3499 = vmul.f32 %v2723, %v3433
    %v3500 = vmul.f32 %v2724, %v3433
    %v3501 = vmul.f32 %v2725, %v3433
    %v3502 = vmul.f32 %v2726, %v3433
    %v3503 = vmul.f32 %v2727, %v3433
    %v3504 = vmul.f32 %v2728, %v3433
    %v3505 = vmul.f32 %v2729, %v3433
    %v3506 = vmul.f32 %v2730, %v3433
    %v3507 = vmul.f32 %v2731, %v3433
    %v3508 = vmul.f32 %v2732, %v3433
    %v3509 = vmul.f32 %v2733, %v3433
    %v3510 = vmul.f32 %v2734, %v3433
    %v3511 = vmul.f32 %v2735, %v3433
    %v3512 = vmul.f32 %v2736, %v3433
    %v3513 = vmul.f32 %v2737, %v3433
    %v3514 = vmul.f32 %v2738, %v3433
    %v3515 = vmul.f32 %v2739, %v3433
    %v3516 = vmul.f32 %v2740, %v3433
    %v3517 = vmul.f32 %v2741, %v3433
    %v3518 = vmul.f32 %v2742, %v3433
    %v3519 = vmul.f32 %v2743, %v3433
    %v3520 = vmul.f32 %v2744, %v3433
    %v3521 = vmul.f32 %v2745, %v3433
    %v3522 = vmul.f32 %v2746, %v3433
    %v3523 = vmul.f32 %v2747, %v3433
    %v3524 = vmul.f32 %v2748, %v3433
    %v3525 = vmul.f32 %v2749, %v3433
    %v3526 = vmul.f32 %v2750, %v3433
    %v3527 = vmul.f32 %v2751, %v3433
    %v3528 = vmul.f32 %v2752, %v3433
    %v3529 = vmul.f32 %v2753, %v3433
    %v3530 = vmul.f32 %v2754, %v3433
    %v3531 = vmul.f32 %v2755, %v3433
    %v3532 = vmul.f32 %v2756, %v3433
    %v3533 = vmul.f32 %v2757, %v3433
    %v3534 = vmul.f32 %v2758, %v3433
    %v3535 = vmul.f32 %v2759, %v3433
    %v3536 = vmul.f32 %v2760, %v3433
    %v3537 = vmul.f32 %v2761, %v3433
    %v3538 = vmul.f32 %v2762, %v3433
    %v3539 = vmul.f32 %v2763, %v3433
    %v3540 = vmul.f32 %v2764, %v3433
    %v3541 = vmul.f32 %v2765, %v3433
    %v3542 = vmul.f32 %v2766, %v3433
    %v3543 = vmul.f32 %v2767, %v3433
    %v3544 = vmul.f32 %v2768, %v3433
    %v3545 = vmul.f32 %v2769, %v3433
    %v3546 = vmul.f32 %v2770, %v3433
    %v3547 = vmul.f32 %v2771, %v3433
    %v3548 = vmul.f32 %v2772, %v3433
    %v3549 = vmul.f32 %v2773, %v3433
    %v3550 = vmul.f32 %v2774, %v3433
    %v3551 = vmul.f32 %v2775, %v3433
    %v3552 = vmul.f32 %v2776, %v3433
    %v3553 = vmul.f32 %v2777, %v3433
    %v3554 = vmul.f32 %v2778, %v3433
    %v3555 = vmul.f32 %v2779, %v3433
    %v3556 = vmul.f32 %v2780, %v3433
    %v3557 = vmul.f32 %v2781, %v3433
    %v3558 = vmul.f32 %v2782, %v3433
    %v3559 = vmul.f32 %v2783, %v3433
    %v3560 = vmul.f32 %v2784, %v3433
    %v3561 = vmul.f32 %v2785, %v3433
    %v3562 = vmul.f32 %v2786, %v3433
    %v3563 = vmul.f32 %v2787, %v3433
    %v3564 = vmul.f32 %v2788, %v3433
    %v3565 = vmul.f32 %v2789, %v3433
    %v3566 = vmul.f32 %v2790, %v3433
    %v3567 = vmul.f32 %v2791, %v3433
    %v3568 = vmul.f32 %v2792, %v3433
    %v3569 = vmul.f32 %v2793, %v3433
    %v3570 = vmul.f32 %v2794, %v3433
    %v3571 = vmul.f32 %v2795, %v3433
    %v3572 = vmul.f32 %v2796, %v3433
    %v3573 = vmul.f32 %v2797, %v3433
    %v3574 = vmul.f32 %v2798, %v3433
    %v3575 = vmul.f32 %v2799, %v3433
    %v3576 = vmul.f32 %v2800, %v3433
    %v3577 = vmul.f32 %v2801, %v3433
    %v3578 = vmul.f32 %v2802, %v3433
    %v3579 = vmul.f32 %v2803, %v3433
    %v3580 = vmul.f32 %v2804, %v3433
    %v3581 = vmul.f32 %v2805, %v3433
    %v3582 = vmul.f32 %v2806, %v3433
    %v3583 = vmul.f32 %v2807, %v3433
    %v3584 = vmul.f32 %v2808, %v3433
    %v3585 = vmul.f32 %v2809, %v3433
    %v3586 = vmul.f32 %v2810, %v3433
    %v3587 = vmul.f32 %v2811, %v3433
    %v3588 = vmul.f32 %v2812, %v3433
    %v3589 = vmul.f32 %v2813, %v3433
    %v3590 = vmul.f32 %v2814, %v3433
    %v3591 = vmul.f32 %v2815, %v3433
    %v3592 = vmul.f32 %v2816, %v3433
    %v3593 = vmul.f32 %v2817, %v3433
    %v3594 = vmul.f32 %v2818, %v3433
    %v3595 = vmul.f32 %v2819, %v3433
    %v3596 = vmul.f32 %v2820, %v3433
    %v3597 = vmul.f32 %v2821, %v3433
    %v3598 = vmul.f32 %v2822, %v3433
    %v3599 = vmul.f32 %v2823, %v3433
    %v3600 = vmul.f32 %v2824, %v3433
    %v3601 = vmul.f32 %v2825, %v3433
    %v3602 = vmul.f32 %v2826, %v3433
    %v3603 = vmul.f32 %v2827, %v3433
    %v3604 = vmul.f32 %v2828, %v3433
    %v3605 = vmul.f32 %v2829, %v3433
    %v3606 = vmul.f32 %v2830, %v3433
    %v3607 = vmul.f32 %v2831, %v3433
    %v3608 = vmul.f32 %v2832, %v3433
    %v3609 = vmul.f32 %v2833, %v3433
    %v3610 = vmul.f32 %v2834, %v3433
    %v3611 = vmul.f32 %v2835, %v3433
    %v3612 = vmul.f32 %v2836, %v3433
    %v3613 = vmul.f32 %v2837, %v3433
    %v3614 = vmul.f32 %v2838, %v3433
    %v3615 = vmul.f32 %v2839, %v3433
    %v3616 = vmul.f32 %v2840, %v3433
    %v3617 = vmul.f32 %v2841, %v3433
    %v3618 = vmul.f32 %v2842, %v3433
    %v3619 = vmul.f32 %v2843, %v3433
    %v3620 = vmul.f32 %v2844, %v3433
    %v3621 = vmul.f32 %v2845, %v3433
    %v3622 = vmul.f32 %v2846, %v3433
    %v3623 = vmul.f32 %v2847, %v3433
    %v3624 = vmul.f32 %v2848, %v3433
    %v3625 = vmul.f32 %v2849, %v3433
    %v3626 = vmul.f32 %v2850, %v3433
    %v3627 = vmul.f32 %v2851, %v3433
    %v3628 = vmul.f32 %v2852, %v3433
    %v3629 = vmul.f32 %v2853, %v3433
    %v3630 = vmul.f32 %v2854, %v3433
    %v3631 = vmul.f32 %v2855, %v3433
    %v3632 = vmul.f32 %v2856, %v3433
    %v3633 = vmul.f32 %v2857, %v3433
    %v3634 = vmul.f32 %v2858, %v3433
    %v3635 = vmul.f32 %v2859, %v3433
    %v3636 = vmul.f32 %v2860, %v3433
    %v3637 = vmul.f32 %v2861, %v3433
    %v3638 = vmul.f32 %v2862, %v3433
    %v3639 = vmul.f32 %v2863, %v3433
    %v3640 = vmul.f32 %v2864, %v3433
    %v3641 = vmul.f32 %v2865, %v3433
    %v3642 = vmul.f32 %v2866, %v3433
    %v3643 = vmul.f32 %v2867, %v3433
    %v3644 = vmul.f32 %v2868, %v3433
    %v3645 = vmul.f32 %v2869, %v3433
    %v3646 = vmul.f32 %v2870, %v3433
    %v3647 = vmul.f32 %v2871, %v3433
    %v3648 = vmul.f32 %v2872, %v3433
    %v3649 = vmul.f32 %v2873, %v3433
    %v3650 = vmul.f32 %v2874, %v3433
    %v3651 = vmul.f32 %v2875, %v3433
    %v3652 = vmul.f32 %v2876, %v3433
    %v3653 = vmul.f32 %v2877, %v3433
    %v3654 = vmul.f32 %v2878, %v3433
    %v3655 = vmul.f32 %v2879, %v3433
    %v3656 = vmul.f32 %v2880, %v3433
    %v3657 = vmul.f32 %v2881, %v3433
    %v3658 = vmul.f32 %v2882, %v3433
    %v3659 = vmul.f32 %v2883, %v3433
    %v3660 = vmul.f32 %v2884, %v3433
    %v3661 = vmul.f32 %v2885, %v3433
    %v3662 = vmul.f32 %v2886, %v3433
    %v3663 = vmul.f32 %v2887, %v3433
    %v3664 = vmul.f32 %v2888, %v3433
    %v3665 = vmul.f32 %v2889, %v3433
    %v3666 = vmul.f32 %v2890, %v3433
    %v3667 = vmul.f32 %v2891, %v3433
    %v3668 = vmul.f32 %v2892, %v3433
    %v3669 = vmul.f32 %v2893, %v3433
    %v3670 = vmul.f32 %v2894, %v3433
    %v3671 = vmul.f32 %v2895, %v3433
    %v3672 = vmul.f32 %v2896, %v3433
    %v3673 = vmul.f32 %v2897, %v3433
    %v3674 = vmul.f32 %v2898, %v3433
    %v3675 = vmul.f32 %v2899, %v3433
    %v3676 = vmul.f32 %v2900, %v3433
    %v3677 = vmul.f32 %v2901, %v3433
    %v3678 = vmul.f32 %v2902, %v3433
    %v3679 = vmul.f32 %v2903, %v3433
    %v3680 = vmul.f32 %v2904, %v3433
    %v3681 = vmul.f32 %v2905, %v3433
    %v3682 = vmul.f32 %v2906, %v3433
    %v3683 = vmul.f32 %v2907, %v3433
    %v3684 = vmul.f32 %v2908, %v3433
    %v3685 = vmul.f32 %v2909, %v3433
    %v3686 = vmul.f32 %v2910, %v3433
    %v3687 = vmul.f32 %v2911, %v3433
    %v3688 = vmul.f32 %v2912, %v3433
    %v3689 = vmul.f32 %v2913, %v3433
    %v3690 = vld [vmem:[%s2 + $0x1] sm:$0x1]
    %v3691 = vlaneseq
    %v3692 = vshrl.u32 %v3691, 7
    %v3693 = vsub.s32 0, %v3692
    %v3694 = vrot.slane %v3690, %v3693
    %v3695 = vmul.f32 %v3434, %v3694
    %v3696 = vmul.f32 %v3435, %v3694
    %v3697 = vmul.f32 %v3436, %v3694
    %v3698 = vmul.f32 %v3437, %v3694
    %v3699 = vmul.f32 %v3438, %v3694
    %v3700 = vmul.f32 %v3439, %v3694
    %v3701 = vmul.f32 %v3440, %v3694
    %v3702 = vmul.f32 %v3441, %v3694
    %v3703 = vmul.f32 %v3442, %v3694
    %v3704 = vmul.f32 %v3443, %v3694
    %v3705 = vmul.f32 %v3444, %v3694
    %v3706 = vmul.f32 %v3445, %v3694
    %v3707 = vmul.f32 %v3446, %v3694
    %v3708 = vmul.f32 %v3447, %v3694
    %v3709 = vmul.f32 %v3448, %v3694
    %v3710 = vmul.f32 %v3449, %v3694
    %v3711 = vmul.f32 %v3450, %v3694
    %v3712 = vmul.f32 %v3451, %v3694
    %v3713 = vmul.f32 %v3452, %v3694
    %v3714 = vmul.f32 %v3453, %v3694
    %v3715 = vmul.f32 %v3454, %v3694
    %v3716 = vmul.f32 %v3455, %v3694
    %v3717 = vmul.f32 %v3456, %v3694
    %v3718 = vmul.f32 %v3457, %v3694
    %v3719 = vmul.f32 %v3458, %v3694
    %v3720 = vmul.f32 %v3459, %v3694
    %v3721 = vmul.f32 %v3460, %v3694
    %v3722 = vmul.f32 %v3461, %v3694
    %v3723 = vmul.f32 %v3462, %v3694
    %v3724 = vmul.f32 %v3463, %v3694
    %v3725 = vmul.f32 %v3464, %v3694
    %v3726 = vmul.f32 %v3465, %v3694
    %v3727 = vmul.f32 %v3466, %v3694
    %v3728 = vmul.f32 %v3467, %v3694
    %v3729 = vmul.f32 %v3468, %v3694
    %v3730 = vmul.f32 %v3469, %v3694
    %v3731 = vmul.f32 %v3470, %v3694
    %v3732 = vmul.f32 %v3471, %v3694
    %v3733 = vmul.f32 %v3472, %v3694
    %v3734 = vmul.f32 %v3473, %v3694
    %v3735 = vmul.f32 %v3474, %v3694
    %v3736 = vmul.f32 %v3475, %v3694
    %v3737 = vmul.f32 %v3476, %v3694
    %v3738 = vmul.f32 %v3477, %v3694
    %v3739 = vmul.f32 %v3478, %v3694
    %v3740 = vmul.f32 %v3479, %v3694
    %v3741 = vmul.f32 %v3480, %v3694
    %v3742 = vmul.f32 %v3481, %v3694
    %v3743 = vmul.f32 %v3482, %v3694
    %v3744 = vmul.f32 %v3483, %v3694
    %v3745 = vmul.f32 %v3484, %v3694
    %v3746 = vmul.f32 %v3485, %v3694
    %v3747 = vmul.f32 %v3486, %v3694
    %v3748 = vmul.f32 %v3487, %v3694
    %v3749 = vmul.f32 %v3488, %v3694
    %v3750 = vmul.f32 %v3489, %v3694
    %v3751 = vmul.f32 %v3490, %v3694
    %v3752 = vmul.f32 %v3491, %v3694
    %v3753 = vmul.f32 %v3492, %v3694
    %v3754 = vmul.f32 %v3493, %v3694
    %v3755 = vmul.f32 %v3494, %v3694
    %v3756 = vmul.f32 %v3495, %v3694
    %v3757 = vmul.f32 %v3496, %v3694
    %v3758 = vmul.f32 %v3497, %v3694
    %v3759 = vmul.f32 %v3498, %v3694
    %v3760 = vmul.f32 %v3499, %v3694
    %v3761 = vmul.f32 %v3500, %v3694
    %v3762 = vmul.f32 %v3501, %v3694
    %v3763 = vmul.f32 %v3502, %v3694
    %v3764 = vmul.f32 %v3503, %v3694
    %v3765 = vmul.f32 %v3504, %v3694
    %v3766 = vmul.f32 %v3505, %v3694
    %v3767 = vmul.f32 %v3506, %v3694
    %v3768 = vmul.f32 %v3507, %v3694
    %v3769 = vmul.f32 %v3508, %v3694
    %v3770 = vmul.f32 %v3509, %v3694
    %v3771 = vmul.f32 %v3510, %v3694
    %v3772 = vmul.f32 %v3511, %v3694
    %v3773 = vmul.f32 %v3512, %v3694
    %v3774 = vmul.f32 %v3513, %v3694
    %v3775 = vmul.f32 %v3514, %v3694
    %v3776 = vmul.f32 %v3515, %v3694
    %v3777 = vmul.f32 %v3516, %v3694
    %v3778 = vmul.f32 %v3517, %v3694
    %v3779 = vmul.f32 %v3518, %v3694
    %v3780 = vmul.f32 %v3519, %v3694
    %v3781 = vmul.f32 %v3520, %v3694
    %v3782 = vmul.f32 %v3521, %v3694
    %v3783 = vmul.f32 %v3522, %v3694
    %v3784 = vmul.f32 %v3523, %v3694
    %v3785 = vmul.f32 %v3524, %v3694
    %v3786 = vmul.f32 %v3525, %v3694
    %v3787 = vmul.f32 %v3526, %v3694
    %v3788 = vmul.f32 %v3527, %v3694
    %v3789 = vmul.f32 %v3528, %v3694
    %v3790 = vmul.f32 %v3529, %v3694
    %v3791 = vmul.f32 %v3530, %v3694
    %v3792 = vmul.f32 %v3531, %v3694
    %v3793 = vmul.f32 %v3532, %v3694
    %v3794 = vmul.f32 %v3533, %v3694
    %v3795 = vmul.f32 %v3534, %v3694
    %v3796 = vmul.f32 %v3535, %v3694
    %v3797 = vmul.f32 %v3536, %v3694
    %v3798 = vmul.f32 %v3537, %v3694
    %v3799 = vmul.f32 %v3538, %v3694
    %v3800 = vmul.f32 %v3539, %v3694
    %v3801 = vmul.f32 %v3540, %v3694
    %v3802 = vmul.f32 %v3541, %v3694
    %v3803 = vmul.f32 %v3542, %v3694
    %v3804 = vmul.f32 %v3543, %v3694
    %v3805 = vmul.f32 %v3544, %v3694
    %v3806 = vmul.f32 %v3545, %v3694
    %v3807 = vmul.f32 %v3546, %v3694
    %v3808 = vmul.f32 %v3547, %v3694
    %v3809 = vmul.f32 %v3548, %v3694
    %v3810 = vmul.f32 %v3549, %v3694
    %v3811 = vmul.f32 %v3550, %v3694
    %v3812 = vmul.f32 %v3551, %v3694
    %v3813 = vmul.f32 %v3552, %v3694
    %v3814 = vmul.f32 %v3553, %v3694
    %v3815 = vmul.f32 %v3554, %v3694
    %v3816 = vmul.f32 %v3555, %v3694
    %v3817 = vmul.f32 %v3556, %v3694
    %v3818 = vmul.f32 %v3557, %v3694
    %v3819 = vmul.f32 %v3558, %v3694
    %v3820 = vmul.f32 %v3559, %v3694
    %v3821 = vmul.f32 %v3560, %v3694
    %v3822 = vmul.f32 %v3561, %v3694
    %v3823 = vmul.f32 %v3562, %v3694
    %v3824 = vmul.f32 %v3563, %v3694
    %v3825 = vmul.f32 %v3564, %v3694
    %v3826 = vmul.f32 %v3565, %v3694
    %v3827 = vmul.f32 %v3566, %v3694
    %v3828 = vmul.f32 %v3567, %v3694
    %v3829 = vmul.f32 %v3568, %v3694
    %v3830 = vmul.f32 %v3569, %v3694
    %v3831 = vmul.f32 %v3570, %v3694
    %v3832 = vmul.f32 %v3571, %v3694
    %v3833 = vmul.f32 %v3572, %v3694
    %v3834 = vmul.f32 %v3573, %v3694
    %v3835 = vmul.f32 %v3574, %v3694
    %v3836 = vmul.f32 %v3575, %v3694
    %v3837 = vmul.f32 %v3576, %v3694
    %v3838 = vmul.f32 %v3577, %v3694
    %v3839 = vmul.f32 %v3578, %v3694
    %v3840 = vmul.f32 %v3579, %v3694
    %v3841 = vmul.f32 %v3580, %v3694
    %v3842 = vmul.f32 %v3581, %v3694
    %v3843 = vmul.f32 %v3582, %v3694
    %v3844 = vmul.f32 %v3583, %v3694
    %v3845 = vmul.f32 %v3584, %v3694
    %v3846 = vmul.f32 %v3585, %v3694
    %v3847 = vmul.f32 %v3586, %v3694
    %v3848 = vmul.f32 %v3587, %v3694
    %v3849 = vmul.f32 %v3588, %v3694
    %v3850 = vmul.f32 %v3589, %v3694
    %v3851 = vmul.f32 %v3590, %v3694
    %v3852 = vmul.f32 %v3591, %v3694
    %v3853 = vmul.f32 %v3592, %v3694
    %v3854 = vmul.f32 %v3593, %v3694
    %v3855 = vmul.f32 %v3594, %v3694
    %v3856 = vmul.f32 %v3595, %v3694
    %v3857 = vmul.f32 %v3596, %v3694
    %v3858 = vmul.f32 %v3597, %v3694
    %v3859 = vmul.f32 %v3598, %v3694
    %v3860 = vmul.f32 %v3599, %v3694
    %v3861 = vmul.f32 %v3600, %v3694
    %v3862 = vmul.f32 %v3601, %v3694
    %v3863 = vmul.f32 %v3602, %v3694
    %v3864 = vmul.f32 %v3603, %v3694
    %v3865 = vmul.f32 %v3604, %v3694
    %v3866 = vmul.f32 %v3605, %v3694
    %v3867 = vmul.f32 %v3606, %v3694
    %v3868 = vmul.f32 %v3607, %v3694
    %v3869 = vmul.f32 %v3608, %v3694
    %v3870 = vmul.f32 %v3609, %v3694
    %v3871 = vmul.f32 %v3610, %v3694
    %v3872 = vmul.f32 %v3611, %v3694
    %v3873 = vmul.f32 %v3612, %v3694
    %v3874 = vmul.f32 %v3613, %v3694
    %v3875 = vmul.f32 %v3614, %v3694
    %v3876 = vmul.f32 %v3615, %v3694
    %v3877 = vmul.f32 %v3616, %v3694
    %v3878 = vmul.f32 %v3617, %v3694
    %v3879 = vmul.f32 %v3618, %v3694
    %v3880 = vmul.f32 %v3619, %v3694
    %v3881 = vmul.f32 %v3620, %v3694
    %v3882 = vmul.f32 %v3621, %v3694
    %v3883 = vmul.f32 %v3622, %v3694
    %v3884 = vmul.f32 %v3623, %v3694
    %v3885 = vmul.f32 %v3624, %v3694
    %v3886 = vmul.f32 %v3625, %v3694
    %v3887 = vmul.f32 %v3626, %v3694
    %v3888 = vmul.f32 %v3627, %v3694
    %v3889 = vmul.f32 %v3628, %v3694
    %v3890 = vmul.f32 %v3629, %v3694
    %v3891 = vmul.f32 %v3630, %v3694
    %v3892 = vmul.f32 %v3631, %v3694
    %v3893 = vmul.f32 %v3632, %v3694
    %v3894 = vmul.f32 %v3633, %v3694
    %v3895 = vmul.f32 %v3634, %v3694
    %v3896 = vmul.f32 %v3635, %v3694
    %v3897 = vmul.f32 %v3636, %v3694
    %v3898 = vmul.f32 %v3637, %v3694
    %v3899 = vmul.f32 %v3638, %v3694
    %v3900 = vmul.f32 %v3639, %v3694
    %v3901 = vmul.f32 %v3640, %v3694
    %v3902 = vmul.f32 %v3641, %v3694
    %v3903 = vmul.f32 %v3642, %v3694
    %v3904 = vmul.f32 %v3643, %v3694
    %v3905 = vmul.f32 %v3644, %v3694
    %v3906 = vmul.f32 %v3645, %v3694
    %v3907 = vmul.f32 %v3646, %v3694
    %v3908 = vmul.f32 %v3647, %v3694
    %v3909 = vmul.f32 %v3648, %v3694
    %v3910 = vmul.f32 %v3649, %v3694
    %v3911 = vmul.f32 %v3650, %v3694
    %v3912 = vmul.f32 %v3651, %v3694
    %v3913 = vmul.f32 %v3652, %v3694
    %v3914 = vmul.f32 %v3653, %v3694
    %v3915 = vmul.f32 %v3654, %v3694
    %v3916 = vmul.f32 %v3655, %v3694
    %v3917 = vmul.f32 %v3656, %v3694
    %v3918 = vmul.f32 %v3657, %v3694
    %v3919 = vmul.f32 %v3658, %v3694
    %v3920 = vmul.f32 %v3659, %v3694
    %v3921 = vmul.f32 %v3660, %v3694
    %v3922 = vmul.f32 %v3661, %v3694
    %v3923 = vmul.f32 %v3662, %v3694
    %v3924 = vmul.f32 %v3663, %v3694
    %v3925 = vmul.f32 %v3664, %v3694
    %v3926 = vmul.f32 %v3665, %v3694
    %v3927 = vmul.f32 %v3666, %v3694
    %v3928 = vmul.f32 %v3667, %v3694
    %v3929 = vmul.f32 %v3668, %v3694
    %v3930 = vmul.f32 %v3669, %v3694
    %v3931 = vmul.f32 %v3670, %v3694
    %v3932 = vmul.f32 %v3671, %v3694
    %v3933 = vmul.f32 %v3672, %v3694
    %v3934 = vmul.f32 %v3673, %v3694
    %v3935 = vmul.f32 %v3674, %v3694
    %v3936 = vmul.f32 %v3675, %v3694
    %v3937 = vmul.f32 %v3676, %v3694
    %v3938 = vmul.f32 %v3677, %v3694
    %v3939 = vmul.f32 %v3678, %v3694
    %v3940 = vmul.f32 %v3679, %v3694
    %v3941 = vmul.f32 %v3680, %v3694
    %v3942 = vmul.f32 %v3681, %v3694
    %v3943 = vmul.f32 %v3682, %v3694
    %v3944 = vmul.f32 %v3683, %v3694
    %v3945 = vmul.f32 %v3684, %v3694
    %v3946 = vmul.f32 %v3685, %v3694
    %v3947 = vmul.f32 %v3686, %v3694
    %v3948 = vmul.f32 %v3687, %v3694
    %v3949 = vmul.f32 %v3688, %v3694
    %v3950 = vmul.f32 %v3689, %v3694
    %v3951 = vld [vmem:[%s2 + $0x2] sm:$0x1]
    %v3952 = vlaneseq
    %v3953 = vshrl.u32 %v3952, 7
    %v3954 = vsub.s32 0, %v3953
    %v3955 = vrot.slane %v3951, %v3954
    %v3956 = vadd.f32 %v3695, %v3955
    %v3957 = vadd.f32 %v3696, %v3955
    %v3958 = vadd.f32 %v3697, %v3955
    %v3959 = vadd.f32 %v3698, %v3955
    %v3960 = vadd.f32 %v3699, %v3955
    %v3961 = vadd.f32 %v3700, %v3955
    %v3962 = vadd.f32 %v3701, %v3955
    %v3963 = vadd.f32 %v3702, %v3955
    %v3964 = vadd.f32 %v3703, %v3955
    %v3965 = vadd.f32 %v3704, %v3955
    %v3966 = vadd.f32 %v3705, %v3955
    %v3967 = vadd.f32 %v3706, %v3955
    %v3968 = vadd.f32 %v3707, %v3955
    %v3969 = vadd.f32 %v3708, %v3955
    %v3970 = vadd.f32 %v3709, %v3955
    %v3971 = vadd.f32 %v3710, %v3955
    %v3972 = vadd.f32 %v3711, %v3955
    %v3973 = vadd.f32 %v3712, %v3955
    %v3974 = vadd.f32 %v3713, %v3955
    %v3975 = vadd.f32 %v3714, %v3955
    %v3976 = vadd.f32 %v3715, %v3955
    %v3977 = vadd.f32 %v3716, %v3955
    %v3978 = vadd.f32 %v3717, %v3955
    %v3979 = vadd.f32 %v3718, %v3955
    %v3980 = vadd.f32 %v3719, %v3955
    %v3981 = vadd.f32 %v3720, %v3955
    %v3982 = vadd.f32 %v3721, %v3955
    %v3983 = vadd.f32 %v3722, %v3955
    %v3984 = vadd.f32 %v3723, %v3955
    %v3985 = vadd.f32 %v3724, %v3955
    %v3986 = vadd.f32 %v3725, %v3955
    %v3987 = vadd.f32 %v3726, %v3955
    %v3988 = vadd.f32 %v3727, %v3955
    %v3989 = vadd.f32 %v3728, %v3955
    %v3990 = vadd.f32 %v3729, %v3955
    %v3991 = vadd.f32 %v3730, %v3955
    %v3992 = vadd.f32 %v3731, %v3955
    %v3993 = vadd.f32 %v3732, %v3955
    %v3994 = vadd.f32 %v3733, %v3955
    %v3995 = vadd.f32 %v3734, %v3955
    %v3996 = vadd.f32 %v3735, %v3955
    %v3997 = vadd.f32 %v3736, %v3955
    %v3998 = vadd.f32 %v3737, %v3955
    %v3999 = vadd.f32 %v3738, %v3955
    %v4000 = vadd.f32 %v3739, %v3955
    %v4001 = vadd.f32 %v3740, %v3955
    %v4002 = vadd.f32 %v3741, %v3955
    %v4003 = vadd.f32 %v3742, %v3955
    %v4004 = vadd.f32 %v3743, %v3955
    %v4005 = vadd.f32 %v3744, %v3955
    %v4006 = vadd.f32 %v3745, %v3955
    %v4007 = vadd.f32 %v3746, %v3955
    %v4008 = vadd.f32 %v3747, %v3955
    %v4009 = vadd.f32 %v3748, %v3955
    %v4010 = vadd.f32 %v3749, %v3955
    %v4011 = vadd.f32 %v3750, %v3955
    %v4012 = vadd.f32 %v3751, %v3955
    %v4013 = vadd.f32 %v3752, %v3955
    %v4014 = vadd.f32 %v3753, %v3955
    %v4015 = vadd.f32 %v3754, %v3955
    %v4016 = vadd.f32 %v3755, %v3955
    %v4017 = vadd.f32 %v3756, %v3955
    %v4018 = vadd.f32 %v3757, %v3955
    %v4019 = vadd.f32 %v3758, %v3955
    %v4020 = vadd.f32 %v3759, %v3955
    %v4021 = vadd.f32 %v3760, %v3955
    %v4022 = vadd.f32 %v3761, %v3955
    %v4023 = vadd.f32 %v3762, %v3955
    %v4024 = vadd.f32 %v3763, %v3955
    %v4025 = vadd.f32 %v3764, %v3955
    %v4026 = vadd.f32 %v3765, %v3955
    %v4027 = vadd.f32 %v3766, %v3955
    %v4028 = vadd.f32 %v3767, %v3955
    %v4029 = vadd.f32 %v3768, %v3955
    %v4030 = vadd.f32 %v3769, %v3955
    %v4031 = vadd.f32 %v3770, %v3955
    %v4032 = vadd.f32 %v3771, %v3955
    %v4033 = vadd.f32 %v3772, %v3955
    %v4034 = vadd.f32 %v3773, %v3955
    %v4035 = vadd.f32 %v3774, %v3955
    %v4036 = vadd.f32 %v3775, %v3955
    %v4037 = vadd.f32 %v3776, %v3955
    %v4038 = vadd.f32 %v3777, %v3955
    %v4039 = vadd.f32 %v3778, %v3955
    %v4040 = vadd.f32 %v3779, %v3955
    %v4041 = vadd.f32 %v3780, %v3955
    %v4042 = vadd.f32 %v3781, %v3955
    %v4043 = vadd.f32 %v3782, %v3955
    %v4044 = vadd.f32 %v3783, %v3955
    %v4045 = vadd.f32 %v3784, %v3955
    %v4046 = vadd.f32 %v3785, %v3955
    %v4047 = vadd.f32 %v3786, %v3955
    %v4048 = vadd.f32 %v3787, %v3955
    %v4049 = vadd.f32 %v3788, %v3955
    %v4050 = vadd.f32 %v3789, %v3955
    %v4051 = vadd.f32 %v3790, %v3955
    %v4052 = vadd.f32 %v3791, %v3955
    %v4053 = vadd.f32 %v3792, %v3955
    %v4054 = vadd.f32 %v3793, %v3955
    %v4055 = vadd.f32 %v3794, %v3955
    %v4056 = vadd.f32 %v3795, %v3955
    %v4057 = vadd.f32 %v3796, %v3955
    %v4058 = vadd.f32 %v3797, %v3955
    %v4059 = vadd.f32 %v3798, %v3955
    %v4060 = vadd.f32 %v3799, %v3955
    %v4061 = vadd.f32 %v3800, %v3955
    %v4062 = vadd.f32 %v3801, %v3955
    %v4063 = vadd.f32 %v3802, %v3955
    %v4064 = vadd.f32 %v3803, %v3955
    %v4065 = vadd.f32 %v3804, %v3955
    %v4066 = vadd.f32 %v3805, %v3955
    %v4067 = vadd.f32 %v3806, %v3955
    %v4068 = vadd.f32 %v3807, %v3955
    %v4069 = vadd.f32 %v3808, %v3955
    %v4070 = vadd.f32 %v3809, %v3955
    %v4071 = vadd.f32 %v3810, %v3955
    %v4072 = vadd.f32 %v3811, %v3955
    %v4073 = vadd.f32 %v3812, %v3955
    %v4074 = vadd.f32 %v3813, %v3955
    %v4075 = vadd.f32 %v3814, %v3955
    %v4076 = vadd.f32 %v3815, %v3955
    %v4077 = vadd.f32 %v3816, %v3955
    %v4078 = vadd.f32 %v3817, %v3955
    %v4079 = vadd.f32 %v3818, %v3955
    %v4080 = vadd.f32 %v3819, %v3955
    %v4081 = vadd.f32 %v3820, %v3955
    %v4082 = vadd.f32 %v3821, %v3955
    %v4083 = vadd.f32 %v3822, %v3955
    %v4084 = vadd.f32 %v3823, %v3955
    %v4085 = vadd.f32 %v3824, %v3955
    %v4086 = vadd.f32 %v3825, %v3955
    %v4087 = vadd.f32 %v3826, %v3955
    %v4088 = vadd.f32 %v3827, %v3955
    %v4089 = vadd.f32 %v3828, %v3955
    %v4090 = vadd.f32 %v3829, %v3955
    %v4091 = vadd.f32 %v3830, %v3955
    %v4092 = vadd.f32 %v3831, %v3955
    %v4093 = vadd.f32 %v3832, %v3955
    %v4094 = vadd.f32 %v3833, %v3955
    %v4095 = vadd.f32 %v3834, %v3955
    %v4096 = vadd.f32 %v3835, %v3955
    %v4097 = vadd.f32 %v3836, %v3955
    %v4098 = vadd.f32 %v3837, %v3955
    %v4099 = vadd.f32 %v3838, %v3955
    %v4100 = vadd.f32 %v3839, %v3955
    %v4101 = vadd.f32 %v3840, %v3955
    %v4102 = vadd.f32 %v3841, %v3955
    %v4103 = vadd.f32 %v3842, %v3955
    %v4104 = vadd.f32 %v3843, %v3955
    %v4105 = vadd.f32 %v3844, %v3955
    %v4106 = vadd.f32 %v3845, %v3955
    %v4107 = vadd.f32 %v3846, %v3955
    %v4108 = vadd.f32 %v3847, %v3955
    %v4109 = vadd.f32 %v3848, %v3955
    %v4110 = vadd.f32 %v3849, %v3955
    %v4111 = vadd.f32 %v3850, %v3955
    %v4112 = vadd.f32 %v3851, %v3955
    %v4113 = vadd.f32 %v3852, %v3955
    %v4114 = vadd.f32 %v3853, %v3955
    %v4115 = vadd.f32 %v3854, %v3955
    %v4116 = vadd.f32 %v3855, %v3955
    %v4117 = vadd.f32 %v3856, %v3955
    %v4118 = vadd.f32 %v3857, %v3955
    %v4119 = vadd.f32 %v3858, %v3955
    %v4120 = vadd.f32 %v3859, %v3955
    %v4121 = vadd.f32 %v3860, %v3955
    %v4122 = vadd.f32 %v3861, %v3955
    %v4123 = vadd.f32 %v3862, %v3955
    %v4124 = vadd.f32 %v3863, %v3955
    %v4125 = vadd.f32 %v3864, %v3955
    %v4126 = vadd.f32 %v3865, %v3955
    %v4127 = vadd.f32 %v3866, %v3955
    %v4128 = vadd.f32 %v3867, %v3955
    %v4129 = vadd.f32 %v3868, %v3955
    %v4130 = vadd.f32 %v3869, %v3955
    %v4131 = vadd.f32 %v3870, %v3955
    %v4132 = vadd.f32 %v3871, %v3955
    %v4133 = vadd.f32 %v3872, %v3955
    %v4134 = vadd.f32 %v3873, %v3955
    %v4135 = vadd.f32 %v3874, %v3955
    %v4136 = vadd.f32 %v3875, %v3955
    %v4137 = vadd.f32 %v3876, %v3955
    %v4138 = vadd.f32 %v3877, %v3955
    %v4139 = vadd.f32 %v3878, %v3955
    %v4140 = vadd.f32 %v3879, %v3955
    %v4141 = vadd.f32 %v3880, %v3955
    %v4142 = vadd.f32 %v3881, %v3955
    %v4143 = vadd.f32 %v3882, %v3955
    %v4144 = vadd.f32 %v3883, %v3955
    %v4145 = vadd.f32 %v3884, %v3955
    %v4146 = vadd.f32 %v3885, %v3955
    %v4147 = vadd.f32 %v3886, %v3955
    %v4148 = vadd.f32 %v3887, %v3955
    %v4149 = vadd.f32 %v3888, %v3955
    %v4150 = vadd.f32 %v3889, %v3955
    %v4151 = vadd.f32 %v3890, %v3955
    %v4152 = vadd.f32 %v3891, %v3955
    %v4153 = vadd.f32 %v3892, %v3955
    %v4154 = vadd.f32 %v3893, %v3955
    %v4155 = vadd.f32 %v3894, %v3955
    %v4156 = vadd.f32 %v3895, %v3955
    %v4157 = vadd.f32 %v3896, %v3955
    %v4158 = vadd.f32 %v3897, %v3955
    %v4159 = vadd.f32 %v3898, %v3955
    %v4160 = vadd.f32 %v3899, %v3955
    %v4161 = vadd.f32 %v3900, %v3955
    %v4162 = vadd.f32 %v3901, %v3955
    %v4163 = vadd.f32 %v3902, %v3955
    %v4164 = vadd.f32 %v3903, %v3955
    %v4165 = vadd.f32 %v3904, %v3955
    %v4166 = vadd.f32 %v3905, %v3955
    %v4167 = vadd.f32 %v3906, %v3955
    %v4168 = vadd.f32 %v3907, %v3955
    %v4169 = vadd.f32 %v3908, %v3955
    %v4170 = vadd.f32 %v3909, %v3955
    %v4171 = vadd.f32 %v3910, %v3955
    %v4172 = vadd.f32 %v3911, %v3955
    %v4173 = vadd.f32 %v3912, %v3955
    %v4174 = vadd.f32 %v3913, %v3955
    %v4175 = vadd.f32 %v3914, %v3955
    %v4176 = vadd.f32 %v3915, %v3955
    %v4177 = vadd.f32 %v3916, %v3955
    %v4178 = vadd.f32 %v3917, %v3955
    %v4179 = vadd.f32 %v3918, %v3955
    %v4180 = vadd.f32 %v3919, %v3955
    %v4181 = vadd.f32 %v3920, %v3955
    %v4182 = vadd.f32 %v3921, %v3955
    %v4183 = vadd.f32 %v3922, %v3955
    %v4184 = vadd.f32 %v3923, %v3955
    %v4185 = vadd.f32 %v3924, %v3955
    %v4186 = vadd.f32 %v3925, %v3955
    %v4187 = vadd.f32 %v3926, %v3955
    %v4188 = vadd.f32 %v3927, %v3955
    %v4189 = vadd.f32 %v3928, %v3955
    %v4190 = vadd.f32 %v3929, %v3955
    %v4191 = vadd.f32 %v3930, %v3955
    %v4192 = vadd.f32 %v3931, %v3955
    %v4193 = vadd.f32 %v3932, %v3955
    %v4194 = vadd.f32 %v3933, %v3955
    %v4195 = vadd.f32 %v3934, %v3955
    %v4196 = vadd.f32 %v3935, %v3955
    %v4197 = vadd.f32 %v3936, %v3955
    %v4198 = vadd.f32 %v3937, %v3955
    %v4199 = vadd.f32 %v3938, %v3955
    %v4200 = vadd.f32 %v3939, %v3955
    %v4201 = vadd.f32 %v3940, %v3955
    %v4202 = vadd.f32 %v3941, %v3955
    %v4203 = vadd.f32 %v3942, %v3955
    %v4204 = vadd.f32 %v3943, %v3955
    %v4205 = vadd.f32 %v3944, %v3955
    %v4206 = vadd.f32 %v3945, %v3955
    %v4207 = vadd.f32 %v3946, %v3955
    %v4208 = vadd.f32 %v3947, %v3955
    %v4209 = vadd.f32 %v3948, %v3955
    %v4210 = vadd.f32 %v3949, %v3955
    %v4211 = vadd.f32 %v3950, %v3955
    %v4212 = vmax.f32 %v3956, 0.0
    %v4213 = vmax.f32 %v3957, 0.0
    %v4214 = vmax.f32 %v3958, 0.0
    %v4215 = vmax.f32 %v3959, 0.0
    %v4216 = vmax.f32 %v3960, 0.0
    %v4217 = vmax.f32 %v3961, 0.0
    %v4218 = vmax.f32 %v3962, 0.0
    %v4219 = vmax.f32 %v3963, 0.0
    %v4220 = vmax.f32 %v3964, 0.0
    %v4221 = vmax.f32 %v3965, 0.0
    %v4222 = vmax.f32 %v3966, 0.0
    %v4223 = vmax.f32 %v3967, 0.0
    %v4224 = vmax.f32 %v3968, 0.0
    %v4225 = vmax.f32 %v3969, 0.0
    %v4226 = vmax.f32 %v3970, 0.0
    %v4227 = vmax.f32 %v3971, 0.0
    %v4228 = vmax.f32 %v3972, 0.0
    %v4229 = vmax.f32 %v3973, 0.0
    %v4230 = vmax.f32 %v3974, 0.0
    %v4231 = vmax.f32 %v3975, 0.0
    %v4232 = vmax.f32 %v3976, 0.0
    %v4233 = vmax.f32 %v3977, 0.0
    %v4234 = vmax.f32 %v3978, 0.0
    %v4235 = vmax.f32 %v3979, 0.0
    %v4236 = vmax.f32 %v3980, 0.0
    %v4237 = vmax.f32 %v3981, 0.0
    %v4238 = vmax.f32 %v3982, 0.0
    %v4239 = vmax.f32 %v3983, 0.0
    %v4240 = vmax.f32 %v3984, 0.0
    %v4241 = vmax.f32 %v3985, 0.0
    %v4242 = vmax.f32 %v3986, 0.0
    %v4243 = vmax.f32 %v3987, 0.0
    %v4244 = vmax.f32 %v3988, 0.0
    %v4245 = vmax.f32 %v3989, 0.0
    %v4246 = vmax.f32 %v3990, 0.0
    %v4247 = vmax.f32 %v3991, 0.0
    %v4248 = vmax.f32 %v3992, 0.0
    %v4249 = vmax.f32 %v3993, 0.0
    %v4250 = vmax.f32 %v3994, 0.0
    %v4251 = vmax.f32 %v3995, 0.0
    %v4252 = vmax.f32 %v3996, 0.0
    %v4253 = vmax.f32 %v3997, 0.0
    %v4254 = vmax.f32 %v3998, 0.0
    %v4255 = vmax.f32 %v3999, 0.0
    %v4256 = vmax.f32 %v4000, 0.0
    %v4257 = vmax.f32 %v4001, 0.0
    %v4258 = vmax.f32 %v4002, 0.0
    %v4259 = vmax.f32 %v4003, 0.0
    %v4260 = vmax.f32 %v4004, 0.0
    %v4261 = vmax.f32 %v4005, 0.0
    %v4262 = vmax.f32 %v4006, 0.0
    %v4263 = vmax.f32 %v4007, 0.0
    %v4264 = vmax.f32 %v4008, 0.0
    %v4265 = vmax.f32 %v4009, 0.0
    %v4266 = vmax.f32 %v4010, 0.0
    %v4267 = vmax.f32 %v4011, 0.0
    %v4268 = vmax.f32 %v4012, 0.0
    %v4269 = vmax.f32 %v4013, 0.0
    %v4270 = vmax.f32 %v4014, 0.0
    %v4271 = vmax.f32 %v4015, 0.0
    %v4272 = vmax.f32 %v4016, 0.0
    %v4273 = vmax.f32 %v4017, 0.0
    %v4274 = vmax.f32 %v4018, 0.0
    %v4275 = vmax.f32 %v4019, 0.0
    %v4276 = vmax.f32 %v4020, 0.0
    %v4277 = vmax.f32 %v4021, 0.0
    %v4278 = vmax.f32 %v4022, 0.0
    %v4279 = vmax.f32 %v4023, 0.0
    %v4280 = vmax.f32 %v4024, 0.0
    %v4281 = vmax.f32 %v4025, 0.0
    %v4282 = vmax.f32 %v4026, 0.0
    %v4283 = vmax.f32 %v4027, 0.0
    %v4284 = vmax.f32 %v4028, 0.0
    %v4285 = vmax.f32 %v4029, 0.0
    %v4286 = vmax.f32 %v4030, 0.0
    %v4287 = vmax.f32 %v4031, 0.0
    %v4288 = vmax.f32 %v4032, 0.0
    %v4289 = vmax.f32 %v4033, 0.0
    %v4290 = vmax.f32 %v4034, 0.0
    %v4291 = vmax.f32 %v4035, 0.0
    %v4292 = vmax.f32 %v4036, 0.0
    %v4293 = vmax.f32 %v4037, 0.0
    %v4294 = vmax.f32 %v4038, 0.0
    %v4295 = vmax.f32 %v4039, 0.0
    %v4296 = vmax.f32 %v4040, 0.0
    %v4297 = vmax.f32 %v4041, 0.0
    %v4298 = vmax.f32 %v4042, 0.0
    %v4299 = vmax.f32 %v4043, 0.0
    %v4300 = vmax.f32 %v4044, 0.0
    %v4301 = vmax.f32 %v4045, 0.0
    %v4302 = vmax.f32 %v4046, 0.0
    %v4303 = vmax.f32 %v4047, 0.0
    %v4304 = vmax.f32 %v4048, 0.0
    %v4305 = vmax.f32 %v4049, 0.0
    %v4306 = vmax.f32 %v4050, 0.0
    %v4307 = vmax.f32 %v4051, 0.0
    %v4308 = vmax.f32 %v4052, 0.0
    %v4309 = vmax.f32 %v4053, 0.0
    %v4310 = vmax.f32 %v4054, 0.0
    %v4311 = vmax.f32 %v4055, 0.0
    %v4312 = vmax.f32 %v4056, 0.0
    %v4313 = vmax.f32 %v4057, 0.0
    %v4314 = vmax.f32 %v4058, 0.0
    %v4315 = vmax.f32 %v4059, 0.0
    %v4316 = vmax.f32 %v4060, 0.0
    %v4317 = vmax.f32 %v4061, 0.0
    %v4318 = vmax.f32 %v4062, 0.0
    %v4319 = vmax.f32 %v4063, 0.0
    %v4320 = vmax.f32 %v4064, 0.0
    %v4321 = vmax.f32 %v4065, 0.0
    %v4322 = vmax.f32 %v4066, 0.0
    %v4323 = vmax.f32 %v4067, 0.0
    %v4324 = vmax.f32 %v4068, 0.0
    %v4325 = vmax.f32 %v4069, 0.0
    %v4326 = vmax.f32 %v4070, 0.0
    %v4327 = vmax.f32 %v4071, 0.0
    %v4328 = vmax.f32 %v4072, 0.0
    %v4329 = vmax.f32 %v4073, 0.0
    %v4330 = vmax.f32 %v4074, 0.0
    %v4331 = vmax.f32 %v4075, 0.0
    %v4332 = vmax.f32 %v4076, 0.0
    %v4333 = vmax.f32 %v4077, 0.0
    %v4334 = vmax.f32 %v4078, 0.0
    %v4335 = vmax.f32 %v4079, 0.0
    %v4336 = vmax.f32 %v4080, 0.0
    %v4337 = vmax.f32 %v4081, 0.0
    %v4338 = vmax.f32 %v4082, 0.0
    %v4339 = vmax.f32 %v4083, 0.0
    %v4340 = vmax.f32 %v4084, 0.0
    %v4341 = vmax.f32 %v4085, 0.0
    %v4342 = vmax.f32 %v4086, 0.0
    %v4343 = vmax.f32 %v4087, 0.0
    %v4344 = vmax.f32 %v4088, 0.0
    %v4345 = vmax.f32 %v4089, 0.0
    %v4346 = vmax.f32 %v4090, 0.0
    %v4347 = vmax.f32 %v4091, 0.0
    %v4348 = vmax.f32 %v4092, 0.0
    %v4349 = vmax.f32 %v4093, 0.0
    %v4350 = vmax.f32 %v4094, 0.0
    %v4351 = vmax.f32 %v4095, 0.0
    %v4352 = vmax.f32 %v4096, 0.0
    %v4353 = vmax.f32 %v4097, 0.0
    %v4354 = vmax.f32 %v4098, 0.0
    %v4355 = vmax.f32 %v4099, 0.0
    %v4356 = vmax.f32 %v4100, 0.0
    %v4357 = vmax.f32 %v4101, 0.0
    %v4358 = vmax.f32 %v4102, 0.0
    %v4359 = vmax.f32 %v4103, 0.0
    %v4360 = vmax.f32 %v4104, 0.0
    %v4361 = vmax.f32 %v4105, 0.0
    %v4362 = vmax.f32 %v4106, 0.0
    %v4363 = vmax.f32 %v4107, 0.0
    %v4364 = vmax.f32 %v4108, 0.0
    %v4365 = vmax.f32 %v4109, 0.0
    %v4366 = vmax.f32 %v4110, 0.0
    %v4367 = vmax.f32 %v4111, 0.0
    %v4368 = vmax.f32 %v4112, 0.0
    %v4369 = vmax.f32 %v4113, 0.0
    %v4370 = vmax.f32 %v4114, 0.0
    %v4371 = vmax.f32 %v4115, 0.0
    %v4372 = vmax.f32 %v4116, 0.0
    %v4373 = vmax.f32 %v4117, 0.0
    %v4374 = vmax.f32 %v4118, 0.0
    %v4375 = vmax.f32 %v4119, 0.0
    %v4376 = vmax.f32 %v4120, 0.0
    %v4377 = vmax.f32 %v4121, 0.0
    %v4378 = vmax.f32 %v4122, 0.0
    %v4379 = vmax.f32 %v4123, 0.0
    %v4380 = vmax.f32 %v4124, 0.0
    %v4381 = vmax.f32 %v4125, 0.0
    %v4382 = vmax.f32 %v4126, 0.0
    %v4383 = vmax.f32 %v4127, 0.0
    %v4384 = vmax.f32 %v4128, 0.0
    %v4385 = vmax.f32 %v4129, 0.0
    %v4386 = vmax.f32 %v4130, 0.0
    %v4387 = vmax.f32 %v4131, 0.0
    %v4388 = vmax.f32 %v4132, 0.0
    %v4389 = vmax.f32 %v4133, 0.0
    %v4390 = vmax.f32 %v4134, 0.0
    %v4391 = vmax.f32 %v4135, 0.0
    %v4392 = vmax.f32 %v4136, 0.0
    %v4393 = vmax.f32 %v4137, 0.0
    %v4394 = vmax.f32 %v4138, 0.0
    %v4395 = vmax.f32 %v4139, 0.0
    %v4396 = vmax.f32 %v4140, 0.0
    %v4397 = vmax.f32 %v4141, 0.0
    %v4398 = vmax.f32 %v4142, 0.0
    %v4399 = vmax.f32 %v4143, 0.0
    %v4400 = vmax.f32 %v4144, 0.0
    %v4401 = vmax.f32 %v4145, 0.0
    %v4402 = vmax.f32 %v4146, 0.0
    %v4403 = vmax.f32 %v4147, 0.0
    %v4404 = vmax.f32 %v4148, 0.0
    %v4405 = vmax.f32 %v4149, 0.0
    %v4406 = vmax.f32 %v4150, 0.0
    %v4407 = vmax.f32 %v4151, 0.0
    %v4408 = vmax.f32 %v4152, 0.0
    %v4409 = vmax.f32 %v4153, 0.0
    %v4410 = vmax.f32 %v4154, 0.0
    %v4411 = vmax.f32 %v4155, 0.0
    %v4412 = vmax.f32 %v4156, 0.0
    %v4413 = vmax.f32 %v4157, 0.0
    %v4414 = vmax.f32 %v4158, 0.0
    %v4415 = vmax.f32 %v4159, 0.0
    %v4416 = vmax.f32 %v4160, 0.0
    %v4417 = vmax.f32 %v4161, 0.0
    %v4418 = vmax.f32 %v4162, 0.0
    %v4419 = vmax.f32 %v4163, 0.0
    %v4420 = vmax.f32 %v4164, 0.0
    %v4421 = vmax.f32 %v4165, 0.0
    %v4422 = vmax.f32 %v4166, 0.0
    %v4423 = vmax.f32 %v4167, 0.0
    %v4424 = vmax.f32 %v4168, 0.0
    %v4425 = vmax.f32 %v4169, 0.0
    %v4426 = vmax.f32 %v4170, 0.0
    %v4427 = vmax.f32 %v4171, 0.0
    %v4428 = vmax.f32 %v4172, 0.0
    %v4429 = vmax.f32 %v4173, 0.0
    %v4430 = vmax.f32 %v4174, 0.0
    %v4431 = vmax.f32 %v4175, 0.0
    %v4432 = vmax.f32 %v4176, 0.0
    %v4433 = vmax.f32 %v4177, 0.0
    %v4434 = vmax.f32 %v4178, 0.0
    %v4435 = vmax.f32 %v4179, 0.0
    %v4436 = vmax.f32 %v4180, 0.0
    %v4437 = vmax.f32 %v4181, 0.0
    %v4438 = vmax.f32 %v4182, 0.0
    %v4439 = vmax.f32 %v4183, 0.0
    %v4440 = vmax.f32 %v4184, 0.0
    %v4441 = vmax.f32 %v4185, 0.0
    %v4442 = vmax.f32 %v4186, 0.0
    %v4443 = vmax.f32 %v4187, 0.0
    %v4444 = vmax.f32 %v4188, 0.0
    %v4445 = vmax.f32 %v4189, 0.0
    %v4446 = vmax.f32 %v4190, 0.0
    %v4447 = vmax.f32 %v4191, 0.0
    %v4448 = vmax.f32 %v4192, 0.0
    %v4449 = vmax.f32 %v4193, 0.0
    %v4450 = vmax.f32 %v4194, 0.0
    %v4451 = vmax.f32 %v4195, 0.0
    %v4452 = vmax.f32 %v4196, 0.0
    %v4453 = vmax.f32 %v4197, 0.0
    %v4454 = vmax.f32 %v4198, 0.0
    %v4455 = vmax.f32 %v4199, 0.0
    %v4456 = vmax.f32 %v4200, 0.0
    %v4457 = vmax.f32 %v4201, 0.0
    %v4458 = vmax.f32 %v4202, 0.0
    %v4459 = vmax.f32 %v4203, 0.0
    %v4460 = vmax.f32 %v4204, 0.0
    %v4461 = vmax.f32 %v4205, 0.0
    %v4462 = vmax.f32 %v4206, 0.0
    %v4463 = vmax.f32 %v4207, 0.0
    %v4464 = vmax.f32 %v4208, 0.0
    %v4465 = vmax.f32 %v4209, 0.0
    %v4466 = vmax.f32 %v4210, 0.0
    %v4467 = vmax.f32 %v4211, 0.0
    %4468 = vst [vmem:[#allocation2] sm:$0xff] %v4212
    %4469 = vst [vmem:[#allocation2 + $0x8] sm:$0xff] %v4213
    %4470 = vst [vmem:[#allocation2 + $0x10] sm:$0xff] %v4214
    %4471 = vst [vmem:[#allocation2 + $0x18] sm:$0xff] %v4215
    %4472 = vst [vmem:[#allocation2 + $0x20] sm:$0xff] %v4216
    %4473 = vst [vmem:[#allocation2 + $0x28] sm:$0xff] %v4217
    %4474 = vst [vmem:[#allocation2 + $0x30] sm:$0xff] %v4218
    %4475 = vst [vmem:[#allocation2 + $0x38] sm:$0xff] %v4219
    %4476 = vst [vmem:[#allocation2 + $0x40] sm:$0xff] %v4220
    %4477 = vst [vmem:[#allocation2 + $0x48] sm:$0xff] %v4221
    %4478 = vst [vmem:[#allocation2 + $0x50] sm:$0xff] %v4222
    %4479 = vst [vmem:[#allocation2 + $0x58] sm:$0xff] %v4223
    %4480 = vst [vmem:[#allocation2 + $0x60] sm:$0xff] %v4224
    %4481 = vst [vmem:[#allocation2 + $0x68] sm:$0xff] %v4225
    %4482 = vst [vmem:[#allocation2 + $0x70] sm:$0xff] %v4226
    %4483 = vst [vmem:[#allocation2 + $0x78] sm:$0xff] %v4227
    %4484 = vst [vmem:[#allocation2 + $0x80] sm:$0xff] %v4228
    %4485 = vst [vmem:[#allocation2 + $0x88] sm:$0xff] %v4229
    %4486 = vst [vmem:[#allocation2 + $0x90] sm:$0xff] %v4230
    %4487 = vst [vmem:[#allocation2 + $0x98] sm:$0xff] %v4231
    %4488 = vst [vmem:[#allocation2 + $0xa0] sm:$0xff] %v4232
    %4489 = vst [vmem:[#allocation2 + $0xa8] sm:$0xff] %v4233
    %4490 = vst [vmem:[#allocation2 + $0xb0] sm:$0xff] %v4234
    %4491 = vst [vmem:[#allocation2 + $0xb8] sm:$0xff] %v4235
    %4492 = vst [vmem:[#allocation2 + $0xc0] sm:$0xff] %v4236
    %4493 = vst [vmem:[#allocation2 + $0xc8] sm:$0xff] %v4237
    %4494 = vst [vmem:[#allocation2 + $0xd0] sm:$0xff] %v4238
    %4495 = vst [vmem:[#allocation2 + $0xd8] sm:$0xff] %v4239
    %4496 = vst [vmem:[#allocation2 + $0xe0] sm:$0xff] %v4240
    %4497 = vst [vmem:[#allocation2 + $0xe8] sm:$0xff] %v4241
    %4498 = vst [vmem:[#allocation2 + $0xf0] sm:$0xff] %v4242
    %4499 = vst [vmem:[#allocation2 + $0xf8] sm:$0xff] %v4243
    %4500 = vst [vmem:[#allocation2 + $0x100] sm:$0xff] %v4244
    %4501 = vst [vmem:[#allocation2 + $0x108] sm:$0xff] %v4245
    %4502 = vst [vmem:[#allocation2 + $0x110] sm:$0xff] %v4246
    %4503 = vst [vmem:[#allocation2 + $0x118] sm:$0xff] %v4247
    %4504 = vst [vmem:[#allocation2 + $0x120] sm:$0xff] %v4248
    %4505 = vst [vmem:[#allocation2 + $0x128] sm:$0xff] %v4249
    %4506 = vst [vmem:[#allocation2 + $0x130] sm:$0xff] %v4250
    %4507 = vst [vmem:[#allocation2 + $0x138] sm:$0xff] %v4251
    %4508 = vst [vmem:[#allocation2 + $0x140] sm:$0xff] %v4252
    %4509 = vst [vmem:[#allocation2 + $0x148] sm:$0xff] %v4253
    %4510 = vst [vmem:[#allocation2 + $0x150] sm:$0xff] %v4254
    %4511 = vst [vmem:[#allocation2 + $0x158] sm:$0xff] %v4255
    %4512 = vst [vmem:[#allocation2 + $0x160] sm:$0xff] %v4256
    %4513 = vst [vmem:[#allocation2 + $0x168] sm:$0xff] %v4257
    %4514 = vst [vmem:[#allocation2 + $0x170] sm:$0xff] %v4258
    %4515 = vst [vmem:[#allocation2 + $0x178] sm:$0xff] %v4259
    %4516 = vst [vmem:[#allocation2 + $0x180] sm:$0xff] %v4260
    %4517 = vst [vmem:[#allocation2 + $0x188] sm:$0xff] %v4261
    %4518 = vst [vmem:[#allocation2 + $0x190] sm:$0xff] %v4262
    %4519 = vst [vmem:[#allocation2 + $0x198] sm:$0xff] %v4263
    %4520 = vst [vmem:[#allocation2 + $0x1a0] sm:$0xff] %v4264
    %4521 = vst [vmem:[#allocation2 + $0x1a8] sm:$0xff] %v4265
    %4522 = vst [vmem:[#allocation2 + $0x1b0] sm:$0xff] %v4266
    %4523 = vst [vmem:[#allocation2 + $0x1b8] sm:$0xff] %v4267
    %4524 = vst [vmem:[#allocation2 + $0x1c0] sm:$0xff] %v4268
    %4525 = vst [vmem:[#allocation2 + $0x1c8] sm:$0xff] %v4269
    %4526 = vst [vmem:[#allocation2 + $0x1d0] sm:$0xff] %v4270
    %4527 = vst [vmem:[#allocation2 + $0x1d8] sm:$0xff] %v4271
    %4528 = vst [vmem:[#allocation2 + $0x1e0] sm:$0xff] %v4272
    %4529 = vst [vmem:[#allocation2 + $0x1e8] sm:$0xff] %v4273
    %4530 = vst [vmem:[#allocation2 + $0x1f0] sm:$0xff] %v4274
    %4531 = vst [vmem:[#allocation2 + $0x1f8] sm:$0xff] %v4275
    %4532 = vst [vmem:[#allocation2 + $0x200] sm:$0xff] %v4276
    %4533 = vst [vmem:[#allocation2 + $0x208] sm:$0xff] %v4277
    %4534 = vst [vmem:[#allocation2 + $0x210] sm:$0xff] %v4278
    %4535 = vst [vmem:[#allocation2 + $0x218] sm:$0xff] %v4279
    %4536 = vst [vmem:[#allocation2 + $0x220] sm:$0xff] %v4280
    %4537 = vst [vmem:[#allocation2 + $0x228] sm:$0xff] %v4281
    %4538 = vst [vmem:[#allocation2 + $0x230] sm:$0xff] %v4282
    %4539 = vst [vmem:[#allocation2 + $0x238] sm:$0xff] %v4283
    %4540 = vst [vmem:[#allocation2 + $0x240] sm:$0xff] %v4284
    %4541 = vst [vmem:[#allocation2 + $0x248] sm:$0xff] %v4285
    %4542 = vst [vmem:[#allocation2 + $0x250] sm:$0xff] %v4286
    %4543 = vst [vmem:[#allocation2 + $0x258] sm:$0xff] %v4287
    %4544 = vst [vmem:[#allocation2 + $0x260] sm:$0xff] %v4288
    %4545 = vst [vmem:[#allocation2 + $0x268] sm:$0xff] %v4289
    %4546 = vst [vmem:[#allocation2 + $0x270] sm:$0xff] %v4290
    %4547 = vst [vmem:[#allocation2 + $0x278] sm:$0xff] %v4291
    %4548 = vst [vmem:[#allocation2 + $0x280] sm:$0xff] %v4292
    %4549 = vst [vmem:[#allocation2 + $0x288] sm:$0xff] %v4293
    %4550 = vst [vmem:[#allocation2 + $0x290] sm:$0xff] %v4294
    %4551 = vst [vmem:[#allocation2 + $0x298] sm:$0xff] %v4295
    %4552 = vst [vmem:[#allocation2 + $0x2a0] sm:$0xff] %v4296
    %4553 = vst [vmem:[#allocation2 + $0x2a8] sm:$0xff] %v4297
    %4554 = vst [vmem:[#allocation2 + $0x2b0] sm:$0xff] %v4298
    %4555 = vst [vmem:[#allocation2 + $0x2b8] sm:$0xff] %v4299
    %4556 = vst [vmem:[#allocation2 + $0x2c0] sm:$0xff] %v4300
    %4557 = vst [vmem:[#allocation2 + $0x2c8] sm:$0xff] %v4301
    %4558 = vst [vmem:[#allocation2 + $0x2d0] sm:$0xff] %v4302
    %4559 = vst [vmem:[#allocation2 + $0x2d8] sm:$0xff] %v4303
    %4560 = vst [vmem:[#allocation2 + $0x2e0] sm:$0xff] %v4304
    %4561 = vst [vmem:[#allocation2 + $0x2e8] sm:$0xff] %v4305
    %4562 = vst [vmem:[#allocation2 + $0x2f0] sm:$0xff] %v4306
    %4563 = vst [vmem:[#allocation2 + $0x2f8] sm:$0xff] %v4307
    %4564 = vst [vmem:[#allocation2 + $0x300] sm:$0xff] %v4308
    %4565 = vst [vmem:[#allocation2 + $0x308] sm:$0xff] %v4309
    %4566 = vst [vmem:[#allocation2 + $0x310] sm:$0xff] %v4310
    %4567 = vst [vmem:[#allocation2 + $0x318] sm:$0xff] %v4311
    %4568 = vst [vmem:[#allocation2 + $0x320] sm:$0xff] %v4312
    %4569 = vst [vmem:[#allocation2 + $0x328] sm:$0xff] %v4313
    %4570 = vst [vmem:[#allocation2 + $0x330] sm:$0xff] %v4314
    %4571 = vst [vmem:[#allocation2 + $0x338] sm:$0xff] %v4315
    %4572 = vst [vmem:[#allocation2 + $0x340] sm:$0xff] %v4316
    %4573 = vst [vmem:[#allocation2 + $0x348] sm:$0xff] %v4317
    %4574 = vst [vmem:[#allocation2 + $0x350] sm:$0xff] %v4318
    %4575 = vst [vmem:[#allocation2 + $0x358] sm:$0xff] %v4319
    %4576 = vst [vmem:[#allocation2 + $0x360] sm:$0xff] %v4320
    %4577 = vst [vmem:[#allocation2 + $0x368] sm:$0xff] %v4321
    %4578 = vst [vmem:[#allocation2 + $0x370] sm:$0xff] %v4322
    %4579 = vst [vmem:[#allocation2 + $0x378] sm:$0xff] %v4323
    %4580 = vst [vmem:[#allocation2 + $0x380] sm:$0xff] %v4324
    %4581 = vst [vmem:[#allocation2 + $0x388] sm:$0xff] %v4325
    %4582 = vst [vmem:[#allocation2 + $0x390] sm:$0xff] %v4326
    %4583 = vst [vmem:[#allocation2 + $0x398] sm:$0xff] %v4327
    %4584 = vst [vmem:[#allocation2 + $0x3a0] sm:$0xff] %v4328
    %4585 = vst [vmem:[#allocation2 + $0x3a8] sm:$0xff] %v4329
    %4586 = vst [vmem:[#allocation2 + $0x3b0] sm:$0xff] %v4330
    %4587 = vst [vmem:[#allocation2 + $0x3b8] sm:$0xff] %v4331
    %4588 = vst [vmem:[#allocation2 + $0x3c0] sm:$0xff] %v4332
    %4589 = vst [vmem:[#allocation2 + $0x3c8] sm:$0xff] %v4333
    %4590 = vst [vmem:[#allocation2 + $0x3d0] sm:$0xff] %v4334
    %4591 = vst [vmem:[#allocation2 + $0x3d8] sm:$0xff] %v4335
    %4592 = vst [vmem:[#allocation2 + $0x3e0] sm:$0xff] %v4336
    %4593 = vst [vmem:[#allocation2 + $0x3e8] sm:$0xff] %v4337
    %4594 = vst [vmem:[#allocation2 + $0x3f0] sm:$0xff] %v4338
    %4595 = vst [vmem:[#allocation2 + $0x3f8] sm:$0xff] %v4339
    %4596 = vst [vmem:[#allocation2 + $0x400] sm:$0xff] %v4340
    %4597 = vst [vmem:[#allocation2 + $0x408] sm:$0xff] %v4341
    %4598 = vst [vmem:[#allocation2 + $0x410] sm:$0xff] %v4342
    %4599 = vst [vmem:[#allocation2 + $0x418] sm:$0xff] %v4343
    %4600 = vst [vmem:[#allocation2 + $0x420] sm:$0xff] %v4344
    %4601 = vst [vmem:[#allocation2 + $0x428] sm:$0xff] %v4345
    %4602 = vst [vmem:[#allocation2 + $0x430] sm:$0xff] %v4346
    %4603 = vst [vmem:[#allocation2 + $0x438] sm:$0xff] %v4347
    %4604 = vst [vmem:[#allocation2 + $0x440] sm:$0xff] %v4348
    %4605 = vst [vmem:[#allocation2 + $0x448] sm:$0xff] %v4349
    %4606 = vst [vmem:[#allocation2 + $0x450] sm:$0xff] %v4350
    %4607 = vst [vmem:[#allocation2 + $0x458] sm:$0xff] %v4351
    %4608 = vst [vmem:[#allocation2 + $0x460] sm:$0xff] %v4352
    %4609 = vst [vmem:[#allocation2 + $0x468] sm:$0xff] %v4353
    %4610 = vst [vmem:[#allocation2 + $0x470] sm:$0xff] %v4354
    %4611 = vst [vmem:[#allocation2 + $0x478] sm:$0xff] %v4355
    %4612 = vst [vmem:[#allocation2 + $0x480] sm:$0xff] %v4356
    %4613 = vst [vmem:[#allocation2 + $0x488] sm:$0xff] %v4357
    %4614 = vst [vmem:[#allocation2 + $0x490] sm:$0xff] %v4358
    %4615 = vst [vmem:[#allocation2 + $0x498] sm:$0xff] %v4359
    %4616 = vst [vmem:[#allocation2 + $0x4a0] sm:$0xff] %v4360
    %4617 = vst [vmem:[#allocation2 + $0x4a8] sm:$0xff] %v4361
    %4618 = vst [vmem:[#allocation2 + $0x4b0] sm:$0xff] %v4362
    %4619 = vst [vmem:[#allocation2 + $0x4b8] sm:$0xff] %v4363
    %4620 = vst [vmem:[#allocation2 + $0x4c0] sm:$0xff] %v4364
    %4621 = vst [vmem:[#allocation2 + $0x4c8] sm:$0xff] %v4365
    %4622 = vst [vmem:[#allocation2 + $0x4d0] sm:$0xff] %v4366
    %4623 = vst [vmem:[#allocation2 + $0x4d8] sm:$0xff] %v4367
    %4624 = vst [vmem:[#allocation2 + $0x4e0] sm:$0xff] %v4368
    %4625 = vst [vmem:[#allocation2 + $0x4e8] sm:$0xff] %v4369
    %4626 = vst [vmem:[#allocation2 + $0x4f0] sm:$0xff] %v4370
    %4627 = vst [vmem:[#allocation2 + $0x4f8] sm:$0xff] %v4371
    %4628 = vst [vmem:[#allocation2 + $0x500] sm:$0xff] %v4372
    %4629 = vst [vmem:[#allocation2 + $0x508] sm:$0xff] %v4373
    %4630 = vst [vmem:[#allocation2 + $0x510] sm:$0xff] %v4374
    %4631 = vst [vmem:[#allocation2 + $0x518] sm:$0xff] %v4375
    %4632 = vst [vmem:[#allocation2 + $0x520] sm:$0xff] %v4376
    %4633 = vst [vmem:[#allocation2 + $0x528] sm:$0xff] %v4377
    %4634 = vst [vmem:[#allocation2 + $0x530] sm:$0xff] %v4378
    %4635 = vst [vmem:[#allocation2 + $0x538] sm:$0xff] %v4379
    %4636 = vst [vmem:[#allocation2 + $0x540] sm:$0xff] %v4380
    %4637 = vst [vmem:[#allocation2 + $0x548] sm:$0xff] %v4381
    %4638 = vst [vmem:[#allocation2 + $0x550] sm:$0xff] %v4382
    %4639 = vst [vmem:[#allocation2 + $0x558] sm:$0xff] %v4383
    %4640 = vst [vmem:[#allocation2 + $0x560] sm:$0xff] %v4384
    %4641 = vst [vmem:[#allocation2 + $0x568] sm:$0xff] %v4385
    %4642 = vst [vmem:[#allocation2 + $0x570] sm:$0xff] %v4386
    %4643 = vst [vmem:[#allocation2 + $0x578] sm:$0xff] %v4387
    %4644 = vst [vmem:[#allocation2 + $0x580] sm:$0xff] %v4388
    %4645 = vst [vmem:[#allocation2 + $0x588] sm:$0xff] %v4389
    %4646 = vst [vmem:[#allocation2 + $0x590] sm:$0xff] %v4390
    %4647 = vst [vmem:[#allocation2 + $0x598] sm:$0xff] %v4391
    %4648 = vst [vmem:[#allocation2 + $0x5a0] sm:$0xff] %v4392
    %4649 = vst [vmem:[#allocation2 + $0x5a8] sm:$0xff] %v4393
    %4650 = vst [vmem:[#allocation2 + $0x5b0] sm:$0xff] %v4394
    %4651 = vst [vmem:[#allocation2 + $0x5b8] sm:$0xff] %v4395
    %4652 = vst [vmem:[#allocation2 + $0x5c0] sm:$0xff] %v4396
    %4653 = vst [vmem:[#allocation2 + $0x5c8] sm:$0xff] %v4397
    %4654 = vst [vmem:[#allocation2 + $0x5d0] sm:$0xff] %v4398
    %4655 = vst [vmem:[#allocation2 + $0x5d8] sm:$0xff] %v4399
    %4656 = vst [vmem:[#allocation2 + $0x5e0] sm:$0xff] %v4400
    %4657 = vst [vmem:[#allocation2 + $0x5e8] sm:$0xff] %v4401
    %4658 = vst [vmem:[#allocation2 + $0x5f0] sm:$0xff] %v4402
    %4659 = vst [vmem:[#allocation2 + $0x5f8] sm:$0xff] %v4403
    %4660 = vst [vmem:[#allocation2 + $0x600] sm:$0xff] %v4404
    %4661 = vst [vmem:[#allocation2 + $0x608] sm:$0xff] %v4405
    %4662 = vst [vmem:[#allocation2 + $0x610] sm:$0xff] %v4406
    %4663 = vst [vmem:[#allocation2 + $0x618] sm:$0xff] %v4407
    %4664 = vst [vmem:[#allocation2 + $0x620] sm:$0xff] %v4408
    %4665 = vst [vmem:[#allocation2 + $0x628] sm:$0xff] %v4409
    %4666 = vst [vmem:[#allocation2 + $0x630] sm:$0xff] %v4410
    %4667 = vst [vmem:[#allocation2 + $0x638] sm:$0xff] %v4411
    %4668 = vst [vmem:[#allocation2 + $0x640] sm:$0xff] %v4412
    %4669 = vst [vmem:[#allocation2 + $0x648] sm:$0xff] %v4413
    %4670 = vst [vmem:[#allocation2 + $0x650] sm:$0xff] %v4414
    %4671 = vst [vmem:[#allocation2 + $0x658] sm:$0xff] %v4415
    %4672 = vst [vmem:[#allocation2 + $0x660] sm:$0xff] %v4416
    %4673 = vst [vmem:[#allocation2 + $0x668] sm:$0xff] %v4417
    %4674 = vst [vmem:[#allocation2 + $0x670] sm:$0xff] %v4418
    %4675 = vst [vmem:[#allocation2 + $0x678] sm:$0xff] %v4419
    %4676 = vst [vmem:[#allocation2 + $0x680] sm:$0xff] %v4420
    %4677 = vst [vmem:[#allocation2 + $0x688] sm:$0xff] %v4421
    %4678 = vst [vmem:[#allocation2 + $0x690] sm:$0xff] %v4422
    %4679 = vst [vmem:[#allocation2 + $0x698] sm:$0xff] %v4423
    %4680 = vst [vmem:[#allocation2 + $0x6a0] sm:$0xff] %v4424
    %4681 = vst [vmem:[#allocation2 + $0x6a8] sm:$0xff] %v4425
    %4682 = vst [vmem:[#allocation2 + $0x6b0] sm:$0xff] %v4426
    %4683 = vst [vmem:[#allocation2 + $0x6b8] sm:$0xff] %v4427
    %4684 = vst [vmem:[#allocation2 + $0x6c0] sm:$0xff] %v4428
    %4685 = vst [vmem:[#allocation2 + $0x6c8] sm:$0xff] %v4429
    %4686 = vst [vmem:[#allocation2 + $0x6d0] sm:$0xff] %v4430
    %4687 = vst [vmem:[#allocation2 + $0x6d8] sm:$0xff] %v4431
    %4688 = vst [vmem:[#allocation2 + $0x6e0] sm:$0xff] %v4432
    %4689 = vst [vmem:[#allocation2 + $0x6e8] sm:$0xff] %v4433
    %4690 = vst [vmem:[#allocation2 + $0x6f0] sm:$0xff] %v4434
    %4691 = vst [vmem:[#allocation2 + $0x6f8] sm:$0xff] %v4435
    %4692 = vst [vmem:[#allocation2 + $0x700] sm:$0xff] %v4436
    %4693 = vst [vmem:[#allocation2 + $0x708] sm:$0xff] %v4437
    %4694 = vst [vmem:[#allocation2 + $0x710] sm:$0xff] %v4438
    %4695 = vst [vmem:[#allocation2 + $0x718] sm:$0xff] %v4439
    %4696 = vst [vmem:[#allocation2 + $0x720] sm:$0xff] %v4440
    %4697 = vst [vmem:[#allocation2 + $0x728] sm:$0xff] %v4441
    %4698 = vst [vmem:[#allocation2 + $0x730] sm:$0xff] %v4442
    %4699 = vst [vmem:[#allocation2 + $0x738] sm:$0xff] %v4443
    %4700 = vst [vmem:[#allocation2 + $0x740] sm:$0xff] %v4444
    %4701 = vst [vmem:[#allocation2 + $0x748] sm:$0xff] %v4445
    %4702 = vst [vmem:[#allocation2 + $0x750] sm:$0xff] %v4446
    %4703 = vst [vmem:[#allocation2 + $0x758] sm:$0xff] %v4447
    %4704 = vst [vmem:[#allocation2 + $0x760] sm:$0xff] %v4448
    %4705 = vst [vmem:[#allocation2 + $0x768] sm:$0xff] %v4449
    %4706 = vst [vmem:[#allocation2 + $0x770] sm:$0xff] %v4450
    %4707 = vst [vmem:[#allocation2 + $0x778] sm:$0xff] %v4451
    %4708 = vst [vmem:[#allocation2 + $0x780] sm:$0xff] %v4452
    %4709 = vst [vmem:[#allocation2 + $0x788] sm:$0xff] %v4453
    %4710 = vst [vmem:[#allocation2 + $0x790] sm:$0xff] %v4454
    %4711 = vst [vmem:[#allocation2 + $0x798] sm:$0xff] %v4455
    %4712 = vst [vmem:[#allocation2 + $0x7a0] sm:$0xff] %v4456
    %4713 = vst [vmem:[#allocation2 + $0x7a8] sm:$0xff] %v4457
    %4714 = vst [vmem:[#allocation2 + $0x7b0] sm:$0xff] %v4458
    %4715 = vst [vmem:[#allocation2 + $0x7b8] sm:$0xff] %v4459
    %4716 = vst [vmem:[#allocation2 + $0x7c0] sm:$0xff] %v4460
    %4717 = vst [vmem:[#allocation2 + $0x7c8] sm:$0xff] %v4461
    %4718 = vst [vmem:[#allocation2 + $0x7d0] sm:$0xff] %v4462
    %4719 = vst [vmem:[#allocation2 + $0x7d8] sm:$0xff] %v4463
    %4720 = vst [vmem:[#allocation2 + $0x7e0] sm:$0xff] %v4464
    %4721 = vst [vmem:[#allocation2 + $0x7e8] sm:$0xff] %v4465
    %4722 = vst [vmem:[#allocation2 + $0x7f0] sm:$0xff] %v4466
    %4723 = vst [vmem:[#allocation2 + $0x7f8] sm:$0xff] %v4467
    // Predicated region
    $region14: #{tpu_custom_call.1} parent=1 // pred_check
      _
    $region15: #{tpu_custom_call.1} parent=1 // pred_check_branch
      %4725 = sbr.rel (0) target = $region17
    $region16: #{tpu_custom_call.1} parent=1 // pred_region
      %s4727 = ssub.s32 32768, 32768
      %4728 = vsyncadd [#allocation3], %s4727
      %s4729 = sshll.u32 [#allocation2], 4
      %s4730 = int_to_ptr.vmem [resolvable:$true] %s4729
      %4735 = dma.vmem_to_hbm [thread:$0]  %s4730, 32768, %s3, [#allocation3], 128, 128, 8
    $region17: #{tpu_custom_call.1} parent=1 // pred_fallthru
      _
    // Predicated region
    $region18: #{tpu_custom_call.1} parent=1 // pred_check
      _
    $region19: #{tpu_custom_call.1} parent=1 // pred_check_branch
      %4737 = sbr.rel (0) target = $region21
    $region20: #{tpu_custom_call.1} parent=1 // pred_region
      %4738 = dma.done [#allocation3], 32768
    $region21: #{tpu_custom_call.1} parent=1 // pred_fallthru
      _
    %4739 = vsyncpa [#allocation3], 1

</llo_original>
